<compile_context>
chip_gen: v7x
topology: tpu7x:2x2x1
jax: 0.10.0
libtpu: 0.0.40
codegen_flags: <defaults>
</compile_context>

<pallas_src>
import functools

import jax
import jax.numpy as jnp
from jax.experimental import pallas as pl
from jax.experimental.pallas import tpu as pltpu


# -----------------------------------------------------------------------------
# Shared gate math (f32 elementwise; works on all generations incl. v5e)
# -----------------------------------------------------------------------------
def _lstm_cell_update(gates, c):
    """gates: (B, 4F) f32 pre-activations in PyTorch order [i, f, g, o]."""
    F = c.shape[-1]
    i_g = jax.nn.sigmoid(gates[:, 0 * F:1 * F])
    f_g = jax.nn.sigmoid(gates[:, 1 * F:2 * F])
    g_g = jnp.tanh(gates[:, 2 * F:3 * F])
    o_g = jax.nn.sigmoid(gates[:, 3 * F:4 * F])
    c_new = f_g * c + i_g * g_g
    h_new = o_g * jnp.tanh(c_new)
    return h_new, c_new


# -----------------------------------------------------------------------------
# Kernel 1: hoisted input projection  gates_x = x @ W_ih + (b_ih + b_hh)
#   One big MXU matmul over all timesteps at once (M = T*B rows).
# -----------------------------------------------------------------------------
def _proj_kernel(x_ref, w_ref, b_ref, o_ref):
    o_ref[...] = (jnp.dot(x_ref[...].astype(jnp.bfloat16), w_ref[...],
                          preferred_element_type=jnp.float32)
                  + b_ref[...])


def input_projection(x2d, w_ih_bf16, b):
    """x2d: (M, F) f32, w_ih_bf16: (F, 4F) bf16, b: (1, 4F) f32 -> (M, 4F) f32."""
    M, F = x2d.shape
    N = w_ih_bf16.shape[1]
    # Single block: fine at test scale; tile over M for production T*B.
    grid_spec = pltpu.PrefetchScalarGridSpec(
        num_scalar_prefetch=0,
        grid=(1,),
        in_specs=[
            pl.BlockSpec((M, F), lambda i: (0, 0)),
            pl.BlockSpec((F, N), lambda i: (0, 0)),
            pl.BlockSpec((1, N), lambda i: (0, 0)),
        ],
        out_specs=pl.BlockSpec((M, N), lambda i: (0, 0)),
    )
    return pl.pallas_call(
        _proj_kernel,
        out_shape=jax.ShapeDtypeStruct((M, N), jnp.float32),
        grid_spec=grid_spec,
    )(x2d, w_ih_bf16, b)


# -----------------------------------------------------------------------------
# Kernel 2: encoder recurrence. Per step: gates = gates_x[t] + h @ W_hh.
#   Outputs only (last_h, last_c), written on the final timestep.
# -----------------------------------------------------------------------------
def _lstm_encoder_kernel(gx_ref, whh_ref, lasth_ref, lastc_ref, h_s, c_s):
    t = pl.program_id(0)

    @pl.when(t == 0)
    def _():
        h_s[...] = jnp.zeros_like(h_s)
        c_s[...] = jnp.zeros_like(c_s)

    h = h_s[...]
    c = c_s[...]
    gates = gx_ref[0] + jnp.dot(h.astype(jnp.bfloat16), whh_ref[...],
                                preferred_element_type=jnp.float32)
    h_new, c_new = _lstm_cell_update(gates, c)
    h_s[...] = h_new
    c_s[...] = c_new

    @pl.when(t == pl.num_programs(0) - 1)
    def _():
        lasth_ref[...] = h_new
        lastc_ref[...] = c_new


def lstm_encoder(gates_x, w_hh_bf16):
    """gates_x: (T, B, 4F) f32 (bias already fused). Returns (last_h, last_c)."""
    T, B, N = gates_x.shape
    F = N // 4
    grid_spec = pltpu.PrefetchScalarGridSpec(
        num_scalar_prefetch=0,
        grid=(T,),
        in_specs=[
            pl.BlockSpec((1, B, N), lambda t: (t, 0, 0)),   # gates_x[t] (streamed)
            pl.BlockSpec((F, N), lambda t: (0, 0)),         # W_hh (resident, bf16)
        ],
        out_specs=(
            pl.BlockSpec((B, F), lambda t: (0, 0)),         # last_h (resident)
            pl.BlockSpec((B, F), lambda t: (0, 0)),         # last_c (resident)
        ),
        scratch_shapes=[
            pltpu.VMEM((B, F), jnp.float32),                # h carry
            pltpu.VMEM((B, F), jnp.float32),                # c carry
        ],
    )
    return pl.pallas_call(
        _lstm_encoder_kernel,
        out_shape=(jax.ShapeDtypeStruct((B, F), jnp.float32),
                   jax.ShapeDtypeStruct((B, F), jnp.float32)),
        grid_spec=grid_spec,
        compiler_params=pltpu.CompilerParams(
            dimension_semantics=("arbitrary",)),            # sequential recurrence
    )(gates_x, w_hh_bf16)


# -----------------------------------------------------------------------------
# Kernel 3: decoder recurrence with all-zero inputs.
#   Per step: gates = bias + h @ W_hh.  Output only all_h (streamed per step).
# -----------------------------------------------------------------------------
def _lstm_decoder_kernel(h0_ref, whh_ref, b_ref, allh_ref, h_s, c_s):
    t = pl.program_id(0)

    @pl.when(t == 0)
    def _():
        h_s[...] = h0_ref[...]            # init hidden = encoder last_h
        c_s[...] = jnp.zeros_like(c_s)    # init cell = zeros (module semantics)

    h = h_s[...]
    c = c_s[...]
    gates = b_ref[...] + jnp.dot(h.astype(jnp.bfloat16), whh_ref[...],
                                 preferred_element_type=jnp.float32)
    h_new, c_new = _lstm_cell_update(gates, c)
    h_s[...] = h_new
    c_s[...] = c_new
    allh_ref[0] = h_new


def lstm_decoder(h0, w_hh_bf16, b, dec_seq_len):
    """h0: (B, F) f32. Returns all_h: (T_dec, B, F) f32."""
    B, F = h0.shape
    N = 4 * F
    grid_spec = pltpu.PrefetchScalarGridSpec(
        num_scalar_prefetch=0,
        grid=(dec_seq_len,),
        in_specs=[
            pl.BlockSpec((B, F), lambda t: (0, 0)),         # h0 (resident)
            pl.BlockSpec((F, N), lambda t: (0, 0)),         # W_hh (resident, bf16)
            pl.BlockSpec((1, N), lambda t: (0, 0)),         # fused bias (resident)
        ],
        out_specs=pl.BlockSpec((1, B, F), lambda t: (t, 0, 0)),
        scratch_shapes=[
            pltpu.VMEM((B, F), jnp.float32),                # h carry
            pltpu.VMEM((B, F), jnp.float32),                # c carry
        ],
    )
    return pl.pallas_call(
        _lstm_decoder_kernel,
        out_shape=jax.ShapeDtypeStruct((dec_seq_len, B, F), jnp.float32),
        grid_spec=grid_spec,
        compiler_params=pltpu.CompilerParams(
            dimension_semantics=("arbitrary",)),
    )(h0, w_hh_bf16, b)


# -----------------------------------------------------------------------------
# FC_LSTM forward (glue in plain JAX; matmuls/recurrence in Pallas)
# -----------------------------------------------------------------------------
def make_params(key, F):
    """Deterministic synthetic LSTM parameters (PyTorch gate order i,f,g,o)."""
    ks = jax.random.split(key, 8)
    scale = 0.1 / jnp.sqrt(jnp.float32(F))

    def w(k, shape):
        return jax.random.normal(k, shape, jnp.float32) * scale

    params = {}
    for name, koff in (("enc", 0), ("dec", 4)):
        w_ih = w(ks[koff + 0], (4 * F, F))      # PyTorch layout (4F, F)
        w_hh = w(ks[koff + 1], (4 * F, F))
        b_ih = w(ks[koff + 2], (4 * F,))
        b_hh = w(ks[koff + 3], (4 * F,))
        w_ih_t = jnp.transpose(w_ih)            # (F, 4F)
        w_hh_t = jnp.transpose(w_hh)            # (F, 4F)
        params[name] = {
            # kernel weights: bf16 storage/stream, f32 accumulate in-kernel
            "w_ih_bf16": w_ih_t.astype(jnp.bfloat16),
            "w_hh_bf16": w_hh_t.astype(jnp.bfloat16),
            "b": (b_ih + b_hh).reshape(1, 4 * F),            # fused bias, f32
            # f32 copies kept only for the reference check
            "w_ih_t": w_ih_t,
            "w_hh_t": w_hh_t,
        }
    return params


def fc_lstm_forward(x, params, dec_seq_len):
    B, T_enc, H, W = x.shape
    F = H * W
    # time-major rows: row index t*B + b  <->  x[b, t]
    x2d = jnp.transpose(x.reshape(B, T_enc, F), (1, 0, 2)).reshape(T_enc * B, F)

    enc = params["enc"]
    # (1) hoisted input projection (single big matmul, bias fused in)
    gates_x = input_projection(x2d, enc["w_ih_bf16"], enc["b"])
    gates_x = gates_x.reshape(T_enc, B, 4 * F)

    # (2) encoder recurrence; encoder all_h is never used -> not produced
    last_h, _last_c = lstm_encoder(gates_x, enc["w_hh_bf16"])

    # (3) decoder: zero inputs -> specialized kernel (no x stream / x matmul);
    #     decoder W_ih is mathematically unused (zeros input).
    dec = params["dec"]
    all_h = lstm_decoder(last_h, dec["w_hh_bf16"], dec["b"], dec_seq_len)

    return jnp.transpose(all_h, (1, 0, 2)).reshape(B, dec_seq_len, H, W)


# -----------------------------------------------------------------------------
# Pure-JAX reference (lax.scan) for correctness checking
# -----------------------------------------------------------------------------
def lstm_ref(x_tm, w_ih_t, w_hh_t, b, h0, c0):
    F = h0.shape[-1]

    def step(carry, x_t):
        h, c = carry
        g = x_t @ w_ih_t + h @ w_hh_t + b
        i = jax.nn.sigmoid(g[:, 0 * F:1 * F])
        f = jax.nn.sigmoid(g[:, 1 * F:2 * F])
        gg = jnp.tanh(g[:, 2 * F:3 * F])
        o = jax.nn.sigmoid(g[:, 3 * F:4 * F])
        c = f * c + i * gg
        h = o * jnp.tanh(c)
        return (h, c), h

    (h, c), all_h = jax.lax.scan(step, (h0, c0), x_tm)
    return all_h, h, c


def fc_lstm_ref(x, ref_p, dec_seq_len):
    B, T_enc, H, W = x.shape
    F = H * W
    x_tm = jnp.transpose(x.reshape(B, T_enc, F), (1, 0, 2))
    z = jnp.zeros((B, F), jnp.float32)
    enc, dec = ref_p["enc"], ref_p["dec"]
    _, last_h, _ = lstm_ref(x_tm, enc["w_ih_t"], enc["w_hh_t"], enc["b"], z, z)
    x_dec = jnp.zeros((dec_seq_len, B, F), jnp.float32)
    all_h, _, _ = lstm_ref(x_dec, dec["w_ih_t"], dec["w_hh_t"], dec["b"], last_h, z)
    return jnp.transpose(all_h, (1, 0, 2)).reshape(B, dec_seq_len, H, W)


def ref_params(params, use_quantized_weights):
    """Build reference params either from the bf16 (kernel) weights or full f32."""
    out = {}
    for name in ("enc", "dec"):
        p = params[name]
        if use_quantized_weights:
            out[name] = {"w_ih_t": p["w_ih_bf16"].astype(jnp.float32),
                         "w_hh_t": p["w_hh_bf16"].astype(jnp.float32),
                         "b": p["b"]}
        else:
            out[name] = {"w_ih_t": p["w_ih_t"], "w_hh_t": p["w_hh_t"], "b": p["b"]}
    return out


# -----------------------------------------------------------------------------
if __name__ == "__main__":
    # Small shapes consistent with the module (original: B=100, T=20, 64x64).
    B, T_ENC, H, W = 8, 4, 16, 16          # F = 256 hidden units
    T_DEC = 5

    key = jax.random.PRNGKey(0)
    k_x, k_p = jax.random.split(key)
    x = jax.random.normal(k_x, (B, T_ENC, H, W), jnp.float32)
    params = make_params(k_p, H * W)

    fwd = jax.jit(functools.partial(fc_lstm_forward, dec_seq_len=T_DEC))
    out = jax.block_until_ready(fwd(x, params))
    assert out.shape == (B, T_DEC, H, W), out.shape

    # Strict check: same (bf16-quantized) weights as the kernel, f32 math.
    ref_q = jax.block_until_ready(fc_lstm_ref(x, ref_params(params, True), T_DEC))
    assert jnp.allclose(out, ref_q, rtol=1e-2, atol=1e-3), (
        float(jnp.max(jnp.abs(out - ref_q))))

    # Loose check: original full-f32 module semantics (only delta = bf16 weights).
    ref_f = jax.block_until_ready(fc_lstm_ref(x, ref_params(params, False), T_DEC))
    assert jnp.allclose(out, ref_f, rtol=2e-2, atol=5e-3), (
        float(jnp.max(jnp.abs(out - ref_f))))

    print("KERNEL_OK")
</pallas_src>

<mosaic_0001>
module attributes {stable_mosaic.version = 11 : i64} {
  func.func @_proj_kernel(%arg0: i32, %arg1: memref<32x256xf32, #tpu.memory_space<vmem>>, %arg2: memref<256x1024xbf16, #tpu.memory_space<vmem>>, %arg3: memref<1x1024xf32, #tpu.memory_space<vmem>>, %arg4: memref<32x1024xf32, #tpu.memory_space<vmem>>) attributes {dimension_semantics = [#tpu.dimension_semantics<arbitrary>], iteration_bounds = array<i64: 1>, scalar_prefetch = 0 : i64, scratch_operands = 0 : i64, tpu.core_type = #tpu.core_type<tc>, window_params = [{pipeline_mode = #tpu.pipeline_mode<synchronous>, transform_indices = @transform_0, window_bounds = array<i64: 32, 256>}, {pipeline_mode = #tpu.pipeline_mode<synchronous>, transform_indices = @transform_1, window_bounds = array<i64: 256, 1024>}, {pipeline_mode = #tpu.pipeline_mode<synchronous>, transform_indices = @transform_2, window_bounds = array<i64: 1, 1024>}, {pipeline_mode = #tpu.pipeline_mode<synchronous>, transform_indices = @transform_3, window_bounds = array<i64: 32, 1024>}]} {
    %c0 = arith.constant 0 : index
    %c0_0 = arith.constant 0 : index
    %0 = vector.load %arg1[%c0, %c0_0] : memref<32x256xf32, #tpu.memory_space<vmem>>, vector<32x256xf32>
    %1 = arith.truncf %0 : vector<32x256xf32> to vector<32x256xbf16>
    %c0_1 = arith.constant 0 : index
    %c0_2 = arith.constant 0 : index
    %2 = vector.load %arg2[%c0_1, %c0_2] : memref<256x1024xbf16, #tpu.memory_space<vmem>>, vector<256x1024xbf16>
    %cst = arith.constant dense<0.000000e+00> : vector<32x1024xf32>
    %3 = tpu.matmul %1, %2, %cst {dimension_numbers = #tpu.dot_dimension_numbers<[1], [0], [0], [1], [0, 0, 1, 1], [], []>} : vector<32x256xbf16>, vector<256x1024xbf16>, vector<32x1024xf32> -> vector<32x1024xf32>
    %c0_3 = arith.constant 0 : index
    %c0_4 = arith.constant 0 : index
    %4 = vector.load %arg3[%c0_3, %c0_4] : memref<1x1024xf32, #tpu.memory_space<vmem>>, vector<1x1024xf32>
    %5 = vector.broadcast %4 : vector<1x1024xf32> to vector<32x1024xf32>
    %6 = arith.addf %3, %5 : vector<32x1024xf32>
    %c0_5 = arith.constant 0 : index
    %c0_6 = arith.constant 0 : index
    %7 = vector.load %arg4[%c0_5, %c0_6] : memref<32x1024xf32, #tpu.memory_space<vmem>>, vector<32x1024xf32>
    tpu.vector_store %arg4[%c0_5, %c0_6], %6 {strides = array<i32>} : memref<32x1024xf32, #tpu.memory_space<vmem>>, vector<32x1024xf32>,
    return
  }
  func.func @transform_0(%arg0: i32) -> (i32, i32) {
    %c0_i32 = arith.constant 0 : i32
    %c0_i32_0 = arith.constant 0 : i32
    %c0_i32_1 = arith.constant 0 : i32
    return %c0_i32, %c0_i32_0 : i32, i32
  }
  func.func @transform_1(%arg0: i32) -> (i32, i32) {
    %c0_i32 = arith.constant 0 : i32
    %c0_i32_0 = arith.constant 0 : i32
    %c0_i32_1 = arith.constant 0 : i32
    return %c0_i32, %c0_i32_0 : i32, i32
  }
  func.func @transform_2(%arg0: i32) -> (i32, i32) {
    %c0_i32 = arith.constant 0 : i32
    %c0_i32_0 = arith.constant 0 : i32
    %c0_i32_1 = arith.constant 0 : i32
    return %c0_i32, %c0_i32_0 : i32, i32
  }
  func.func @transform_3(%arg0: i32) -> (i32, i32) {
    %c0_i32 = arith.constant 0 : i32
    %c0_i32_0 = arith.constant 0 : i32
    %c0_i32_1 = arith.constant 0 : i32
    return %c0_i32, %c0_i32_0 : i32, i32
  }
}

module attributes {stable_mosaic.version = 11 : i64} {
  func.func @_lstm_encoder_kernel(%arg0: i32, %arg1: memref<1x8x1024xf32, #tpu.memory_space<vmem>>, %arg2: memref<256x1024xbf16, #tpu.memory_space<vmem>>, %arg3: memref<8x256xf32, #tpu.memory_space<vmem>>, %arg4: memref<8x256xf32, #tpu.memory_space<vmem>>, %arg5: memref<8x256xf32, #tpu.memory_space<vmem>>, %arg6: memref<8x256xf32, #tpu.memory_space<vmem>>) attributes {dimension_semantics = [#tpu.dimension_semantics<arbitrary>], iteration_bounds = array<i64: 4>, scalar_prefetch = 0 : i64, scratch_operands = 2 : i64, tpu.core_type = #tpu.core_type<tc>, window_params = [{transform_indices = @transform_0, window_bounds = array<i64: 1, 8, 1024>}, {pipeline_mode = #tpu.pipeline_mode<synchronous>, transform_indices = @transform_1, window_bounds = array<i64: 256, 1024>}, {pipeline_mode = #tpu.pipeline_mode<synchronous>, transform_indices = @transform_2, window_bounds = array<i64: 8, 256>}, {pipeline_mode = #tpu.pipeline_mode<synchronous>, transform_indices = @transform_3, window_bounds = array<i64: 8, 256>}]} {
    %c0_i32 = arith.constant 0 : i32
    %0 = arith.cmpi eq, %arg0, %c0_i32 : i32
    %1 = arith.extui %0 : i1 to i32
    %c0_i32_0 = arith.constant 0 : i32
    %2 = arith.cmpi ne, %1, %c0_i32_0 : i32
    scf.if %2 {
      %cst_17 = arith.constant 0.000000e+00 : f32
      %41 = vector.broadcast %cst_17 : f32 to vector<8x256xf32>
      %c0_18 = arith.constant 0 : index
      %c0_19 = arith.constant 0 : index
      %42 = vector.load %arg5[%c0_18, %c0_19] : memref<8x256xf32, #tpu.memory_space<vmem>>, vector<8x256xf32>
      tpu.vector_store %arg5[%c0_18, %c0_19], %41 {strides = array<i32>} : memref<8x256xf32, #tpu.memory_space<vmem>>, vector<8x256xf32>,
      %cst_20 = arith.constant 0.000000e+00 : f32
      %43 = vector.broadcast %cst_20 : f32 to vector<8x256xf32>
      %c0_21 = arith.constant 0 : index
      %c0_22 = arith.constant 0 : index
      %44 = vector.load %arg6[%c0_21, %c0_22] : memref<8x256xf32, #tpu.memory_space<vmem>>, vector<8x256xf32>
      tpu.vector_store %arg6[%c0_21, %c0_22], %43 {strides = array<i32>} : memref<8x256xf32, #tpu.memory_space<vmem>>, vector<8x256xf32>,
    } else {
    }
    %c0 = arith.constant 0 : index
    %c0_1 = arith.constant 0 : index
    %3 = vector.load %arg5[%c0, %c0_1] : memref<8x256xf32, #tpu.memory_space<vmem>>, vector<8x256xf32>
    %c0_2 = arith.constant 0 : index
    %c0_3 = arith.constant 0 : index
    %4 = vector.load %arg6[%c0_2, %c0_3] : memref<8x256xf32, #tpu.memory_space<vmem>>, vector<8x256xf32>
    %c0_4 = arith.constant 0 : index
    %c0_5 = arith.constant 0 : index
    %c0_6 = arith.constant 0 : index
    %5 = vector.load %arg1[%c0_4, %c0_5, %c0_6] : memref<1x8x1024xf32, #tpu.memory_space<vmem>>, vector<1x8x1024xf32>
    %6 = vector.shape_cast %5 : vector<1x8x1024xf32> to vector<8x1024xf32>
    %7 = arith.truncf %3 : vector<8x256xf32> to vector<8x256xbf16>
    %c0_7 = arith.constant 0 : index
    %c0_8 = arith.constant 0 : index
    %8 = vector.load %arg2[%c0_7, %c0_8] : memref<256x1024xbf16, #tpu.memory_space<vmem>>, vector<256x1024xbf16>
    %cst = arith.constant dense<0.000000e+00> : vector<8x1024xf32>
    %9 = tpu.matmul %7, %8, %cst {dimension_numbers = #tpu.dot_dimension_numbers<[1], [0], [0], [1], [0, 0, 1, 1], [], []>} : vector<8x256xbf16>, vector<256x1024xbf16>, vector<8x1024xf32> -> vector<8x1024xf32>
    %10 = arith.addf %6, %9 : vector<8x1024xf32>
    %11 = vector.extract_strided_slice %10 {offsets = [0, 0], sizes = [8, 256], strides = [1, 1]} : vector<8x1024xf32> to vector<8x256xf32>
    %12 = arith.negf %11 : vector<8x256xf32>
    %13 = math.exp %12 : vector<8x256xf32>
    %cst_9 = arith.constant 1.000000e+00 : f32
    %14 = vector.broadcast %cst_9 : f32 to vector<8x256xf32>
    %15 = arith.addf %14, %13 : vector<8x256xf32>
    %16 = arith.divf %14, %15 : vector<8x256xf32>
    %17 = vector.extract_strided_slice %10 {offsets = [0, 256], sizes = [8, 256], strides = [1, 1]} : vector<8x1024xf32> to vector<8x256xf32>
    %18 = arith.negf %17 : vector<8x256xf32>
    %19 = math.exp %18 : vector<8x256xf32>
    %cst_10 = arith.constant 1.000000e+00 : f32
    %20 = vector.broadcast %cst_10 : f32 to vector<8x256xf32>
    %21 = arith.addf %20, %19 : vector<8x256xf32>
    %22 = arith.divf %20, %21 : vector<8x256xf32>
    %23 = vector.extract_strided_slice %10 {offsets = [0, 512], sizes = [8, 256], strides = [1, 1]} : vector<8x1024xf32> to vector<8x256xf32>
    %24 = math.tanh %23 : vector<8x256xf32>
    %25 = vector.extract_strided_slice %10 {offsets = [0, 768], sizes = [8, 256], strides = [1, 1]} : vector<8x1024xf32> to vector<8x256xf32>
    %26 = arith.negf %25 : vector<8x256xf32>
    %27 = math.exp %26 : vector<8x256xf32>
    %cst_11 = arith.constant 1.000000e+00 : f32
    %28 = vector.broadcast %cst_11 : f32 to vector<8x256xf32>
    %29 = arith.addf %28, %27 : vector<8x256xf32>
    %30 = arith.divf %28, %29 : vector<8x256xf32>
    %31 = arith.mulf %22, %4 : vector<8x256xf32>
    %32 = arith.mulf %16, %24 : vector<8x256xf32>
    %33 = arith.addf %31, %32 : vector<8x256xf32>
    %34 = math.tanh %33 : vector<8x256xf32>
    %35 = arith.mulf %30, %34 : vector<8x256xf32>
    %c0_12 = arith.constant 0 : index
    %c0_13 = arith.constant 0 : index
    %36 = vector.load %arg5[%c0_12, %c0_13] : memref<8x256xf32, #tpu.memory_space<vmem>>, vector<8x256xf32>
    tpu.vector_store %arg5[%c0_12, %c0_13], %35 {strides = array<i32>} : memref<8x256xf32, #tpu.memory_space<vmem>>, vector<8x256xf32>,
    %c0_14 = arith.constant 0 : index
    %c0_15 = arith.constant 0 : index
    %37 = vector.load %arg6[%c0_14, %c0_15] : memref<8x256xf32, #tpu.memory_space<vmem>>, vector<8x256xf32>
    tpu.vector_store %arg6[%c0_14, %c0_15], %33 {strides = array<i32>} : memref<8x256xf32, #tpu.memory_space<vmem>>, vector<8x256xf32>,
    %c3_i32 = arith.constant 3 : i32
    %38 = arith.cmpi eq, %arg0, %c3_i32 : i32
    %39 = arith.extui %38 : i1 to i32
    %c0_i32_16 = arith.constant 0 : i32
    %40 = arith.cmpi ne, %39, %c0_i32_16 : i32
    scf.if %40 {
      %c0_17 = arith.constant 0 : index
      %c0_18 = arith.constant 0 : index
      %41 = vector.load %arg3[%c0_17, %c0_18] : memref<8x256xf32, #tpu.memory_space<vmem>>, vector<8x256xf32>
      tpu.vector_store %arg3[%c0_17, %c0_18], %35 {strides = array<i32>} : memref<8x256xf32, #tpu.memory_space<vmem>>, vector<8x256xf32>,
      %c0_19 = arith.constant 0 : index
      %c0_20 = arith.constant 0 : index
      %42 = vector.load %arg4[%c0_19, %c0_20] : memref<8x256xf32, #tpu.memory_space<vmem>>, vector<8x256xf32>
      tpu.vector_store %arg4[%c0_19, %c0_20], %33 {strides = array<i32>} : memref<8x256xf32, #tpu.memory_space<vmem>>, vector<8x256xf32>,
    } else {
    }
    return
  }
  func.func @transform_0(%arg0: i32) -> (i32, i32, i32) {
    %c0_i32 = arith.constant 0 : i32
    %c0_i32_0 = arith.constant 0 : i32
    %c0_i32_1 = arith.constant 0 : i32
    return %arg0, %c0_i32, %c0_i32_0 : i32, i32, i32
  }
  func.func @transform_1(%arg0: i32) -> (i32, i32) {
    %c0_i32 = arith.constant 0 : i32
    %c0_i32_0 = arith.constant 0 : i32
    %c0_i32_1 = arith.constant 0 : i32
    return %c0_i32, %c0_i32_0 : i32, i32
  }
  func.func @transform_2(%arg0: i32) -> (i32, i32) {
    %c0_i32 = arith.constant 0 : i32
    %c0_i32_0 = arith.constant 0 : i32
    %c0_i32_1 = arith.constant 0 : i32
    return %c0_i32, %c0_i32_0 : i32, i32
  }
  func.func @transform_3(%arg0: i32) -> (i32, i32) {
    %c0_i32 = arith.constant 0 : i32
    %c0_i32_0 = arith.constant 0 : i32
    %c0_i32_1 = arith.constant 0 : i32
    return %c0_i32, %c0_i32_0 : i32, i32
  }
}

module attributes {stable_mosaic.version = 11 : i64} {
  func.func @_lstm_decoder_kernel(%arg0: i32, %arg1: memref<8x256xf32, #tpu.memory_space<vmem>>, %arg2: memref<256x1024xbf16, #tpu.memory_space<vmem>>, %arg3: memref<1x1024xf32, #tpu.memory_space<vmem>>, %arg4: memref<1x8x256xf32, #tpu.memory_space<vmem>>, %arg5: memref<8x256xf32, #tpu.memory_space<vmem>>, %arg6: memref<8x256xf32, #tpu.memory_space<vmem>>) attributes {dimension_semantics = [#tpu.dimension_semantics<arbitrary>], iteration_bounds = array<i64: 5>, scalar_prefetch = 0 : i64, scratch_operands = 2 : i64, tpu.core_type = #tpu.core_type<tc>, window_params = [{pipeline_mode = #tpu.pipeline_mode<synchronous>, transform_indices = @transform_0, window_bounds = array<i64: 8, 256>}, {pipeline_mode = #tpu.pipeline_mode<synchronous>, transform_indices = @transform_1, window_bounds = array<i64: 256, 1024>}, {pipeline_mode = #tpu.pipeline_mode<synchronous>, transform_indices = @transform_2, window_bounds = array<i64: 1, 1024>}, {transform_indices = @transform_3, window_bounds = array<i64: 1, 8, 256>}]} {
    %c0_i32 = arith.constant 0 : i32
    %0 = arith.cmpi eq, %arg0, %c0_i32 : i32
    %1 = arith.extui %0 : i1 to i32
    %c0_i32_0 = arith.constant 0 : i32
    %2 = arith.cmpi ne, %1, %c0_i32_0 : i32
    scf.if %2 {
      %c0_18 = arith.constant 0 : index
      %c0_19 = arith.constant 0 : index
      %41 = vector.load %arg1[%c0_18, %c0_19] : memref<8x256xf32, #tpu.memory_space<vmem>>, vector<8x256xf32>
      %c0_20 = arith.constant 0 : index
      %c0_21 = arith.constant 0 : index
      %42 = vector.load %arg5[%c0_20, %c0_21] : memref<8x256xf32, #tpu.memory_space<vmem>>, vector<8x256xf32>
      tpu.vector_store %arg5[%c0_20, %c0_21], %41 {strides = array<i32>} : memref<8x256xf32, #tpu.memory_space<vmem>>, vector<8x256xf32>,
      %cst_22 = arith.constant 0.000000e+00 : f32
      %43 = vector.broadcast %cst_22 : f32 to vector<8x256xf32>
      %c0_23 = arith.constant 0 : index
      %c0_24 = arith.constant 0 : index
      %44 = vector.load %arg6[%c0_23, %c0_24] : memref<8x256xf32, #tpu.memory_space<vmem>>, vector<8x256xf32>
      tpu.vector_store %arg6[%c0_23, %c0_24], %43 {strides = array<i32>} : memref<8x256xf32, #tpu.memory_space<vmem>>, vector<8x256xf32>,
    } else {
    }
    %c0 = arith.constant 0 : index
    %c0_1 = arith.constant 0 : index
    %3 = vector.load %arg5[%c0, %c0_1] : memref<8x256xf32, #tpu.memory_space<vmem>>, vector<8x256xf32>
    %c0_2 = arith.constant 0 : index
    %c0_3 = arith.constant 0 : index
    %4 = vector.load %arg6[%c0_2, %c0_3] : memref<8x256xf32, #tpu.memory_space<vmem>>, vector<8x256xf32>
    %c0_4 = arith.constant 0 : index
    %c0_5 = arith.constant 0 : index
    %5 = vector.load %arg3[%c0_4, %c0_5] : memref<1x1024xf32, #tpu.memory_space<vmem>>, vector<1x1024xf32>
    %6 = arith.truncf %3 : vector<8x256xf32> to vector<8x256xbf16>
    %c0_6 = arith.constant 0 : index
    %c0_7 = arith.constant 0 : index
    %7 = vector.load %arg2[%c0_6, %c0_7] : memref<256x1024xbf16, #tpu.memory_space<vmem>>, vector<256x1024xbf16>
    %cst = arith.constant dense<0.000000e+00> : vector<8x1024xf32>
    %8 = tpu.matmul %6, %7, %cst {dimension_numbers = #tpu.dot_dimension_numbers<[1], [0], [0], [1], [0, 0, 1, 1], [], []>} : vector<8x256xbf16>, vector<256x1024xbf16>, vector<8x1024xf32> -> vector<8x1024xf32>
    %9 = vector.broadcast %5 : vector<1x1024xf32> to vector<8x1024xf32>
    %10 = arith.addf %9, %8 : vector<8x1024xf32>
    %11 = vector.extract_strided_slice %10 {offsets = [0, 0], sizes = [8, 256], strides = [1, 1]} : vector<8x1024xf32> to vector<8x256xf32>
    %12 = arith.negf %11 : vector<8x256xf32>
    %13 = math.exp %12 : vector<8x256xf32>
    %cst_8 = arith.constant 1.000000e+00 : f32
    %14 = vector.broadcast %cst_8 : f32 to vector<8x256xf32>
    %15 = arith.addf %14, %13 : vector<8x256xf32>
    %16 = arith.divf %14, %15 : vector<8x256xf32>
    %17 = vector.extract_strided_slice %10 {offsets = [0, 256], sizes = [8, 256], strides = [1, 1]} : vector<8x1024xf32> to vector<8x256xf32>
    %18 = arith.negf %17 : vector<8x256xf32>
    %19 = math.exp %18 : vector<8x256xf32>
    %cst_9 = arith.constant 1.000000e+00 : f32
    %20 = vector.broadcast %cst_9 : f32 to vector<8x256xf32>
    %21 = arith.addf %20, %19 : vector<8x256xf32>
    %22 = arith.divf %20, %21 : vector<8x256xf32>
    %23 = vector.extract_strided_slice %10 {offsets = [0, 512], sizes = [8, 256], strides = [1, 1]} : vector<8x1024xf32> to vector<8x256xf32>
    %24 = math.tanh %23 : vector<8x256xf32>
    %25 = vector.extract_strided_slice %10 {offsets = [0, 768], sizes = [8, 256], strides = [1, 1]} : vector<8x1024xf32> to vector<8x256xf32>
    %26 = arith.negf %25 : vector<8x256xf32>
    %27 = math.exp %26 : vector<8x256xf32>
    %cst_10 = arith.constant 1.000000e+00 : f32
    %28 = vector.broadcast %cst_10 : f32 to vector<8x256xf32>
    %29 = arith.addf %28, %27 : vector<8x256xf32>
    %30 = arith.divf %28, %29 : vector<8x256xf32>
    %31 = arith.mulf %22, %4 : vector<8x256xf32>
    %32 = arith.mulf %16, %24 : vector<8x256xf32>
    %33 = arith.addf %31, %32 : vector<8x256xf32>
    %34 = math.tanh %33 : vector<8x256xf32>
    %35 = arith.mulf %30, %34 : vector<8x256xf32>
    %c0_11 = arith.constant 0 : index
    %c0_12 = arith.constant 0 : index
    %36 = vector.load %arg5[%c0_11, %c0_12] : memref<8x256xf32, #tpu.memory_space<vmem>>, vector<8x256xf32>
    tpu.vector_store %arg5[%c0_11, %c0_12], %35 {strides = array<i32>} : memref<8x256xf32, #tpu.memory_space<vmem>>, vector<8x256xf32>,
    %c0_13 = arith.constant 0 : index
    %c0_14 = arith.constant 0 : index
    %37 = vector.load %arg6[%c0_13, %c0_14] : memref<8x256xf32, #tpu.memory_space<vmem>>, vector<8x256xf32>
    tpu.vector_store %arg6[%c0_13, %c0_14], %33 {strides = array<i32>} : memref<8x256xf32, #tpu.memory_space<vmem>>, vector<8x256xf32>,
    %c0_15 = arith.constant 0 : index
    %c0_16 = arith.constant 0 : index
    %c0_17 = arith.constant 0 : index
    %38 = vector.load %arg4[%c0_15, %c0_16, %c0_17] : memref<1x8x256xf32, #tpu.memory_space<vmem>>, vector<1x8x256xf32>
    %39 = vector.shape_cast %38 : vector<1x8x256xf32> to vector<8x256xf32>
    %40 = vector.shape_cast %35 : vector<8x256xf32> to vector<1x8x256xf32>
    tpu.vector_store %arg4[%c0_15, %c0_16, %c0_17], %40 {strides = array<i32>} : memref<1x8x256xf32, #tpu.memory_space<vmem>>, vector<1x8x256xf32>,
    return
  }
  func.func @transform_0(%arg0: i32) -> (i32, i32) {
    %c0_i32 = arith.constant 0 : i32
    %c0_i32_0 = arith.constant 0 : i32
    %c0_i32_1 = arith.constant 0 : i32
    return %c0_i32, %c0_i32_0 : i32, i32
  }
  func.func @transform_1(%arg0: i32) -> (i32, i32) {
    %c0_i32 = arith.constant 0 : i32
    %c0_i32_0 = arith.constant 0 : i32
    %c0_i32_1 = arith.constant 0 : i32
    return %c0_i32, %c0_i32_0 : i32, i32
  }
  func.func @transform_2(%arg0: i32) -> (i32, i32) {
    %c0_i32 = arith.constant 0 : i32
    %c0_i32_0 = arith.constant 0 : i32
    %c0_i32_1 = arith.constant 0 : i32
    return %c0_i32, %c0_i32_0 : i32, i32
  }
  func.func @transform_3(%arg0: i32) -> (i32, i32, i32) {
    %c0_i32 = arith.constant 0 : i32
    %c0_i32_0 = arith.constant 0 : i32
    %c0_i32_1 = arith.constant 0 : i32
    return %arg0, %c0_i32, %c0_i32_0 : i32, i32, i32
  }
}

</mosaic_0001>

<llo_original>
// kernel: fc_lstm_forward.5
$region0: #{fc_lstm_forward.5}
  #allocation0 [shape = 'u32[]', space=smem, size = 0x4, offset = 0x4, fixed_abs, tag = 'smem constant byte address 0x4 - core index']
  #allocation1 [shape = 'u32[144,128]{1,0:T(1,128)}', space=vmem, size = 0x12000, scoped, tag = 'internal scratch']
  #allocation2 [shape = 'f32[8,256]{1,0:T(8,128)}', space=vmem, size = 0x2000, scoped, tag = 'scratch operand']
  #allocation3 [shape = 'f32[8,256]{1,0:T(8,128)}', space=vmem, size = 0x2000, scoped, tag = 'scratch operand']
  %s0 = inlined_call_operand.vmem [shape: f32[8,256], index: 0, kind: input, shape index: {}]
  %s1 = inlined_call_operand.vmem [shape: bf16[256,1024], index: 1, kind: input, shape index: {}]
  %s2 = inlined_call_operand.vmem [shape: f32[1,1024], index: 2, kind: input, shape index: {}]
  %s3 = inlined_call_operand.vmem [shape: f32[5,8,256], index: 3, kind: output, shape index: {}]
  %s4 = sld [smem:[#allocation0]]
  $region49: #{fc_lstm_forward.5} parent=0
    _
  %s6 = ssub.s32 1, %s4
  %s7 = scalar_select 0, %s6, %s4
  loop: start=0, step=1, limit=7
  $region2: #{fc_lstm_forward.5} parent=0 // loop_pre_header
    _
  $region3: #{fc_lstm_forward.5} parent=0 // loop_header
    %s9 = sphi 0, %s13
    %p10 = scmp.ge.s32.totalorder %s9, 7
    %s17 = sphi 0, %s17
    %s19 = sphi 0, %s17
    %s20 = sphi 0, %s19
    %s34 = sphi 0, %s20
    %s38 = sphi 0, %s38
    %s40 = sphi 0, %s38
    %s41 = sphi 0, %s40
    %s55 = sphi 0, %s41
    %s59 = sphi 0, %s59
    %s61 = sphi 0, %s59
    %s62 = sphi 0, %s61
    %s76 = sphi 0, %s62
    %s82 = sphi 0, %s84
    %s85 = sphi 0, %s82
    %s86 = sphi 0, %s85
    %s102 = sphi 0, %s86
  $region4: #{fc_lstm_forward.5} parent=0 // loop_header_branch
    %12 = sbr.rel (%p10) target = $region8
  $region5: #{fc_lstm_forward.5} parent=0 // loop_body
    %s14 = ssub.s32 %s9, 1
    %s15 = ssub.s32 %s9, 2
    %s16 = sadd.s32 %s9, 1
    %s18 = sadd.s32 %s17, 1
    %p21 = scmp.eq.s32.totalorder %s9, 4
    %p22 = scmp.ne.s32.totalorder %s17, %s19
    %p23 = scmp.eq.s32.totalorder %s9, 0
    %p24 = por %p22, %p23
    %p25 = scmp.ne.s32.totalorder %s17, %s19
    %p26 = scmp.eq.s32.totalorder %s14, 4
    %p27 = por %p25, %p26
    %p28 = scmp.ne.s32.totalorder %s19, %s20
    %p29 = scmp.eq.s32.totalorder %s14, 0
    %p30 = por %p28, %p29
    %p31 = scmp.ne.s32.totalorder %s19, %s20
    %p32 = scmp.eq.s32.totalorder %s15, 4
    %p33 = por %p31, %p32
    %p35 = scmp.ne.s32.totalorder %s20, %s34
    %p36 = scmp.eq.s32.totalorder %s15, 0
    %p37 = por %p35, %p36
    %s39 = sadd.s32 %s38, 1
    %p42 = scmp.eq.s32.totalorder %s9, 4
    %p43 = scmp.ne.s32.totalorder %s38, %s40
    %p44 = scmp.eq.s32.totalorder %s9, 0
    %p45 = por %p43, %p44
    %p46 = scmp.ne.s32.totalorder %s38, %s40
    %p47 = scmp.eq.s32.totalorder %s14, 4
    %p48 = por %p46, %p47
    %p49 = scmp.ne.s32.totalorder %s40, %s41
    %p50 = scmp.eq.s32.totalorder %s14, 0
    %p51 = por %p49, %p50
    %p52 = scmp.ne.s32.totalorder %s40, %s41
    %p53 = scmp.eq.s32.totalorder %s15, 4
    %p54 = por %p52, %p53
    %p56 = scmp.ne.s32.totalorder %s41, %s55
    %p57 = scmp.eq.s32.totalorder %s15, 0
    %p58 = por %p56, %p57
    %s60 = sadd.s32 %s59, 1
    %p63 = scmp.eq.s32.totalorder %s9, 4
    %p64 = scmp.ne.s32.totalorder %s59, %s61
    %p65 = scmp.eq.s32.totalorder %s9, 0
    %p66 = por %p64, %p65
    %p67 = scmp.ne.s32.totalorder %s59, %s61
    %p68 = scmp.eq.s32.totalorder %s14, 4
    %p69 = por %p67, %p68
    %p70 = scmp.ne.s32.totalorder %s61, %s62
    %p71 = scmp.eq.s32.totalorder %s14, 0
    %p72 = por %p70, %p71
    %p73 = scmp.ne.s32.totalorder %s61, %s62
    %p74 = scmp.eq.s32.totalorder %s15, 4
    %p75 = por %p73, %p74
    %p77 = scmp.ne.s32.totalorder %s62, %s76
    %p78 = scmp.eq.s32.totalorder %s15, 0
    %p79 = por %p77, %p78
    %s80 = ssub.s32 %s9, %s16
    %p81 = scmp.eq.s32.totalorder %s80, 0
    %s83 = sadd.s32 %s82, 1
    %s84 = scalar_select %p81, %s82, %s83
    %p87 = pneg %p81
    %p88 = scmp.eq.s32.totalorder %s9, 4
    %p89 = por %p87, %p88
    %p90 = scmp.ne.s32.totalorder %s82, %s85
    %p91 = scmp.eq.s32.totalorder %s9, 0
    %p92 = por %p90, %p91
    %p93 = scmp.ne.s32.totalorder %s82, %s85
    %p94 = scmp.eq.s32.totalorder %s14, 4
    %p95 = por %p93, %p94
    %p96 = scmp.ne.s32.totalorder %s85, %s86
    %p97 = scmp.eq.s32.totalorder %s14, 0
    %p98 = por %p96, %p97
    %p99 = scmp.ne.s32.totalorder %s85, %s86
    %p100 = scmp.eq.s32.totalorder %s15, 4
    %p101 = por %p99, %p100
    %p103 = scmp.ne.s32.totalorder %s86, %s102
    %p104 = scmp.eq.s32.totalorder %s15, 0
    %p105 = por %p103, %p104
    %p106 = scmp.le.s32.totalorder 1, %s9
    %p107 = scmp.lt.s32.totalorder %s9, 6
    %p108 = pnand %p106, %p107
    %p109 = pneg %p108
    // Predicated region
    $region9: #{fc_lstm_forward.5} parent=5 // pred_check
      _
    $region10: #{fc_lstm_forward.5} parent=5 // pred_check_branch
      %111 = sbr.rel (%p108) target = $region12
    $region11: #{fc_lstm_forward.5} parent=5 // pred_region
      %s112 = ssub.s32 %s9, 1
      // Predicated region
      $region13: #{fc_lstm_forward.5} parent=11 // pred_check
        %p113 = pneg %p30
      $region14: #{fc_lstm_forward.5} parent=11 // pred_check_branch
        %115 = sbr.rel (%p113) target = $region16
      $region15: #{fc_lstm_forward.5} parent=11 // pred_region
        _
      $region16: #{fc_lstm_forward.5} parent=11 // pred_fallthru
        _
      // Predicated region
      $region17: #{fc_lstm_forward.5} parent=11 // pred_check
        %p116 = pneg %p51
      $region18: #{fc_lstm_forward.5} parent=11 // pred_check_branch
        %118 = sbr.rel (%p116) target = $region20
      $region19: #{fc_lstm_forward.5} parent=11 // pred_region
        _
      $region20: #{fc_lstm_forward.5} parent=11 // pred_fallthru
        _
      // Predicated region
      $region21: #{fc_lstm_forward.5} parent=11 // pred_check
        %p119 = pneg %p72
      $region22: #{fc_lstm_forward.5} parent=11 // pred_check_branch
        %121 = sbr.rel (%p119) target = $region24
      $region23: #{fc_lstm_forward.5} parent=11 // pred_region
        _
      $region24: #{fc_lstm_forward.5} parent=11 // pred_fallthru
        _
    $region12: #{fc_lstm_forward.5} parent=5 // pred_fallthru
      _
    %p122 = scmp.lt.s32.totalorder %s9, 5
    // Predicated region
    $region25: #{fc_lstm_forward.5} parent=5 // pred_check
      %p123 = pneg %p122
    $region26: #{fc_lstm_forward.5} parent=5 // pred_check_branch
      %125 = sbr.rel (%p123) target = $region28
    $region27: #{fc_lstm_forward.5} parent=5 // pred_region
      _
    $region28: #{fc_lstm_forward.5} parent=5 // pred_fallthru
      _
    %p126 = scmp.le.s32.totalorder 1, %s9
    %p127 = scmp.lt.s32.totalorder %s9, 6
    %p128 = pnand %p126, %p127
    %p129 = pneg %p128
    // Predicated region
    $region29: #{fc_lstm_forward.5} parent=5 // pred_check
      _
    $region30: #{fc_lstm_forward.5} parent=5 // pred_check_branch
      %131 = sbr.rel (%p128) target = $region32
    $region31: #{fc_lstm_forward.5} parent=5 // pred_region
      %s132 = ssub.s32 %s9, 1
      %p133 = pneg %p30
      %p134 = pneg %p27
      %p135 = pneg %p51
      %p136 = pneg %p48
      %p137 = pneg %p72
      %p138 = pneg %p69
      %p139 = pneg %p98
      %p140 = pneg %p95
      %p141 = scmp.lt.s32.totalorder %s14, 4
      %s142 = scalar_select %p141, %s14, 4
      %s143 = smul.addr %s142, 2
      %s144 = smul.addr %s143, 8
      %s145 = scalar_lea.vmem %s3, %s144
      %p146 = scmp.lt.s32.totalorder %s14, 4
      %s147 = scalar_select %p146, %s14, 4
      %s148 = smul.addr %s147, 2
      %s149 = smul.addr %s148, 8
      %s150 = scalar_lea.vmem %s3, %s149
      %p151 = scmp.eq.s32.totalorder %s14, 0
      // Predicated region
      $region33: #{fc_lstm_forward.5} parent=31 // pred_check
        %p152 = pneg %p151
      $region34: #{fc_lstm_forward.5} parent=31 // pred_check_branch
        %154 = sbr.rel (%p152) target = $region36
      $region35: #{fc_lstm_forward.5} parent=31 // pred_region
        %v155 = vld [vmem:[%s0] sm:$0xff]
        %v156 = vld [vmem:[%s0 + $0x8] sm:$0xff]
        %157 = vst [vmem:[#allocation2] sm:$0xff] %v155
        %158 = vst [vmem:[#allocation2 + $0x8] sm:$0xff] %v156
        %159 = vst [vmem:[#allocation3] sm:$0xff] 0.0
        %160 = vst [vmem:[#allocation3 + $0x8] sm:$0xff] 0.0
      $region36: #{fc_lstm_forward.5} parent=31 // pred_fallthru
        _
      %v161 = vld [vmem:[#allocation2] sm:$0xff]
      %v162 = vld [vmem:[#allocation2 + $0x8] sm:$0xff]
      %v163 = vld [vmem:[#allocation3] sm:$0xff]
      %v164 = vld [vmem:[#allocation3 + $0x8] sm:$0xff]
      %v165 = vld [vmem:[%s2] sm:$0xff]
      %v166 = vpack.c.bf16 %v161, %v161
      %v167 = vpack.c.bf16 %v162, %v162
      %v168 = vld [vmem:[%s1] sm:$0xff]
      %v169 = vld [vmem:[%s1 + $0x8] sm:$0xff]
      %v170 = vld [vmem:[%s1 + $0x10] sm:$0xff]
      %v171 = vld [vmem:[%s1 + $0x18] sm:$0xff]
      %v172 = vld [vmem:[%s1 + $0x20] sm:$0xff]
      %v173 = vld [vmem:[%s1 + $0x28] sm:$0xff]
      %v174 = vld [vmem:[%s1 + $0x30] sm:$0xff]
      %v175 = vld [vmem:[%s1 + $0x38] sm:$0xff]
      %v176 = vld [vmem:[%s1 + $0x40] sm:$0xff]
      %v177 = vld [vmem:[%s1 + $0x48] sm:$0xff]
      %v178 = vld [vmem:[%s1 + $0x50] sm:$0xff]
      %v179 = vld [vmem:[%s1 + $0x58] sm:$0xff]
      %v180 = vld [vmem:[%s1 + $0x60] sm:$0xff]
      %v181 = vld [vmem:[%s1 + $0x68] sm:$0xff]
      %v182 = vld [vmem:[%s1 + $0x70] sm:$0xff]
      %v183 = vld [vmem:[%s1 + $0x78] sm:$0xff]
      %v184 = vld [vmem:[%s1 + $0x80] sm:$0xff]
      %v185 = vld [vmem:[%s1 + $0x88] sm:$0xff]
      %v186 = vld [vmem:[%s1 + $0x90] sm:$0xff]
      %v187 = vld [vmem:[%s1 + $0x98] sm:$0xff]
      %v188 = vld [vmem:[%s1 + $0xa0] sm:$0xff]
      %v189 = vld [vmem:[%s1 + $0xa8] sm:$0xff]
      %v190 = vld [vmem:[%s1 + $0xb0] sm:$0xff]
      %v191 = vld [vmem:[%s1 + $0xb8] sm:$0xff]
      %v192 = vld [vmem:[%s1 + $0xc0] sm:$0xff]
      %v193 = vld [vmem:[%s1 + $0xc8] sm:$0xff]
      %v194 = vld [vmem:[%s1 + $0xd0] sm:$0xff]
      %v195 = vld [vmem:[%s1 + $0xd8] sm:$0xff]
      %v196 = vld [vmem:[%s1 + $0xe0] sm:$0xff]
      %v197 = vld [vmem:[%s1 + $0xe8] sm:$0xff]
      %v198 = vld [vmem:[%s1 + $0xf0] sm:$0xff]
      %v199 = vld [vmem:[%s1 + $0xf8] sm:$0xff]
      %v200 = vld [vmem:[%s1 + $0x100] sm:$0xff]
      %v201 = vld [vmem:[%s1 + $0x108] sm:$0xff]
      %v202 = vld [vmem:[%s1 + $0x110] sm:$0xff]
      %v203 = vld [vmem:[%s1 + $0x118] sm:$0xff]
      %v204 = vld [vmem:[%s1 + $0x120] sm:$0xff]
      %v205 = vld [vmem:[%s1 + $0x128] sm:$0xff]
      %v206 = vld [vmem:[%s1 + $0x130] sm:$0xff]
      %v207 = vld [vmem:[%s1 + $0x138] sm:$0xff]
      %v208 = vld [vmem:[%s1 + $0x140] sm:$0xff]
      %v209 = vld [vmem:[%s1 + $0x148] sm:$0xff]
      %v210 = vld [vmem:[%s1 + $0x150] sm:$0xff]
      %v211 = vld [vmem:[%s1 + $0x158] sm:$0xff]
      %v212 = vld [vmem:[%s1 + $0x160] sm:$0xff]
      %v213 = vld [vmem:[%s1 + $0x168] sm:$0xff]
      %v214 = vld [vmem:[%s1 + $0x170] sm:$0xff]
      %v215 = vld [vmem:[%s1 + $0x178] sm:$0xff]
      %v216 = vld [vmem:[%s1 + $0x180] sm:$0xff]
      %v217 = vld [vmem:[%s1 + $0x188] sm:$0xff]
      %v218 = vld [vmem:[%s1 + $0x190] sm:$0xff]
      %v219 = vld [vmem:[%s1 + $0x198] sm:$0xff]
      %v220 = vld [vmem:[%s1 + $0x1a0] sm:$0xff]
      %v221 = vld [vmem:[%s1 + $0x1a8] sm:$0xff]
      %v222 = vld [vmem:[%s1 + $0x1b0] sm:$0xff]
      %v223 = vld [vmem:[%s1 + $0x1b8] sm:$0xff]
      %v224 = vld [vmem:[%s1 + $0x1c0] sm:$0xff]
      %v225 = vld [vmem:[%s1 + $0x1c8] sm:$0xff]
      %v226 = vld [vmem:[%s1 + $0x1d0] sm:$0xff]
      %v227 = vld [vmem:[%s1 + $0x1d8] sm:$0xff]
      %v228 = vld [vmem:[%s1 + $0x1e0] sm:$0xff]
      %v229 = vld [vmem:[%s1 + $0x1e8] sm:$0xff]
      %v230 = vld [vmem:[%s1 + $0x1f0] sm:$0xff]
      %v231 = vld [vmem:[%s1 + $0x1f8] sm:$0xff]
      %v232 = vld [vmem:[%s1 + $0x200] sm:$0xff]
      %v233 = vld [vmem:[%s1 + $0x208] sm:$0xff]
      %v234 = vld [vmem:[%s1 + $0x210] sm:$0xff]
      %v235 = vld [vmem:[%s1 + $0x218] sm:$0xff]
      %v236 = vld [vmem:[%s1 + $0x220] sm:$0xff]
      %v237 = vld [vmem:[%s1 + $0x228] sm:$0xff]
      %v238 = vld [vmem:[%s1 + $0x230] sm:$0xff]
      %v239 = vld [vmem:[%s1 + $0x238] sm:$0xff]
      %v240 = vld [vmem:[%s1 + $0x240] sm:$0xff]
      %v241 = vld [vmem:[%s1 + $0x248] sm:$0xff]
      %v242 = vld [vmem:[%s1 + $0x250] sm:$0xff]
      %v243 = vld [vmem:[%s1 + $0x258] sm:$0xff]
      %v244 = vld [vmem:[%s1 + $0x260] sm:$0xff]
      %v245 = vld [vmem:[%s1 + $0x268] sm:$0xff]
      %v246 = vld [vmem:[%s1 + $0x270] sm:$0xff]
      %v247 = vld [vmem:[%s1 + $0x278] sm:$0xff]
      %v248 = vld [vmem:[%s1 + $0x280] sm:$0xff]
      %v249 = vld [vmem:[%s1 + $0x288] sm:$0xff]
      %v250 = vld [vmem:[%s1 + $0x290] sm:$0xff]
      %v251 = vld [vmem:[%s1 + $0x298] sm:$0xff]
      %v252 = vld [vmem:[%s1 + $0x2a0] sm:$0xff]
      %v253 = vld [vmem:[%s1 + $0x2a8] sm:$0xff]
      %v254 = vld [vmem:[%s1 + $0x2b0] sm:$0xff]
      %v255 = vld [vmem:[%s1 + $0x2b8] sm:$0xff]
      %v256 = vld [vmem:[%s1 + $0x2c0] sm:$0xff]
      %v257 = vld [vmem:[%s1 + $0x2c8] sm:$0xff]
      %v258 = vld [vmem:[%s1 + $0x2d0] sm:$0xff]
      %v259 = vld [vmem:[%s1 + $0x2d8] sm:$0xff]
      %v260 = vld [vmem:[%s1 + $0x2e0] sm:$0xff]
      %v261 = vld [vmem:[%s1 + $0x2e8] sm:$0xff]
      %v262 = vld [vmem:[%s1 + $0x2f0] sm:$0xff]
      %v263 = vld [vmem:[%s1 + $0x2f8] sm:$0xff]
      %v264 = vld [vmem:[%s1 + $0x300] sm:$0xff]
      %v265 = vld [vmem:[%s1 + $0x308] sm:$0xff]
      %v266 = vld [vmem:[%s1 + $0x310] sm:$0xff]
      %v267 = vld [vmem:[%s1 + $0x318] sm:$0xff]
      %v268 = vld [vmem:[%s1 + $0x320] sm:$0xff]
      %v269 = vld [vmem:[%s1 + $0x328] sm:$0xff]
      %v270 = vld [vmem:[%s1 + $0x330] sm:$0xff]
      %v271 = vld [vmem:[%s1 + $0x338] sm:$0xff]
      %v272 = vld [vmem:[%s1 + $0x340] sm:$0xff]
      %v273 = vld [vmem:[%s1 + $0x348] sm:$0xff]
      %v274 = vld [vmem:[%s1 + $0x350] sm:$0xff]
      %v275 = vld [vmem:[%s1 + $0x358] sm:$0xff]
      %v276 = vld [vmem:[%s1 + $0x360] sm:$0xff]
      %v277 = vld [vmem:[%s1 + $0x368] sm:$0xff]
      %v278 = vld [vmem:[%s1 + $0x370] sm:$0xff]
      %v279 = vld [vmem:[%s1 + $0x378] sm:$0xff]
      %v280 = vld [vmem:[%s1 + $0x380] sm:$0xff]
      %v281 = vld [vmem:[%s1 + $0x388] sm:$0xff]
      %v282 = vld [vmem:[%s1 + $0x390] sm:$0xff]
      %v283 = vld [vmem:[%s1 + $0x398] sm:$0xff]
      %v284 = vld [vmem:[%s1 + $0x3a0] sm:$0xff]
      %v285 = vld [vmem:[%s1 + $0x3a8] sm:$0xff]
      %v286 = vld [vmem:[%s1 + $0x3b0] sm:$0xff]
      %v287 = vld [vmem:[%s1 + $0x3b8] sm:$0xff]
      %v288 = vld [vmem:[%s1 + $0x3c0] sm:$0xff]
      %v289 = vld [vmem:[%s1 + $0x3c8] sm:$0xff]
      %v290 = vld [vmem:[%s1 + $0x3d0] sm:$0xff]
      %v291 = vld [vmem:[%s1 + $0x3d8] sm:$0xff]
      %v292 = vld [vmem:[%s1 + $0x3e0] sm:$0xff]
      %v293 = vld [vmem:[%s1 + $0x3e8] sm:$0xff]
      %v294 = vld [vmem:[%s1 + $0x3f0] sm:$0xff]
      %v295 = vld [vmem:[%s1 + $0x3f8] sm:$0xff]
      %v424 = vunpack.c.l.b16 %v168
      %v425 = vunpack.c.h.b16 %v168
      %v426 = vunpack.c.l.b16 %v169
      %v427 = vunpack.c.h.b16 %v169
      %v428 = vunpack.c.l.b16 %v170
      %v429 = vunpack.c.h.b16 %v170
      %v430 = vunpack.c.l.b16 %v171
      %v431 = vunpack.c.h.b16 %v171
      %v432 = vunpack.c.l.b16 %v172
      %v433 = vunpack.c.h.b16 %v172
      %v434 = vunpack.c.l.b16 %v173
      %v435 = vunpack.c.h.b16 %v173
      %v436 = vunpack.c.l.b16 %v174
      %v437 = vunpack.c.h.b16 %v174
      %v438 = vunpack.c.l.b16 %v175
      %v439 = vunpack.c.h.b16 %v175
      %v440 = vunpack.c.l.b16 %v176
      %v441 = vunpack.c.h.b16 %v176
      %v442 = vunpack.c.l.b16 %v177
      %v443 = vunpack.c.h.b16 %v177
      %v444 = vunpack.c.l.b16 %v178
      %v445 = vunpack.c.h.b16 %v178
      %v446 = vunpack.c.l.b16 %v179
      %v447 = vunpack.c.h.b16 %v179
      %v448 = vunpack.c.l.b16 %v180
      %v449 = vunpack.c.h.b16 %v180
      %v450 = vunpack.c.l.b16 %v181
      %v451 = vunpack.c.h.b16 %v181
      %v452 = vunpack.c.l.b16 %v182
      %v453 = vunpack.c.h.b16 %v182
      %v454 = vunpack.c.l.b16 %v183
      %v455 = vunpack.c.h.b16 %v183
      %v456 = vunpack.c.l.b16 %v184
      %v457 = vunpack.c.h.b16 %v184
      %v458 = vunpack.c.l.b16 %v185
      %v459 = vunpack.c.h.b16 %v185
      %v460 = vunpack.c.l.b16 %v186
      %v461 = vunpack.c.h.b16 %v186
      %v462 = vunpack.c.l.b16 %v187
      %v463 = vunpack.c.h.b16 %v187
      %v464 = vunpack.c.l.b16 %v188
      %v465 = vunpack.c.h.b16 %v188
      %v466 = vunpack.c.l.b16 %v189
      %v467 = vunpack.c.h.b16 %v189
      %v468 = vunpack.c.l.b16 %v190
      %v469 = vunpack.c.h.b16 %v190
      %v470 = vunpack.c.l.b16 %v191
      %v471 = vunpack.c.h.b16 %v191
      %v472 = vunpack.c.l.b16 %v192
      %v473 = vunpack.c.h.b16 %v192
      %v474 = vunpack.c.l.b16 %v193
      %v475 = vunpack.c.h.b16 %v193
      %v476 = vunpack.c.l.b16 %v194
      %v477 = vunpack.c.h.b16 %v194
      %v478 = vunpack.c.l.b16 %v195
      %v479 = vunpack.c.h.b16 %v195
      %v480 = vunpack.c.l.b16 %v196
      %v481 = vunpack.c.h.b16 %v196
      %v482 = vunpack.c.l.b16 %v197
      %v483 = vunpack.c.h.b16 %v197
      %v484 = vunpack.c.l.b16 %v198
      %v485 = vunpack.c.h.b16 %v198
      %v486 = vunpack.c.l.b16 %v199
      %v487 = vunpack.c.h.b16 %v199
      %v488 = vunpack.c.l.b16 %v200
      %v489 = vunpack.c.h.b16 %v200
      %v490 = vunpack.c.l.b16 %v201
      %v491 = vunpack.c.h.b16 %v201
      %v492 = vunpack.c.l.b16 %v202
      %v493 = vunpack.c.h.b16 %v202
      %v494 = vunpack.c.l.b16 %v203
      %v495 = vunpack.c.h.b16 %v203
      %v496 = vunpack.c.l.b16 %v204
      %v497 = vunpack.c.h.b16 %v204
      %v498 = vunpack.c.l.b16 %v205
      %v499 = vunpack.c.h.b16 %v205
      %v500 = vunpack.c.l.b16 %v206
      %v501 = vunpack.c.h.b16 %v206
      %v502 = vunpack.c.l.b16 %v207
      %v503 = vunpack.c.h.b16 %v207
      %v504 = vunpack.c.l.b16 %v208
      %v505 = vunpack.c.h.b16 %v208
      %v506 = vunpack.c.l.b16 %v209
      %v507 = vunpack.c.h.b16 %v209
      %v508 = vunpack.c.l.b16 %v210
      %v509 = vunpack.c.h.b16 %v210
      %v510 = vunpack.c.l.b16 %v211
      %v511 = vunpack.c.h.b16 %v211
      %v512 = vunpack.c.l.b16 %v212
      %v513 = vunpack.c.h.b16 %v212
      %v514 = vunpack.c.l.b16 %v213
      %v515 = vunpack.c.h.b16 %v213
      %v516 = vunpack.c.l.b16 %v214
      %v517 = vunpack.c.h.b16 %v214
      %v518 = vunpack.c.l.b16 %v215
      %v519 = vunpack.c.h.b16 %v215
      %v520 = vunpack.c.l.b16 %v216
      %v521 = vunpack.c.h.b16 %v216
      %v522 = vunpack.c.l.b16 %v217
      %v523 = vunpack.c.h.b16 %v217
      %v524 = vunpack.c.l.b16 %v218
      %v525 = vunpack.c.h.b16 %v218
      %v526 = vunpack.c.l.b16 %v219
      %v527 = vunpack.c.h.b16 %v219
      %v528 = vunpack.c.l.b16 %v220
      %v529 = vunpack.c.h.b16 %v220
      %v530 = vunpack.c.l.b16 %v221
      %v531 = vunpack.c.h.b16 %v221
      %v532 = vunpack.c.l.b16 %v222
      %v533 = vunpack.c.h.b16 %v222
      %v534 = vunpack.c.l.b16 %v223
      %v535 = vunpack.c.h.b16 %v223
      %v536 = vunpack.c.l.b16 %v224
      %v537 = vunpack.c.h.b16 %v224
      %v538 = vunpack.c.l.b16 %v225
      %v539 = vunpack.c.h.b16 %v225
      %v540 = vunpack.c.l.b16 %v226
      %v541 = vunpack.c.h.b16 %v226
      %v542 = vunpack.c.l.b16 %v227
      %v543 = vunpack.c.h.b16 %v227
      %v544 = vunpack.c.l.b16 %v228
      %v545 = vunpack.c.h.b16 %v228
      %v546 = vunpack.c.l.b16 %v229
      %v547 = vunpack.c.h.b16 %v229
      %v548 = vunpack.c.l.b16 %v230
      %v549 = vunpack.c.h.b16 %v230
      %v550 = vunpack.c.l.b16 %v231
      %v551 = vunpack.c.h.b16 %v231
      %v552 = vunpack.c.l.b16 %v232
      %v553 = vunpack.c.h.b16 %v232
      %v554 = vunpack.c.l.b16 %v233
      %v555 = vunpack.c.h.b16 %v233
      %v556 = vunpack.c.l.b16 %v234
      %v557 = vunpack.c.h.b16 %v234
      %v558 = vunpack.c.l.b16 %v235
      %v559 = vunpack.c.h.b16 %v235
      %v560 = vunpack.c.l.b16 %v236
      %v561 = vunpack.c.h.b16 %v236
      %v562 = vunpack.c.l.b16 %v237
      %v563 = vunpack.c.h.b16 %v237
      %v564 = vunpack.c.l.b16 %v238
      %v565 = vunpack.c.h.b16 %v238
      %v566 = vunpack.c.l.b16 %v239
      %v567 = vunpack.c.h.b16 %v239
      %v568 = vunpack.c.l.b16 %v240
      %v569 = vunpack.c.h.b16 %v240
      %v570 = vunpack.c.l.b16 %v241
      %v571 = vunpack.c.h.b16 %v241
      %v572 = vunpack.c.l.b16 %v242
      %v573 = vunpack.c.h.b16 %v242
      %v574 = vunpack.c.l.b16 %v243
      %v575 = vunpack.c.h.b16 %v243
      %v576 = vunpack.c.l.b16 %v244
      %v577 = vunpack.c.h.b16 %v244
      %v578 = vunpack.c.l.b16 %v245
      %v579 = vunpack.c.h.b16 %v245
      %v580 = vunpack.c.l.b16 %v246
      %v581 = vunpack.c.h.b16 %v246
      %v582 = vunpack.c.l.b16 %v247
      %v583 = vunpack.c.h.b16 %v247
      %v584 = vunpack.c.l.b16 %v248
      %v585 = vunpack.c.h.b16 %v248
      %v586 = vunpack.c.l.b16 %v249
      %v587 = vunpack.c.h.b16 %v249
      %v588 = vunpack.c.l.b16 %v250
      %v589 = vunpack.c.h.b16 %v250
      %v590 = vunpack.c.l.b16 %v251
      %v591 = vunpack.c.h.b16 %v251
      %v592 = vunpack.c.l.b16 %v252
      %v593 = vunpack.c.h.b16 %v252
      %v594 = vunpack.c.l.b16 %v253
      %v595 = vunpack.c.h.b16 %v253
      %v596 = vunpack.c.l.b16 %v254
      %v597 = vunpack.c.h.b16 %v254
      %v598 = vunpack.c.l.b16 %v255
      %v599 = vunpack.c.h.b16 %v255
      %v600 = vunpack.c.l.b16 %v256
      %v601 = vunpack.c.h.b16 %v256
      %v602 = vunpack.c.l.b16 %v257
      %v603 = vunpack.c.h.b16 %v257
      %v604 = vunpack.c.l.b16 %v258
      %v605 = vunpack.c.h.b16 %v258
      %v606 = vunpack.c.l.b16 %v259
      %v607 = vunpack.c.h.b16 %v259
      %v608 = vunpack.c.l.b16 %v260
      %v609 = vunpack.c.h.b16 %v260
      %v610 = vunpack.c.l.b16 %v261
      %v611 = vunpack.c.h.b16 %v261
      %v612 = vunpack.c.l.b16 %v262
      %v613 = vunpack.c.h.b16 %v262
      %v614 = vunpack.c.l.b16 %v263
      %v615 = vunpack.c.h.b16 %v263
      %v616 = vunpack.c.l.b16 %v264
      %v617 = vunpack.c.h.b16 %v264
      %v618 = vunpack.c.l.b16 %v265
      %v619 = vunpack.c.h.b16 %v265
      %v620 = vunpack.c.l.b16 %v266
      %v621 = vunpack.c.h.b16 %v266
      %v622 = vunpack.c.l.b16 %v267
      %v623 = vunpack.c.h.b16 %v267
      %v624 = vunpack.c.l.b16 %v268
      %v625 = vunpack.c.h.b16 %v268
      %v626 = vunpack.c.l.b16 %v269
      %v627 = vunpack.c.h.b16 %v269
      %v628 = vunpack.c.l.b16 %v270
      %v629 = vunpack.c.h.b16 %v270
      %v630 = vunpack.c.l.b16 %v271
      %v631 = vunpack.c.h.b16 %v271
      %v632 = vunpack.c.l.b16 %v272
      %v633 = vunpack.c.h.b16 %v272
      %v634 = vunpack.c.l.b16 %v273
      %v635 = vunpack.c.h.b16 %v273
      %v636 = vunpack.c.l.b16 %v274
      %v637 = vunpack.c.h.b16 %v274
      %v638 = vunpack.c.l.b16 %v275
      %v639 = vunpack.c.h.b16 %v275
      %v640 = vunpack.c.l.b16 %v276
      %v641 = vunpack.c.h.b16 %v276
      %v642 = vunpack.c.l.b16 %v277
      %v643 = vunpack.c.h.b16 %v277
      %v644 = vunpack.c.l.b16 %v278
      %v645 = vunpack.c.h.b16 %v278
      %v646 = vunpack.c.l.b16 %v279
      %v647 = vunpack.c.h.b16 %v279
      %v648 = vunpack.c.l.b16 %v280
      %v649 = vunpack.c.h.b16 %v280
      %v650 = vunpack.c.l.b16 %v281
      %v651 = vunpack.c.h.b16 %v281
      %v652 = vunpack.c.l.b16 %v282
      %v653 = vunpack.c.h.b16 %v282
      %v654 = vunpack.c.l.b16 %v283
      %v655 = vunpack.c.h.b16 %v283
      %v656 = vunpack.c.l.b16 %v284
      %v657 = vunpack.c.h.b16 %v284
      %v658 = vunpack.c.l.b16 %v285
      %v659 = vunpack.c.h.b16 %v285
      %v660 = vunpack.c.l.b16 %v286
      %v661 = vunpack.c.h.b16 %v286
      %v662 = vunpack.c.l.b16 %v287
      %v663 = vunpack.c.h.b16 %v287
      %v664 = vunpack.c.l.b16 %v288
      %v665 = vunpack.c.h.b16 %v288
      %v666 = vunpack.c.l.b16 %v289
      %v667 = vunpack.c.h.b16 %v289
      %v668 = vunpack.c.l.b16 %v290
      %v669 = vunpack.c.h.b16 %v290
      %v670 = vunpack.c.l.b16 %v291
      %v671 = vunpack.c.h.b16 %v291
      %v672 = vunpack.c.l.b16 %v292
      %v673 = vunpack.c.h.b16 %v292
      %v674 = vunpack.c.l.b16 %v293
      %v675 = vunpack.c.h.b16 %v293
      %v676 = vunpack.c.l.b16 %v294
      %v677 = vunpack.c.h.b16 %v294
      %v678 = vunpack.c.l.b16 %v295
      %v679 = vunpack.c.h.b16 %v295
      %v680 = vpack.c.b16 %v432, %v424
      %v681 = vpack.c.b16 %v433, %v425
      %v682 = vpack.c.b16 %v434, %v426
      %v683 = vpack.c.b16 %v435, %v427
      %v684 = vpack.c.b16 %v436, %v428
      %v685 = vpack.c.b16 %v437, %v429
      %v686 = vpack.c.b16 %v438, %v430
      %v687 = vpack.c.b16 %v439, %v431
      %v688 = vpack.c.b16 %v448, %v440
      %v689 = vpack.c.b16 %v449, %v441
      %v690 = vpack.c.b16 %v450, %v442
      %v691 = vpack.c.b16 %v451, %v443
      %v692 = vpack.c.b16 %v452, %v444
      %v693 = vpack.c.b16 %v453, %v445
      %v694 = vpack.c.b16 %v454, %v446
      %v695 = vpack.c.b16 %v455, %v447
      %v696 = vpack.c.b16 %v464, %v456
      %v697 = vpack.c.b16 %v465, %v457
      %v698 = vpack.c.b16 %v466, %v458
      %v699 = vpack.c.b16 %v467, %v459
      %v700 = vpack.c.b16 %v468, %v460
      %v701 = vpack.c.b16 %v469, %v461
      %v702 = vpack.c.b16 %v470, %v462
      %v703 = vpack.c.b16 %v471, %v463
      %v704 = vpack.c.b16 %v480, %v472
      %v705 = vpack.c.b16 %v481, %v473
      %v706 = vpack.c.b16 %v482, %v474
      %v707 = vpack.c.b16 %v483, %v475
      %v708 = vpack.c.b16 %v484, %v476
      %v709 = vpack.c.b16 %v485, %v477
      %v710 = vpack.c.b16 %v486, %v478
      %v711 = vpack.c.b16 %v487, %v479
      %v712 = vpack.c.b16 %v496, %v488
      %v713 = vpack.c.b16 %v497, %v489
      %v714 = vpack.c.b16 %v498, %v490
      %v715 = vpack.c.b16 %v499, %v491
      %v716 = vpack.c.b16 %v500, %v492
      %v717 = vpack.c.b16 %v501, %v493
      %v718 = vpack.c.b16 %v502, %v494
      %v719 = vpack.c.b16 %v503, %v495
      %v720 = vpack.c.b16 %v512, %v504
      %v721 = vpack.c.b16 %v513, %v505
      %v722 = vpack.c.b16 %v514, %v506
      %v723 = vpack.c.b16 %v515, %v507
      %v724 = vpack.c.b16 %v516, %v508
      %v725 = vpack.c.b16 %v517, %v509
      %v726 = vpack.c.b16 %v518, %v510
      %v727 = vpack.c.b16 %v519, %v511
      %v728 = vpack.c.b16 %v528, %v520
      %v729 = vpack.c.b16 %v529, %v521
      %v730 = vpack.c.b16 %v530, %v522
      %v731 = vpack.c.b16 %v531, %v523
      %v732 = vpack.c.b16 %v532, %v524
      %v733 = vpack.c.b16 %v533, %v525
      %v734 = vpack.c.b16 %v534, %v526
      %v735 = vpack.c.b16 %v535, %v527
      %v736 = vpack.c.b16 %v544, %v536
      %v737 = vpack.c.b16 %v545, %v537
      %v738 = vpack.c.b16 %v546, %v538
      %v739 = vpack.c.b16 %v547, %v539
      %v740 = vpack.c.b16 %v548, %v540
      %v741 = vpack.c.b16 %v549, %v541
      %v742 = vpack.c.b16 %v550, %v542
      %v743 = vpack.c.b16 %v551, %v543
      %v744 = vpack.c.b16 %v560, %v552
      %v745 = vpack.c.b16 %v561, %v553
      %v746 = vpack.c.b16 %v562, %v554
      %v747 = vpack.c.b16 %v563, %v555
      %v748 = vpack.c.b16 %v564, %v556
      %v749 = vpack.c.b16 %v565, %v557
      %v750 = vpack.c.b16 %v566, %v558
      %v751 = vpack.c.b16 %v567, %v559
      %v752 = vpack.c.b16 %v576, %v568
      %v753 = vpack.c.b16 %v577, %v569
      %v754 = vpack.c.b16 %v578, %v570
      %v755 = vpack.c.b16 %v579, %v571
      %v756 = vpack.c.b16 %v580, %v572
      %v757 = vpack.c.b16 %v581, %v573
      %v758 = vpack.c.b16 %v582, %v574
      %v759 = vpack.c.b16 %v583, %v575
      %v760 = vpack.c.b16 %v592, %v584
      %v761 = vpack.c.b16 %v593, %v585
      %v762 = vpack.c.b16 %v594, %v586
      %v763 = vpack.c.b16 %v595, %v587
      %v764 = vpack.c.b16 %v596, %v588
      %v765 = vpack.c.b16 %v597, %v589
      %v766 = vpack.c.b16 %v598, %v590
      %v767 = vpack.c.b16 %v599, %v591
      %v768 = vpack.c.b16 %v608, %v600
      %v769 = vpack.c.b16 %v609, %v601
      %v770 = vpack.c.b16 %v610, %v602
      %v771 = vpack.c.b16 %v611, %v603
      %v772 = vpack.c.b16 %v612, %v604
      %v773 = vpack.c.b16 %v613, %v605
      %v774 = vpack.c.b16 %v614, %v606
      %v775 = vpack.c.b16 %v615, %v607
      %v776 = vpack.c.b16 %v624, %v616
      %v777 = vpack.c.b16 %v625, %v617
      %v778 = vpack.c.b16 %v626, %v618
      %v779 = vpack.c.b16 %v627, %v619
      %v780 = vpack.c.b16 %v628, %v620
      %v781 = vpack.c.b16 %v629, %v621
      %v782 = vpack.c.b16 %v630, %v622
      %v783 = vpack.c.b16 %v631, %v623
      %v784 = vpack.c.b16 %v640, %v632
      %v785 = vpack.c.b16 %v641, %v633
      %v786 = vpack.c.b16 %v642, %v634
      %v787 = vpack.c.b16 %v643, %v635
      %v788 = vpack.c.b16 %v644, %v636
      %v789 = vpack.c.b16 %v645, %v637
      %v790 = vpack.c.b16 %v646, %v638
      %v791 = vpack.c.b16 %v647, %v639
      %v792 = vpack.c.b16 %v656, %v648
      %v793 = vpack.c.b16 %v657, %v649
      %v794 = vpack.c.b16 %v658, %v650
      %v795 = vpack.c.b16 %v659, %v651
      %v796 = vpack.c.b16 %v660, %v652
      %v797 = vpack.c.b16 %v661, %v653
      %v798 = vpack.c.b16 %v662, %v654
      %v799 = vpack.c.b16 %v663, %v655
      %v800 = vpack.c.b16 %v672, %v664
      %v801 = vpack.c.b16 %v673, %v665
      %v802 = vpack.c.b16 %v674, %v666
      %v803 = vpack.c.b16 %v675, %v667
      %v804 = vpack.c.b16 %v676, %v668
      %v805 = vpack.c.b16 %v677, %v669
      %v806 = vpack.c.b16 %v678, %v670
      %v807 = vpack.c.b16 %v679, %v671
      %936 = vmatprep.subr.bf16.mxu0 %v681
      %937 = vmatpush1.bf16.msra.mxu0 %v680
      %938 = vmatprep.subr.bf16.mxu0 %v689
      %939 = vmatpush1.bf16.msra.mxu0 %v688
      %940 = vmatprep.subr.bf16.mxu0 %v697
      %941 = vmatpush1.bf16.msra.mxu0 %v696
      %942 = vmatprep.subr.bf16.mxu0 %v705
      %943 = vmatpush1.bf16.msra.mxu0 %v704
      %944 = vmatprep.subr.bf16.mxu0 %v713
      %945 = vmatpush1.bf16.msra.mxu0 %v712
      %946 = vmatprep.subr.bf16.mxu0 %v721
      %947 = vmatpush1.bf16.msra.mxu0 %v720
      %948 = vmatprep.subr.bf16.mxu0 %v729
      %949 = vmatpush1.bf16.msra.mxu0 %v728
      %950 = vmatprep.subr.bf16.mxu0 %v737
      %951 = vmatpush1.bf16.msra.mxu0 %v736
      %952 = vmatprep.subr.bf16.mxu0 %v745
      %953 = vmatpush1.bf16.msra.mxu0 %v744
      %954 = vmatprep.subr.bf16.mxu0 %v753
      %955 = vmatpush1.bf16.msra.mxu0 %v752
      %956 = vmatprep.subr.bf16.mxu0 %v761
      %957 = vmatpush1.bf16.msra.mxu0 %v760
      %958 = vmatprep.subr.bf16.mxu0 %v769
      %959 = vmatpush1.bf16.msra.mxu0 %v768
      %960 = vmatprep.subr.bf16.mxu0 %v777
      %961 = vmatpush1.bf16.msra.mxu0 %v776
      %962 = vmatprep.subr.bf16.mxu0 %v785
      %963 = vmatpush1.bf16.msra.mxu0 %v784
      %964 = vmatprep.subr.bf16.mxu0 %v793
      %965 = vmatpush1.bf16.msra.mxu0 %v792
      %966 = vmatprep.subr.bf16.mxu0 %v801
      %967 = vmatpush1.bf16.msra.mxu0 %v800
      %968 = vmatprep.mubr.bf16.mxu0 %v167
      %969 = vmatmul.mubr.bf16.gmra.mrb[0].mxu0 %v166
      %v970 = vpop.f32.mrb[0].mxu0
      %v971 = vadd.f32 0.0, %v970
      %v972 = vpop.f32.mrb[0].mxu0
      %v973 = vadd.f32 0.0, %v972
      %v974 = vpop.f32.mrb[0].mxu0
      %v975 = vpop.f32.mrb[0].mxu0
      %976 = vdwg.mxu0
      %977 = vmatprep.subr.bf16.mxu0 %v683
      %978 = vmatpush1.bf16.msra.mxu0 %v682
      %979 = vmatprep.subr.bf16.mxu0 %v691
      %980 = vmatpush1.bf16.msra.mxu0 %v690
      %981 = vmatprep.subr.bf16.mxu0 %v699
      %982 = vmatpush1.bf16.msra.mxu0 %v698
      %983 = vmatprep.subr.bf16.mxu0 %v707
      %984 = vmatpush1.bf16.msra.mxu0 %v706
      %985 = vmatprep.subr.bf16.mxu0 %v715
      %986 = vmatpush1.bf16.msra.mxu0 %v714
      %987 = vmatprep.subr.bf16.mxu0 %v723
      %988 = vmatpush1.bf16.msra.mxu0 %v722
      %989 = vmatprep.subr.bf16.mxu0 %v731
      %990 = vmatpush1.bf16.msra.mxu0 %v730
      %991 = vmatprep.subr.bf16.mxu0 %v739
      %992 = vmatpush1.bf16.msra.mxu0 %v738
      %993 = vmatprep.subr.bf16.mxu0 %v747
      %994 = vmatpush1.bf16.msra.mxu0 %v746
      %995 = vmatprep.subr.bf16.mxu0 %v755
      %996 = vmatpush1.bf16.msra.mxu0 %v754
      %997 = vmatprep.subr.bf16.mxu0 %v763
      %998 = vmatpush1.bf16.msra.mxu0 %v762
      %999 = vmatprep.subr.bf16.mxu0 %v771
      %1000 = vmatpush1.bf16.msra.mxu0 %v770
      %1001 = vmatprep.subr.bf16.mxu0 %v779
      %1002 = vmatpush1.bf16.msra.mxu0 %v778
      %1003 = vmatprep.subr.bf16.mxu0 %v787
      %1004 = vmatpush1.bf16.msra.mxu0 %v786
      %1005 = vmatprep.subr.bf16.mxu0 %v795
      %1006 = vmatpush1.bf16.msra.mxu0 %v794
      %1007 = vmatprep.subr.bf16.mxu0 %v803
      %1008 = vmatpush1.bf16.msra.mxu0 %v802
      %1009 = vmatprep.mubr.bf16.mxu0 %v167
      %1010 = vmatmul.mubr.bf16.gmra.mrb[0].mxu0 %v166
      %v1011 = vpop.f32.mrb[0].mxu0
      %v1012 = vadd.f32 0.0, %v1011
      %v1013 = vpop.f32.mrb[0].mxu0
      %v1014 = vadd.f32 0.0, %v1013
      %v1015 = vpop.f32.mrb[0].mxu0
      %v1016 = vpop.f32.mrb[0].mxu0
      %1017 = vdwg.mxu0
      %1018 = vmatprep.subr.bf16.mxu0 %v685
      %1019 = vmatpush1.bf16.msra.mxu0 %v684
      %1020 = vmatprep.subr.bf16.mxu0 %v693
      %1021 = vmatpush1.bf16.msra.mxu0 %v692
      %1022 = vmatprep.subr.bf16.mxu0 %v701
      %1023 = vmatpush1.bf16.msra.mxu0 %v700
      %1024 = vmatprep.subr.bf16.mxu0 %v709
      %1025 = vmatpush1.bf16.msra.mxu0 %v708
      %1026 = vmatprep.subr.bf16.mxu0 %v717
      %1027 = vmatpush1.bf16.msra.mxu0 %v716
      %1028 = vmatprep.subr.bf16.mxu0 %v725
      %1029 = vmatpush1.bf16.msra.mxu0 %v724
      %1030 = vmatprep.subr.bf16.mxu0 %v733
      %1031 = vmatpush1.bf16.msra.mxu0 %v732
      %1032 = vmatprep.subr.bf16.mxu0 %v741
      %1033 = vmatpush1.bf16.msra.mxu0 %v740
      %1034 = vmatprep.subr.bf16.mxu0 %v749
      %1035 = vmatpush1.bf16.msra.mxu0 %v748
      %1036 = vmatprep.subr.bf16.mxu0 %v757
      %1037 = vmatpush1.bf16.msra.mxu0 %v756
      %1038 = vmatprep.subr.bf16.mxu0 %v765
      %1039 = vmatpush1.bf16.msra.mxu0 %v764
      %1040 = vmatprep.subr.bf16.mxu0 %v773
      %1041 = vmatpush1.bf16.msra.mxu0 %v772
      %1042 = vmatprep.subr.bf16.mxu0 %v781
      %1043 = vmatpush1.bf16.msra.mxu0 %v780
      %1044 = vmatprep.subr.bf16.mxu0 %v789
      %1045 = vmatpush1.bf16.msra.mxu0 %v788
      %1046 = vmatprep.subr.bf16.mxu0 %v797
      %1047 = vmatpush1.bf16.msra.mxu0 %v796
      %1048 = vmatprep.subr.bf16.mxu0 %v805
      %1049 = vmatpush1.bf16.msra.mxu0 %v804
      %1050 = vmatprep.mubr.bf16.mxu0 %v167
      %1051 = vmatmul.mubr.bf16.gmra.mrb[0].mxu0 %v166
      %v1052 = vpop.f32.mrb[0].mxu0
      %v1053 = vadd.f32 0.0, %v1052
      %v1054 = vpop.f32.mrb[0].mxu0
      %v1055 = vadd.f32 0.0, %v1054
      %v1056 = vpop.f32.mrb[0].mxu0
      %v1057 = vpop.f32.mrb[0].mxu0
      %1058 = vdwg.mxu0
      %1059 = vmatprep.subr.bf16.mxu0 %v687
      %1060 = vmatpush1.bf16.msra.mxu0 %v686
      %1061 = vmatprep.subr.bf16.mxu0 %v695
      %1062 = vmatpush1.bf16.msra.mxu0 %v694
      %1063 = vmatprep.subr.bf16.mxu0 %v703
      %1064 = vmatpush1.bf16.msra.mxu0 %v702
      %1065 = vmatprep.subr.bf16.mxu0 %v711
      %1066 = vmatpush1.bf16.msra.mxu0 %v710
      %1067 = vmatprep.subr.bf16.mxu0 %v719
      %1068 = vmatpush1.bf16.msra.mxu0 %v718
      %1069 = vmatprep.subr.bf16.mxu0 %v727
      %1070 = vmatpush1.bf16.msra.mxu0 %v726
      %1071 = vmatprep.subr.bf16.mxu0 %v735
      %1072 = vmatpush1.bf16.msra.mxu0 %v734
      %1073 = vmatprep.subr.bf16.mxu0 %v743
      %1074 = vmatpush1.bf16.msra.mxu0 %v742
      %1075 = vmatprep.subr.bf16.mxu0 %v751
      %1076 = vmatpush1.bf16.msra.mxu0 %v750
      %1077 = vmatprep.subr.bf16.mxu0 %v759
      %1078 = vmatpush1.bf16.msra.mxu0 %v758
      %1079 = vmatprep.subr.bf16.mxu0 %v767
      %1080 = vmatpush1.bf16.msra.mxu0 %v766
      %1081 = vmatprep.subr.bf16.mxu0 %v775
      %1082 = vmatpush1.bf16.msra.mxu0 %v774
      %1083 = vmatprep.subr.bf16.mxu0 %v783
      %1084 = vmatpush1.bf16.msra.mxu0 %v782
      %1085 = vmatprep.subr.bf16.mxu0 %v791
      %1086 = vmatpush1.bf16.msra.mxu0 %v790
      %1087 = vmatprep.subr.bf16.mxu0 %v799
      %1088 = vmatpush1.bf16.msra.mxu0 %v798
      %1089 = vmatprep.subr.bf16.mxu0 %v807
      %1090 = vmatpush1.bf16.msra.mxu0 %v806
      %1091 = vmatprep.mubr.bf16.mxu0 %v167
      %1092 = vmatmul.mubr.bf16.gmra.mrb[0].mxu0 %v166
      %v1093 = vpop.f32.mrb[0].mxu0
      %v1094 = vadd.f32 0.0, %v1093
      %v1095 = vpop.f32.mrb[0].mxu0
      %v1096 = vadd.f32 0.0, %v1095
      %v1097 = vpop.f32.mrb[0].mxu0
      %v1098 = vpop.f32.mrb[0].mxu0
      %1099 = vdwg.mxu0
      %v1101 = vlaneseq
      %v1102 = vshrl.u32 %v1101, 7
      %v1103 = vsub.s32 0, %v1102
      %v1104 = vrot.slane %v165, %v1103
      %v1105 = vlaneseq
      %v1106 = vshrl.u32 %v1105, 7
      %v1107 = vsub.s32 1, %v1106
      %v1108 = vrot.slane %v165, %v1107
      %v1109 = vlaneseq
      %v1110 = vshrl.u32 %v1109, 7
      %v1111 = vsub.s32 2, %v1110
      %v1112 = vrot.slane %v165, %v1111
      %v1113 = vlaneseq
      %v1114 = vshrl.u32 %v1113, 7
      %v1115 = vsub.s32 3, %v1114
      %v1116 = vrot.slane %v165, %v1115
      %v1117 = vlaneseq
      %v1118 = vshrl.u32 %v1117, 7
      %v1119 = vsub.s32 4, %v1118
      %v1120 = vrot.slane %v165, %v1119
      %v1121 = vlaneseq
      %v1122 = vshrl.u32 %v1121, 7
      %v1123 = vsub.s32 5, %v1122
      %v1124 = vrot.slane %v165, %v1123
      %v1125 = vlaneseq
      %v1126 = vshrl.u32 %v1125, 7
      %v1127 = vsub.s32 6, %v1126
      %v1128 = vrot.slane %v165, %v1127
      %v1129 = vlaneseq
      %v1130 = vshrl.u32 %v1129, 7
      %v1131 = vsub.s32 7, %v1130
      %v1132 = vrot.slane %v165, %v1131
      %v1141 = vadd.f32 %v1104, %v971
      %v1142 = vadd.f32 %v1108, %v973
      %v1143 = vadd.f32 %v1112, %v1012
      %v1144 = vadd.f32 %v1116, %v1014
      %v1145 = vadd.f32 %v1120, %v1053
      %v1146 = vadd.f32 %v1124, %v1055
      %v1147 = vadd.f32 %v1128, %v1094
      %v1148 = vadd.f32 %v1132, %v1096
      %v1149 = vxor.u32 %v1141, 2147483648
      %v1150 = vxor.u32 %v1142, 2147483648
      %v1151 = vmul.f32 %v1149, 1.442695
      %v1152 = vpow.pop %v1151
      %v1153 = vmul.f32 %v1150, 1.442695
      %v1154 = vpow.pop %v1153
      %v1155 = vadd.f32 %v1152, 1.0
      %v1156 = vadd.f32 %v1154, 1.0
      %v1157 = vrcp.pop %v1155
      %v1158 = vmul.f32 1.0, %v1157
      %v1159 = vrcp.pop %v1156
      %v1160 = vmul.f32 1.0, %v1159
      %v1161 = vxor.u32 %v1143, 2147483648
      %v1162 = vxor.u32 %v1144, 2147483648
      %v1163 = vmul.f32 %v1161, 1.442695
      %v1164 = vpow.pop %v1163
      %v1165 = vmul.f32 %v1162, 1.442695
      %v1166 = vpow.pop %v1165
      %v1167 = vadd.f32 %v1164, 1.0
      %v1168 = vadd.f32 %v1166, 1.0
      %v1169 = vrcp.pop %v1167
      %v1170 = vmul.f32 1.0, %v1169
      %v1171 = vrcp.pop %v1168
      %v1172 = vmul.f32 1.0, %v1171
      %v1173 = vtanh.pop %v1145
      %v1174 = vtanh.pop %v1146
      %v1175 = vxor.u32 %v1147, 2147483648
      %v1176 = vxor.u32 %v1148, 2147483648
      %v1177 = vmul.f32 %v1175, 1.442695
      %v1178 = vpow.pop %v1177
      %v1179 = vmul.f32 %v1176, 1.442695
      %v1180 = vpow.pop %v1179
      %v1181 = vadd.f32 %v1178, 1.0
      %v1182 = vadd.f32 %v1180, 1.0
      %v1183 = vrcp.pop %v1181
      %v1184 = vmul.f32 1.0, %v1183
      %v1185 = vrcp.pop %v1182
      %v1186 = vmul.f32 1.0, %v1185
      %v1187 = vmul.f32 %v1170, %v163
      %v1188 = vmul.f32 %v1172, %v164
      %v1189 = vmul.f32 %v1158, %v1173
      %v1190 = vmul.f32 %v1160, %v1174
      %v1191 = vadd.f32 %v1187, %v1189
      %v1192 = vadd.f32 %v1188, %v1190
      %v1193 = vtanh.pop %v1191
      %v1194 = vtanh.pop %v1192
      %v1195 = vmul.f32 %v1184, %v1193
      %v1196 = vmul.f32 %v1186, %v1194
      %1197 = vst [vmem:[#allocation2] sm:$0xff] %v1195
      %1198 = vst [vmem:[#allocation2 + $0x8] sm:$0xff] %v1196
      %1199 = vst [vmem:[#allocation3] sm:$0xff] %v1191
      %1200 = vst [vmem:[#allocation3 + $0x8] sm:$0xff] %v1192
      %1201 = vst [vmem:[%s150] sm:$0xff] %v1195
      %1202 = vst [vmem:[%s150 + $0x8] sm:$0xff] %v1196
      %p1203 = scmp.lt.s32.totalorder %s14, 4
      %s1204 = scalar_select %p1203, %s14, 4
      %s1205 = smul.addr %s1204, 2
      %s1206 = smul.addr %s1205, 8
      %s1207 = scalar_lea.vmem %s3, %s1206
      // Predicated region
      $region37: #{fc_lstm_forward.5} parent=31 // pred_check
        %p1208 = pneg %p95
      $region38: #{fc_lstm_forward.5} parent=31 // pred_check_branch
        %1210 = sbr.rel (%p1208) target = $region40
      $region39: #{fc_lstm_forward.5} parent=31 // pred_region
        _
      $region40: #{fc_lstm_forward.5} parent=31 // pred_fallthru
        _
    $region32: #{fc_lstm_forward.5} parent=5 // pred_fallthru
      _
    %p1211 = scmp.le.s32.totalorder 2, %s9
    // Predicated region
    $region41: #{fc_lstm_forward.5} parent=5 // pred_check
      %p1212 = pneg %p1211
    $region42: #{fc_lstm_forward.5} parent=5 // pred_check_branch
      %1214 = sbr.rel (%p1212) target = $region44
    $region43: #{fc_lstm_forward.5} parent=5 // pred_region
      %s1215 = ssub.s32 %s9, 2
      // Predicated region
      $region45: #{fc_lstm_forward.5} parent=43 // pred_check
        %p1216 = pneg %p101
      $region46: #{fc_lstm_forward.5} parent=43 // pred_check_branch
        %1218 = sbr.rel (%p1216) target = $region48
      $region47: #{fc_lstm_forward.5} parent=43 // pred_region
        %p1219 = scmp.lt.s32.totalorder %s15, 4
        %s1220 = scalar_select %p1219, %s15, 4
        %s1221 = smul.addr %s1220, 2
        %s1222 = smul.addr %s1221, 8
        %s1223 = scalar_lea.vmem %s3, %s1222
      $region48: #{fc_lstm_forward.5} parent=43 // pred_fallthru
        _
    $region44: #{fc_lstm_forward.5} parent=5 // pred_fallthru
      _
  $region6: #{fc_lstm_forward.5} parent=0 // loop_footer
    %s13 = sadd.s32 1, %s9
  $region7: #{fc_lstm_forward.5} parent=0 // loop_footer_branch
    %8 = sbr.rel target = $region3
  $region8: #{fc_lstm_forward.5} parent=0 // loop_exit
    _

// kernel: fc_lstm_forward.4
$region0: #{fc_lstm_forward.4}
  #allocation0 [shape = 'u32[]', space=smem, size = 0x4, offset = 0x4, fixed_abs, tag = 'smem constant byte address 0x4 - core index']
  #allocation1 [shape = 'u32[144,128]{1,0:T(1,128)}', space=vmem, size = 0x12000, scoped, tag = 'internal scratch']
  #allocation2 [shape = 'f32[8,256]{1,0:T(8,128)}', space=vmem, size = 0x2000, scoped, tag = 'scratch operand']
  #allocation3 [shape = 'f32[8,256]{1,0:T(8,128)}', space=vmem, size = 0x2000, scoped, tag = 'scratch operand']
  %s0 = inlined_call_operand.vmem [shape: f32[4,8,1024], index: 0, kind: input, shape index: {}]
  %s1 = inlined_call_operand.vmem [shape: bf16[256,1024], index: 1, kind: input, shape index: {}]
  %s2 = inlined_call_operand.vmem [shape: f32[8,256], index: 2, kind: output, shape index: {0}]
  %s3 = inlined_call_operand.hbm [shape: f32[8,256], index: 3, kind: output, shape index: {1}]
  %4 = xla_tuple %s2, %s3
  %s5 = sld [smem:[#allocation0]]
  $region57: #{fc_lstm_forward.4} parent=0
    _
  %s7 = ssub.s32 1, %s5
  %s8 = scalar_select 0, %s7, %s5
  $region1: #{fc_lstm_forward.4} parent=0
    #allocation4 [shape = 'u8[8192]{0}', space=vmem, size = 0x2000, scoped, tag = 'output window, operand 1, single buffered']
    #allocation5 [shape = 's32[2]{0}', space=sflag, size = 0x8, scoped, tag = 'scoped memory for fc_lstm_forward.4']
    %9 = vsyncpa [#allocation5], 0
    loop: start=0, step=1, limit=6
    $region2: #{fc_lstm_forward.4} parent=1 // loop_pre_header
      _
    $region3: #{fc_lstm_forward.4} parent=1 // loop_header
      %s11 = sphi 0, %s15
      %p12 = scmp.ge.s32.totalorder %s11, 6
      %s21 = sphi 0, %s23
      %s24 = sphi 0, %s21
      %s25 = sphi 0, %s24
      %s41 = sphi 0, %s25
      %s45 = sphi 0, %s45
      %s47 = sphi 0, %s45
      %s48 = sphi 0, %s47
      %s62 = sphi 0, %s48
      %s66 = sphi 0, %s66
      %s68 = sphi 0, %s66
      %s69 = sphi 0, %s68
      %s83 = sphi 0, %s69
      %s87 = sphi 0, %s87
      %s89 = sphi 0, %s87
      %s90 = sphi 0, %s89
      %s104 = sphi 0, %s90
    $region4: #{fc_lstm_forward.4} parent=1 // loop_header_branch
      %14 = sbr.rel (%p12) target = $region8
    $region5: #{fc_lstm_forward.4} parent=1 // loop_body
      %s16 = ssub.s32 %s11, 1
      %s17 = ssub.s32 %s11, 2
      %s18 = sadd.s32 %s11, 1
      %s19 = ssub.s32 %s11, %s18
      %p20 = scmp.eq.s32.totalorder %s19, 0
      %s22 = sadd.s32 %s21, 1
      %s23 = scalar_select %p20, %s21, %s22
      %p26 = pneg %p20
      %p27 = scmp.eq.s32.totalorder %s11, 3
      %p28 = por %p26, %p27
      %p29 = scmp.ne.s32.totalorder %s21, %s24
      %p30 = scmp.eq.s32.totalorder %s11, 0
      %p31 = por %p29, %p30
      %p32 = scmp.ne.s32.totalorder %s21, %s24
      %p33 = scmp.eq.s32.totalorder %s16, 3
      %p34 = por %p32, %p33
      %p35 = scmp.ne.s32.totalorder %s24, %s25
      %p36 = scmp.eq.s32.totalorder %s16, 0
      %p37 = por %p35, %p36
      %p38 = scmp.ne.s32.totalorder %s24, %s25
      %p39 = scmp.eq.s32.totalorder %s17, 3
      %p40 = por %p38, %p39
      %p42 = scmp.ne.s32.totalorder %s25, %s41
      %p43 = scmp.eq.s32.totalorder %s17, 0
      %p44 = por %p42, %p43
      %s46 = sadd.s32 %s45, 1
      %p49 = scmp.eq.s32.totalorder %s11, 3
      %p50 = scmp.ne.s32.totalorder %s45, %s47
      %p51 = scmp.eq.s32.totalorder %s11, 0
      %p52 = por %p50, %p51
      %p53 = scmp.ne.s32.totalorder %s45, %s47
      %p54 = scmp.eq.s32.totalorder %s16, 3
      %p55 = por %p53, %p54
      %p56 = scmp.ne.s32.totalorder %s47, %s48
      %p57 = scmp.eq.s32.totalorder %s16, 0
      %p58 = por %p56, %p57
      %p59 = scmp.ne.s32.totalorder %s47, %s48
      %p60 = scmp.eq.s32.totalorder %s17, 3
      %p61 = por %p59, %p60
      %p63 = scmp.ne.s32.totalorder %s48, %s62
      %p64 = scmp.eq.s32.totalorder %s17, 0
      %p65 = por %p63, %p64
      %s67 = sadd.s32 %s66, 1
      %p70 = scmp.eq.s32.totalorder %s11, 3
      %p71 = scmp.ne.s32.totalorder %s66, %s68
      %p72 = scmp.eq.s32.totalorder %s11, 0
      %p73 = por %p71, %p72
      %p74 = scmp.ne.s32.totalorder %s66, %s68
      %p75 = scmp.eq.s32.totalorder %s16, 3
      %p76 = por %p74, %p75
      %p77 = scmp.ne.s32.totalorder %s68, %s69
      %p78 = scmp.eq.s32.totalorder %s16, 0
      %p79 = por %p77, %p78
      %p80 = scmp.ne.s32.totalorder %s68, %s69
      %p81 = scmp.eq.s32.totalorder %s17, 3
      %p82 = por %p80, %p81
      %p84 = scmp.ne.s32.totalorder %s69, %s83
      %p85 = scmp.eq.s32.totalorder %s17, 0
      %p86 = por %p84, %p85
      %s88 = sadd.s32 %s87, 1
      %p91 = scmp.eq.s32.totalorder %s11, 3
      %p92 = scmp.ne.s32.totalorder %s87, %s89
      %p93 = scmp.eq.s32.totalorder %s11, 0
      %p94 = por %p92, %p93
      %p95 = scmp.ne.s32.totalorder %s87, %s89
      %p96 = scmp.eq.s32.totalorder %s16, 3
      %p97 = por %p95, %p96
      %p98 = scmp.ne.s32.totalorder %s89, %s90
      %p99 = scmp.eq.s32.totalorder %s16, 0
      %p100 = por %p98, %p99
      %p101 = scmp.ne.s32.totalorder %s89, %s90
      %p102 = scmp.eq.s32.totalorder %s17, 3
      %p103 = por %p101, %p102
      %p105 = scmp.ne.s32.totalorder %s90, %s104
      %p106 = scmp.eq.s32.totalorder %s17, 0
      %p107 = por %p105, %p106
      %p108 = scmp.le.s32.totalorder 1, %s11
      %p109 = scmp.lt.s32.totalorder %s11, 5
      %p110 = pnand %p108, %p109
      %p111 = pneg %p110
      // Predicated region
      $region9: #{fc_lstm_forward.4} parent=5 // pred_check
        _
      $region10: #{fc_lstm_forward.4} parent=5 // pred_check_branch
        %113 = sbr.rel (%p110) target = $region12
      $region11: #{fc_lstm_forward.4} parent=5 // pred_region
        %s114 = ssub.s32 %s11, 1
        // Predicated region
        $region13: #{fc_lstm_forward.4} parent=11 // pred_check
          %p115 = pneg %p58
        $region14: #{fc_lstm_forward.4} parent=11 // pred_check_branch
          %117 = sbr.rel (%p115) target = $region16
        $region15: #{fc_lstm_forward.4} parent=11 // pred_region
          _
        $region16: #{fc_lstm_forward.4} parent=11 // pred_fallthru
          _
      $region12: #{fc_lstm_forward.4} parent=5 // pred_fallthru
        _
      %p118 = scmp.lt.s32.totalorder %s11, 4
      // Predicated region
      $region17: #{fc_lstm_forward.4} parent=5 // pred_check
        %p119 = pneg %p118
      $region18: #{fc_lstm_forward.4} parent=5 // pred_check_branch
        %121 = sbr.rel (%p119) target = $region20
      $region19: #{fc_lstm_forward.4} parent=5 // pred_region
        // Predicated region
        $region21: #{fc_lstm_forward.4} parent=19 // pred_check
          %p122 = pneg %p31
        $region22: #{fc_lstm_forward.4} parent=19 // pred_check_branch
          %124 = sbr.rel (%p122) target = $region24
        $region23: #{fc_lstm_forward.4} parent=19 // pred_region
          %p125 = scmp.lt.s32.totalorder %s11, 3
          %s126 = scalar_select %p125, %s11, 3
          %s127 = smul.addr %s126, 8
          %s128 = smul.addr %s127, 8
          %s129 = scalar_lea.vmem %s0, %s128
        $region24: #{fc_lstm_forward.4} parent=19 // pred_fallthru
          _
      $region20: #{fc_lstm_forward.4} parent=5 // pred_fallthru
        _
      %p130 = scmp.le.s32.totalorder 1, %s11
      %p131 = scmp.lt.s32.totalorder %s11, 5
      %p132 = pnand %p130, %p131
      %p133 = pneg %p132
      // Predicated region
      $region25: #{fc_lstm_forward.4} parent=5 // pred_check
        _
      $region26: #{fc_lstm_forward.4} parent=5 // pred_check_branch
        %135 = sbr.rel (%p132) target = $region28
      $region27: #{fc_lstm_forward.4} parent=5 // pred_region
        %s136 = ssub.s32 %s11, 1
        %p137 = scmp.lt.s32.totalorder %s16, 3
        %s138 = scalar_select %p137, %s16, 3
        %s139 = smul.addr %s138, 8
        %s140 = smul.addr %s139, 8
        %s141 = scalar_lea.vmem %s0, %s140
        %p142 = pneg %p37
        %p143 = pneg %p34
        %p144 = pneg %p58
        %p145 = pneg %p55
        %p146 = pneg %p79
        %p147 = pneg %p76
        %p148 = pneg %p100
        %p149 = pneg %p97
        %p150 = scmp.lt.s32.totalorder %s16, 3
        %s151 = scalar_select %p150, %s16, 3
        %s152 = smul.addr %s151, 8
        %s153 = smul.addr %s152, 8
        %s154 = scalar_lea.vmem %s0, %s153
        %p155 = scmp.eq.s32.totalorder %s16, 0
        // Predicated region
        $region29: #{fc_lstm_forward.4} parent=27 // pred_check
          %p156 = pneg %p155
        $region30: #{fc_lstm_forward.4} parent=27 // pred_check_branch
          %158 = sbr.rel (%p156) target = $region32
        $region31: #{fc_lstm_forward.4} parent=27 // pred_region
          %159 = vst [vmem:[#allocation2] sm:$0xff] 0.0
          %160 = vst [vmem:[#allocation2 + $0x8] sm:$0xff] 0.0
          %161 = vst [vmem:[#allocation3] sm:$0xff] 0.0
          %162 = vst [vmem:[#allocation3 + $0x8] sm:$0xff] 0.0
        $region32: #{fc_lstm_forward.4} parent=27 // pred_fallthru
          _
        %v163 = vld [vmem:[#allocation2] sm:$0xff]
        %v164 = vld [vmem:[#allocation2 + $0x8] sm:$0xff]
        %v165 = vld [vmem:[#allocation3] sm:$0xff]
        %v166 = vld [vmem:[#allocation3 + $0x8] sm:$0xff]
        %v167 = vld [vmem:[%s154] sm:$0xff]
        %v168 = vld [vmem:[%s154 + $0x8] sm:$0xff]
        %v169 = vld [vmem:[%s154 + $0x10] sm:$0xff]
        %v170 = vld [vmem:[%s154 + $0x18] sm:$0xff]
        %v171 = vld [vmem:[%s154 + $0x20] sm:$0xff]
        %v172 = vld [vmem:[%s154 + $0x28] sm:$0xff]
        %v173 = vld [vmem:[%s154 + $0x30] sm:$0xff]
        %v174 = vld [vmem:[%s154 + $0x38] sm:$0xff]
        %v175 = vpack.c.bf16 %v163, %v163
        %v176 = vpack.c.bf16 %v164, %v164
        %v177 = vld [vmem:[%s1] sm:$0xff]
        %v178 = vld [vmem:[%s1 + $0x8] sm:$0xff]
        %v179 = vld [vmem:[%s1 + $0x10] sm:$0xff]
        %v180 = vld [vmem:[%s1 + $0x18] sm:$0xff]
        %v181 = vld [vmem:[%s1 + $0x20] sm:$0xff]
        %v182 = vld [vmem:[%s1 + $0x28] sm:$0xff]
        %v183 = vld [vmem:[%s1 + $0x30] sm:$0xff]
        %v184 = vld [vmem:[%s1 + $0x38] sm:$0xff]
        %v185 = vld [vmem:[%s1 + $0x40] sm:$0xff]
        %v186 = vld [vmem:[%s1 + $0x48] sm:$0xff]
        %v187 = vld [vmem:[%s1 + $0x50] sm:$0xff]
        %v188 = vld [vmem:[%s1 + $0x58] sm:$0xff]
        %v189 = vld [vmem:[%s1 + $0x60] sm:$0xff]
        %v190 = vld [vmem:[%s1 + $0x68] sm:$0xff]
        %v191 = vld [vmem:[%s1 + $0x70] sm:$0xff]
        %v192 = vld [vmem:[%s1 + $0x78] sm:$0xff]
        %v193 = vld [vmem:[%s1 + $0x80] sm:$0xff]
        %v194 = vld [vmem:[%s1 + $0x88] sm:$0xff]
        %v195 = vld [vmem:[%s1 + $0x90] sm:$0xff]
        %v196 = vld [vmem:[%s1 + $0x98] sm:$0xff]
        %v197 = vld [vmem:[%s1 + $0xa0] sm:$0xff]
        %v198 = vld [vmem:[%s1 + $0xa8] sm:$0xff]
        %v199 = vld [vmem:[%s1 + $0xb0] sm:$0xff]
        %v200 = vld [vmem:[%s1 + $0xb8] sm:$0xff]
        %v201 = vld [vmem:[%s1 + $0xc0] sm:$0xff]
        %v202 = vld [vmem:[%s1 + $0xc8] sm:$0xff]
        %v203 = vld [vmem:[%s1 + $0xd0] sm:$0xff]
        %v204 = vld [vmem:[%s1 + $0xd8] sm:$0xff]
        %v205 = vld [vmem:[%s1 + $0xe0] sm:$0xff]
        %v206 = vld [vmem:[%s1 + $0xe8] sm:$0xff]
        %v207 = vld [vmem:[%s1 + $0xf0] sm:$0xff]
        %v208 = vld [vmem:[%s1 + $0xf8] sm:$0xff]
        %v209 = vld [vmem:[%s1 + $0x100] sm:$0xff]
        %v210 = vld [vmem:[%s1 + $0x108] sm:$0xff]
        %v211 = vld [vmem:[%s1 + $0x110] sm:$0xff]
        %v212 = vld [vmem:[%s1 + $0x118] sm:$0xff]
        %v213 = vld [vmem:[%s1 + $0x120] sm:$0xff]
        %v214 = vld [vmem:[%s1 + $0x128] sm:$0xff]
        %v215 = vld [vmem:[%s1 + $0x130] sm:$0xff]
        %v216 = vld [vmem:[%s1 + $0x138] sm:$0xff]
        %v217 = vld [vmem:[%s1 + $0x140] sm:$0xff]
        %v218 = vld [vmem:[%s1 + $0x148] sm:$0xff]
        %v219 = vld [vmem:[%s1 + $0x150] sm:$0xff]
        %v220 = vld [vmem:[%s1 + $0x158] sm:$0xff]
        %v221 = vld [vmem:[%s1 + $0x160] sm:$0xff]
        %v222 = vld [vmem:[%s1 + $0x168] sm:$0xff]
        %v223 = vld [vmem:[%s1 + $0x170] sm:$0xff]
        %v224 = vld [vmem:[%s1 + $0x178] sm:$0xff]
        %v225 = vld [vmem:[%s1 + $0x180] sm:$0xff]
        %v226 = vld [vmem:[%s1 + $0x188] sm:$0xff]
        %v227 = vld [vmem:[%s1 + $0x190] sm:$0xff]
        %v228 = vld [vmem:[%s1 + $0x198] sm:$0xff]
        %v229 = vld [vmem:[%s1 + $0x1a0] sm:$0xff]
        %v230 = vld [vmem:[%s1 + $0x1a8] sm:$0xff]
        %v231 = vld [vmem:[%s1 + $0x1b0] sm:$0xff]
        %v232 = vld [vmem:[%s1 + $0x1b8] sm:$0xff]
        %v233 = vld [vmem:[%s1 + $0x1c0] sm:$0xff]
        %v234 = vld [vmem:[%s1 + $0x1c8] sm:$0xff]
        %v235 = vld [vmem:[%s1 + $0x1d0] sm:$0xff]
        %v236 = vld [vmem:[%s1 + $0x1d8] sm:$0xff]
        %v237 = vld [vmem:[%s1 + $0x1e0] sm:$0xff]
        %v238 = vld [vmem:[%s1 + $0x1e8] sm:$0xff]
        %v239 = vld [vmem:[%s1 + $0x1f0] sm:$0xff]
        %v240 = vld [vmem:[%s1 + $0x1f8] sm:$0xff]
        %v241 = vld [vmem:[%s1 + $0x200] sm:$0xff]
        %v242 = vld [vmem:[%s1 + $0x208] sm:$0xff]
        %v243 = vld [vmem:[%s1 + $0x210] sm:$0xff]
        %v244 = vld [vmem:[%s1 + $0x218] sm:$0xff]
        %v245 = vld [vmem:[%s1 + $0x220] sm:$0xff]
        %v246 = vld [vmem:[%s1 + $0x228] sm:$0xff]
        %v247 = vld [vmem:[%s1 + $0x230] sm:$0xff]
        %v248 = vld [vmem:[%s1 + $0x238] sm:$0xff]
        %v249 = vld [vmem:[%s1 + $0x240] sm:$0xff]
        %v250 = vld [vmem:[%s1 + $0x248] sm:$0xff]
        %v251 = vld [vmem:[%s1 + $0x250] sm:$0xff]
        %v252 = vld [vmem:[%s1 + $0x258] sm:$0xff]
        %v253 = vld [vmem:[%s1 + $0x260] sm:$0xff]
        %v254 = vld [vmem:[%s1 + $0x268] sm:$0xff]
        %v255 = vld [vmem:[%s1 + $0x270] sm:$0xff]
        %v256 = vld [vmem:[%s1 + $0x278] sm:$0xff]
        %v257 = vld [vmem:[%s1 + $0x280] sm:$0xff]
        %v258 = vld [vmem:[%s1 + $0x288] sm:$0xff]
        %v259 = vld [vmem:[%s1 + $0x290] sm:$0xff]
        %v260 = vld [vmem:[%s1 + $0x298] sm:$0xff]
        %v261 = vld [vmem:[%s1 + $0x2a0] sm:$0xff]
        %v262 = vld [vmem:[%s1 + $0x2a8] sm:$0xff]
        %v263 = vld [vmem:[%s1 + $0x2b0] sm:$0xff]
        %v264 = vld [vmem:[%s1 + $0x2b8] sm:$0xff]
        %v265 = vld [vmem:[%s1 + $0x2c0] sm:$0xff]
        %v266 = vld [vmem:[%s1 + $0x2c8] sm:$0xff]
        %v267 = vld [vmem:[%s1 + $0x2d0] sm:$0xff]
        %v268 = vld [vmem:[%s1 + $0x2d8] sm:$0xff]
        %v269 = vld [vmem:[%s1 + $0x2e0] sm:$0xff]
        %v270 = vld [vmem:[%s1 + $0x2e8] sm:$0xff]
        %v271 = vld [vmem:[%s1 + $0x2f0] sm:$0xff]
        %v272 = vld [vmem:[%s1 + $0x2f8] sm:$0xff]
        %v273 = vld [vmem:[%s1 + $0x300] sm:$0xff]
        %v274 = vld [vmem:[%s1 + $0x308] sm:$0xff]
        %v275 = vld [vmem:[%s1 + $0x310] sm:$0xff]
        %v276 = vld [vmem:[%s1 + $0x318] sm:$0xff]
        %v277 = vld [vmem:[%s1 + $0x320] sm:$0xff]
        %v278 = vld [vmem:[%s1 + $0x328] sm:$0xff]
        %v279 = vld [vmem:[%s1 + $0x330] sm:$0xff]
        %v280 = vld [vmem:[%s1 + $0x338] sm:$0xff]
        %v281 = vld [vmem:[%s1 + $0x340] sm:$0xff]
        %v282 = vld [vmem:[%s1 + $0x348] sm:$0xff]
        %v283 = vld [vmem:[%s1 + $0x350] sm:$0xff]
        %v284 = vld [vmem:[%s1 + $0x358] sm:$0xff]
        %v285 = vld [vmem:[%s1 + $0x360] sm:$0xff]
        %v286 = vld [vmem:[%s1 + $0x368] sm:$0xff]
        %v287 = vld [vmem:[%s1 + $0x370] sm:$0xff]
        %v288 = vld [vmem:[%s1 + $0x378] sm:$0xff]
        %v289 = vld [vmem:[%s1 + $0x380] sm:$0xff]
        %v290 = vld [vmem:[%s1 + $0x388] sm:$0xff]
        %v291 = vld [vmem:[%s1 + $0x390] sm:$0xff]
        %v292 = vld [vmem:[%s1 + $0x398] sm:$0xff]
        %v293 = vld [vmem:[%s1 + $0x3a0] sm:$0xff]
        %v294 = vld [vmem:[%s1 + $0x3a8] sm:$0xff]
        %v295 = vld [vmem:[%s1 + $0x3b0] sm:$0xff]
        %v296 = vld [vmem:[%s1 + $0x3b8] sm:$0xff]
        %v297 = vld [vmem:[%s1 + $0x3c0] sm:$0xff]
        %v298 = vld [vmem:[%s1 + $0x3c8] sm:$0xff]
        %v299 = vld [vmem:[%s1 + $0x3d0] sm:$0xff]
        %v300 = vld [vmem:[%s1 + $0x3d8] sm:$0xff]
        %v301 = vld [vmem:[%s1 + $0x3e0] sm:$0xff]
        %v302 = vld [vmem:[%s1 + $0x3e8] sm:$0xff]
        %v303 = vld [vmem:[%s1 + $0x3f0] sm:$0xff]
        %v304 = vld [vmem:[%s1 + $0x3f8] sm:$0xff]
        %v433 = vunpack.c.l.b16 %v177
        %v434 = vunpack.c.h.b16 %v177
        %v435 = vunpack.c.l.b16 %v178
        %v436 = vunpack.c.h.b16 %v178
        %v437 = vunpack.c.l.b16 %v179
        %v438 = vunpack.c.h.b16 %v179
        %v439 = vunpack.c.l.b16 %v180
        %v440 = vunpack.c.h.b16 %v180
        %v441 = vunpack.c.l.b16 %v181
        %v442 = vunpack.c.h.b16 %v181
        %v443 = vunpack.c.l.b16 %v182
        %v444 = vunpack.c.h.b16 %v182
        %v445 = vunpack.c.l.b16 %v183
        %v446 = vunpack.c.h.b16 %v183
        %v447 = vunpack.c.l.b16 %v184
        %v448 = vunpack.c.h.b16 %v184
        %v449 = vunpack.c.l.b16 %v185
        %v450 = vunpack.c.h.b16 %v185
        %v451 = vunpack.c.l.b16 %v186
        %v452 = vunpack.c.h.b16 %v186
        %v453 = vunpack.c.l.b16 %v187
        %v454 = vunpack.c.h.b16 %v187
        %v455 = vunpack.c.l.b16 %v188
        %v456 = vunpack.c.h.b16 %v188
        %v457 = vunpack.c.l.b16 %v189
        %v458 = vunpack.c.h.b16 %v189
        %v459 = vunpack.c.l.b16 %v190
        %v460 = vunpack.c.h.b16 %v190
        %v461 = vunpack.c.l.b16 %v191
        %v462 = vunpack.c.h.b16 %v191
        %v463 = vunpack.c.l.b16 %v192
        %v464 = vunpack.c.h.b16 %v192
        %v465 = vunpack.c.l.b16 %v193
        %v466 = vunpack.c.h.b16 %v193
        %v467 = vunpack.c.l.b16 %v194
        %v468 = vunpack.c.h.b16 %v194
        %v469 = vunpack.c.l.b16 %v195
        %v470 = vunpack.c.h.b16 %v195
        %v471 = vunpack.c.l.b16 %v196
        %v472 = vunpack.c.h.b16 %v196
        %v473 = vunpack.c.l.b16 %v197
        %v474 = vunpack.c.h.b16 %v197
        %v475 = vunpack.c.l.b16 %v198
        %v476 = vunpack.c.h.b16 %v198
        %v477 = vunpack.c.l.b16 %v199
        %v478 = vunpack.c.h.b16 %v199
        %v479 = vunpack.c.l.b16 %v200
        %v480 = vunpack.c.h.b16 %v200
        %v481 = vunpack.c.l.b16 %v201
        %v482 = vunpack.c.h.b16 %v201
        %v483 = vunpack.c.l.b16 %v202
        %v484 = vunpack.c.h.b16 %v202
        %v485 = vunpack.c.l.b16 %v203
        %v486 = vunpack.c.h.b16 %v203
        %v487 = vunpack.c.l.b16 %v204
        %v488 = vunpack.c.h.b16 %v204
        %v489 = vunpack.c.l.b16 %v205
        %v490 = vunpack.c.h.b16 %v205
        %v491 = vunpack.c.l.b16 %v206
        %v492 = vunpack.c.h.b16 %v206
        %v493 = vunpack.c.l.b16 %v207
        %v494 = vunpack.c.h.b16 %v207
        %v495 = vunpack.c.l.b16 %v208
        %v496 = vunpack.c.h.b16 %v208
        %v497 = vunpack.c.l.b16 %v209
        %v498 = vunpack.c.h.b16 %v209
        %v499 = vunpack.c.l.b16 %v210
        %v500 = vunpack.c.h.b16 %v210
        %v501 = vunpack.c.l.b16 %v211
        %v502 = vunpack.c.h.b16 %v211
        %v503 = vunpack.c.l.b16 %v212
        %v504 = vunpack.c.h.b16 %v212
        %v505 = vunpack.c.l.b16 %v213
        %v506 = vunpack.c.h.b16 %v213
        %v507 = vunpack.c.l.b16 %v214
        %v508 = vunpack.c.h.b16 %v214
        %v509 = vunpack.c.l.b16 %v215
        %v510 = vunpack.c.h.b16 %v215
        %v511 = vunpack.c.l.b16 %v216
        %v512 = vunpack.c.h.b16 %v216
        %v513 = vunpack.c.l.b16 %v217
        %v514 = vunpack.c.h.b16 %v217
        %v515 = vunpack.c.l.b16 %v218
        %v516 = vunpack.c.h.b16 %v218
        %v517 = vunpack.c.l.b16 %v219
        %v518 = vunpack.c.h.b16 %v219
        %v519 = vunpack.c.l.b16 %v220
        %v520 = vunpack.c.h.b16 %v220
        %v521 = vunpack.c.l.b16 %v221
        %v522 = vunpack.c.h.b16 %v221
        %v523 = vunpack.c.l.b16 %v222
        %v524 = vunpack.c.h.b16 %v222
        %v525 = vunpack.c.l.b16 %v223
        %v526 = vunpack.c.h.b16 %v223
        %v527 = vunpack.c.l.b16 %v224
        %v528 = vunpack.c.h.b16 %v224
        %v529 = vunpack.c.l.b16 %v225
        %v530 = vunpack.c.h.b16 %v225
        %v531 = vunpack.c.l.b16 %v226
        %v532 = vunpack.c.h.b16 %v226
        %v533 = vunpack.c.l.b16 %v227
        %v534 = vunpack.c.h.b16 %v227
        %v535 = vunpack.c.l.b16 %v228
        %v536 = vunpack.c.h.b16 %v228
        %v537 = vunpack.c.l.b16 %v229
        %v538 = vunpack.c.h.b16 %v229
        %v539 = vunpack.c.l.b16 %v230
        %v540 = vunpack.c.h.b16 %v230
        %v541 = vunpack.c.l.b16 %v231
        %v542 = vunpack.c.h.b16 %v231
        %v543 = vunpack.c.l.b16 %v232
        %v544 = vunpack.c.h.b16 %v232
        %v545 = vunpack.c.l.b16 %v233
        %v546 = vunpack.c.h.b16 %v233
        %v547 = vunpack.c.l.b16 %v234
        %v548 = vunpack.c.h.b16 %v234
        %v549 = vunpack.c.l.b16 %v235
        %v550 = vunpack.c.h.b16 %v235
        %v551 = vunpack.c.l.b16 %v236
        %v552 = vunpack.c.h.b16 %v236
        %v553 = vunpack.c.l.b16 %v237
        %v554 = vunpack.c.h.b16 %v237
        %v555 = vunpack.c.l.b16 %v238
        %v556 = vunpack.c.h.b16 %v238
        %v557 = vunpack.c.l.b16 %v239
        %v558 = vunpack.c.h.b16 %v239
        %v559 = vunpack.c.l.b16 %v240
        %v560 = vunpack.c.h.b16 %v240
        %v561 = vunpack.c.l.b16 %v241
        %v562 = vunpack.c.h.b16 %v241
        %v563 = vunpack.c.l.b16 %v242
        %v564 = vunpack.c.h.b16 %v242
        %v565 = vunpack.c.l.b16 %v243
        %v566 = vunpack.c.h.b16 %v243
        %v567 = vunpack.c.l.b16 %v244
        %v568 = vunpack.c.h.b16 %v244
        %v569 = vunpack.c.l.b16 %v245
        %v570 = vunpack.c.h.b16 %v245
        %v571 = vunpack.c.l.b16 %v246
        %v572 = vunpack.c.h.b16 %v246
        %v573 = vunpack.c.l.b16 %v247
        %v574 = vunpack.c.h.b16 %v247
        %v575 = vunpack.c.l.b16 %v248
        %v576 = vunpack.c.h.b16 %v248
        %v577 = vunpack.c.l.b16 %v249
        %v578 = vunpack.c.h.b16 %v249
        %v579 = vunpack.c.l.b16 %v250
        %v580 = vunpack.c.h.b16 %v250
        %v581 = vunpack.c.l.b16 %v251
        %v582 = vunpack.c.h.b16 %v251
        %v583 = vunpack.c.l.b16 %v252
        %v584 = vunpack.c.h.b16 %v252
        %v585 = vunpack.c.l.b16 %v253
        %v586 = vunpack.c.h.b16 %v253
        %v587 = vunpack.c.l.b16 %v254
        %v588 = vunpack.c.h.b16 %v254
        %v589 = vunpack.c.l.b16 %v255
        %v590 = vunpack.c.h.b16 %v255
        %v591 = vunpack.c.l.b16 %v256
        %v592 = vunpack.c.h.b16 %v256
        %v593 = vunpack.c.l.b16 %v257
        %v594 = vunpack.c.h.b16 %v257
        %v595 = vunpack.c.l.b16 %v258
        %v596 = vunpack.c.h.b16 %v258
        %v597 = vunpack.c.l.b16 %v259
        %v598 = vunpack.c.h.b16 %v259
        %v599 = vunpack.c.l.b16 %v260
        %v600 = vunpack.c.h.b16 %v260
        %v601 = vunpack.c.l.b16 %v261
        %v602 = vunpack.c.h.b16 %v261
        %v603 = vunpack.c.l.b16 %v262
        %v604 = vunpack.c.h.b16 %v262
        %v605 = vunpack.c.l.b16 %v263
        %v606 = vunpack.c.h.b16 %v263
        %v607 = vunpack.c.l.b16 %v264
        %v608 = vunpack.c.h.b16 %v264
        %v609 = vunpack.c.l.b16 %v265
        %v610 = vunpack.c.h.b16 %v265
        %v611 = vunpack.c.l.b16 %v266
        %v612 = vunpack.c.h.b16 %v266
        %v613 = vunpack.c.l.b16 %v267
        %v614 = vunpack.c.h.b16 %v267
        %v615 = vunpack.c.l.b16 %v268
        %v616 = vunpack.c.h.b16 %v268
        %v617 = vunpack.c.l.b16 %v269
        %v618 = vunpack.c.h.b16 %v269
        %v619 = vunpack.c.l.b16 %v270
        %v620 = vunpack.c.h.b16 %v270
        %v621 = vunpack.c.l.b16 %v271
        %v622 = vunpack.c.h.b16 %v271
        %v623 = vunpack.c.l.b16 %v272
        %v624 = vunpack.c.h.b16 %v272
        %v625 = vunpack.c.l.b16 %v273
        %v626 = vunpack.c.h.b16 %v273
        %v627 = vunpack.c.l.b16 %v274
        %v628 = vunpack.c.h.b16 %v274
        %v629 = vunpack.c.l.b16 %v275
        %v630 = vunpack.c.h.b16 %v275
        %v631 = vunpack.c.l.b16 %v276
        %v632 = vunpack.c.h.b16 %v276
        %v633 = vunpack.c.l.b16 %v277
        %v634 = vunpack.c.h.b16 %v277
        %v635 = vunpack.c.l.b16 %v278
        %v636 = vunpack.c.h.b16 %v278
        %v637 = vunpack.c.l.b16 %v279
        %v638 = vunpack.c.h.b16 %v279
        %v639 = vunpack.c.l.b16 %v280
        %v640 = vunpack.c.h.b16 %v280
        %v641 = vunpack.c.l.b16 %v281
        %v642 = vunpack.c.h.b16 %v281
        %v643 = vunpack.c.l.b16 %v282
        %v644 = vunpack.c.h.b16 %v282
        %v645 = vunpack.c.l.b16 %v283
        %v646 = vunpack.c.h.b16 %v283
        %v647 = vunpack.c.l.b16 %v284
        %v648 = vunpack.c.h.b16 %v284
        %v649 = vunpack.c.l.b16 %v285
        %v650 = vunpack.c.h.b16 %v285
        %v651 = vunpack.c.l.b16 %v286
        %v652 = vunpack.c.h.b16 %v286
        %v653 = vunpack.c.l.b16 %v287
        %v654 = vunpack.c.h.b16 %v287
        %v655 = vunpack.c.l.b16 %v288
        %v656 = vunpack.c.h.b16 %v288
        %v657 = vunpack.c.l.b16 %v289
        %v658 = vunpack.c.h.b16 %v289
        %v659 = vunpack.c.l.b16 %v290
        %v660 = vunpack.c.h.b16 %v290
        %v661 = vunpack.c.l.b16 %v291
        %v662 = vunpack.c.h.b16 %v291
        %v663 = vunpack.c.l.b16 %v292
        %v664 = vunpack.c.h.b16 %v292
        %v665 = vunpack.c.l.b16 %v293
        %v666 = vunpack.c.h.b16 %v293
        %v667 = vunpack.c.l.b16 %v294
        %v668 = vunpack.c.h.b16 %v294
        %v669 = vunpack.c.l.b16 %v295
        %v670 = vunpack.c.h.b16 %v295
        %v671 = vunpack.c.l.b16 %v296
        %v672 = vunpack.c.h.b16 %v296
        %v673 = vunpack.c.l.b16 %v297
        %v674 = vunpack.c.h.b16 %v297
        %v675 = vunpack.c.l.b16 %v298
        %v676 = vunpack.c.h.b16 %v298
        %v677 = vunpack.c.l.b16 %v299
        %v678 = vunpack.c.h.b16 %v299
        %v679 = vunpack.c.l.b16 %v300
        %v680 = vunpack.c.h.b16 %v300
        %v681 = vunpack.c.l.b16 %v301
        %v682 = vunpack.c.h.b16 %v301
        %v683 = vunpack.c.l.b16 %v302
        %v684 = vunpack.c.h.b16 %v302
        %v685 = vunpack.c.l.b16 %v303
        %v686 = vunpack.c.h.b16 %v303
        %v687 = vunpack.c.l.b16 %v304
        %v688 = vunpack.c.h.b16 %v304
        %v689 = vpack.c.b16 %v441, %v433
        %v690 = vpack.c.b16 %v442, %v434
        %v691 = vpack.c.b16 %v443, %v435
        %v692 = vpack.c.b16 %v444, %v436
        %v693 = vpack.c.b16 %v445, %v437
        %v694 = vpack.c.b16 %v446, %v438
        %v695 = vpack.c.b16 %v447, %v439
        %v696 = vpack.c.b16 %v448, %v440
        %v697 = vpack.c.b16 %v457, %v449
        %v698 = vpack.c.b16 %v458, %v450
        %v699 = vpack.c.b16 %v459, %v451
        %v700 = vpack.c.b16 %v460, %v452
        %v701 = vpack.c.b16 %v461, %v453
        %v702 = vpack.c.b16 %v462, %v454
        %v703 = vpack.c.b16 %v463, %v455
        %v704 = vpack.c.b16 %v464, %v456
        %v705 = vpack.c.b16 %v473, %v465
        %v706 = vpack.c.b16 %v474, %v466
        %v707 = vpack.c.b16 %v475, %v467
        %v708 = vpack.c.b16 %v476, %v468
        %v709 = vpack.c.b16 %v477, %v469
        %v710 = vpack.c.b16 %v478, %v470
        %v711 = vpack.c.b16 %v479, %v471
        %v712 = vpack.c.b16 %v480, %v472
        %v713 = vpack.c.b16 %v489, %v481
        %v714 = vpack.c.b16 %v490, %v482
        %v715 = vpack.c.b16 %v491, %v483
        %v716 = vpack.c.b16 %v492, %v484
        %v717 = vpack.c.b16 %v493, %v485
        %v718 = vpack.c.b16 %v494, %v486
        %v719 = vpack.c.b16 %v495, %v487
        %v720 = vpack.c.b16 %v496, %v488
        %v721 = vpack.c.b16 %v505, %v497
        %v722 = vpack.c.b16 %v506, %v498
        %v723 = vpack.c.b16 %v507, %v499
        %v724 = vpack.c.b16 %v508, %v500
        %v725 = vpack.c.b16 %v509, %v501
        %v726 = vpack.c.b16 %v510, %v502
        %v727 = vpack.c.b16 %v511, %v503
        %v728 = vpack.c.b16 %v512, %v504
        %v729 = vpack.c.b16 %v521, %v513
        %v730 = vpack.c.b16 %v522, %v514
        %v731 = vpack.c.b16 %v523, %v515
        %v732 = vpack.c.b16 %v524, %v516
        %v733 = vpack.c.b16 %v525, %v517
        %v734 = vpack.c.b16 %v526, %v518
        %v735 = vpack.c.b16 %v527, %v519
        %v736 = vpack.c.b16 %v528, %v520
        %v737 = vpack.c.b16 %v537, %v529
        %v738 = vpack.c.b16 %v538, %v530
        %v739 = vpack.c.b16 %v539, %v531
        %v740 = vpack.c.b16 %v540, %v532
        %v741 = vpack.c.b16 %v541, %v533
        %v742 = vpack.c.b16 %v542, %v534
        %v743 = vpack.c.b16 %v543, %v535
        %v744 = vpack.c.b16 %v544, %v536
        %v745 = vpack.c.b16 %v553, %v545
        %v746 = vpack.c.b16 %v554, %v546
        %v747 = vpack.c.b16 %v555, %v547
        %v748 = vpack.c.b16 %v556, %v548
        %v749 = vpack.c.b16 %v557, %v549
        %v750 = vpack.c.b16 %v558, %v550
        %v751 = vpack.c.b16 %v559, %v551
        %v752 = vpack.c.b16 %v560, %v552
        %v753 = vpack.c.b16 %v569, %v561
        %v754 = vpack.c.b16 %v570, %v562
        %v755 = vpack.c.b16 %v571, %v563
        %v756 = vpack.c.b16 %v572, %v564
        %v757 = vpack.c.b16 %v573, %v565
        %v758 = vpack.c.b16 %v574, %v566
        %v759 = vpack.c.b16 %v575, %v567
        %v760 = vpack.c.b16 %v576, %v568
        %v761 = vpack.c.b16 %v585, %v577
        %v762 = vpack.c.b16 %v586, %v578
        %v763 = vpack.c.b16 %v587, %v579
        %v764 = vpack.c.b16 %v588, %v580
        %v765 = vpack.c.b16 %v589, %v581
        %v766 = vpack.c.b16 %v590, %v582
        %v767 = vpack.c.b16 %v591, %v583
        %v768 = vpack.c.b16 %v592, %v584
        %v769 = vpack.c.b16 %v601, %v593
        %v770 = vpack.c.b16 %v602, %v594
        %v771 = vpack.c.b16 %v603, %v595
        %v772 = vpack.c.b16 %v604, %v596
        %v773 = vpack.c.b16 %v605, %v597
        %v774 = vpack.c.b16 %v606, %v598
        %v775 = vpack.c.b16 %v607, %v599
        %v776 = vpack.c.b16 %v608, %v600
        %v777 = vpack.c.b16 %v617, %v609
        %v778 = vpack.c.b16 %v618, %v610
        %v779 = vpack.c.b16 %v619, %v611
        %v780 = vpack.c.b16 %v620, %v612
        %v781 = vpack.c.b16 %v621, %v613
        %v782 = vpack.c.b16 %v622, %v614
        %v783 = vpack.c.b16 %v623, %v615
        %v784 = vpack.c.b16 %v624, %v616
        %v785 = vpack.c.b16 %v633, %v625
        %v786 = vpack.c.b16 %v634, %v626
        %v787 = vpack.c.b16 %v635, %v627
        %v788 = vpack.c.b16 %v636, %v628
        %v789 = vpack.c.b16 %v637, %v629
        %v790 = vpack.c.b16 %v638, %v630
        %v791 = vpack.c.b16 %v639, %v631
        %v792 = vpack.c.b16 %v640, %v632
        %v793 = vpack.c.b16 %v649, %v641
        %v794 = vpack.c.b16 %v650, %v642
        %v795 = vpack.c.b16 %v651, %v643
        %v796 = vpack.c.b16 %v652, %v644
        %v797 = vpack.c.b16 %v653, %v645
        %v798 = vpack.c.b16 %v654, %v646
        %v799 = vpack.c.b16 %v655, %v647
        %v800 = vpack.c.b16 %v656, %v648
        %v801 = vpack.c.b16 %v665, %v657
        %v802 = vpack.c.b16 %v666, %v658
        %v803 = vpack.c.b16 %v667, %v659
        %v804 = vpack.c.b16 %v668, %v660
        %v805 = vpack.c.b16 %v669, %v661
        %v806 = vpack.c.b16 %v670, %v662
        %v807 = vpack.c.b16 %v671, %v663
        %v808 = vpack.c.b16 %v672, %v664
        %v809 = vpack.c.b16 %v681, %v673
        %v810 = vpack.c.b16 %v682, %v674
        %v811 = vpack.c.b16 %v683, %v675
        %v812 = vpack.c.b16 %v684, %v676
        %v813 = vpack.c.b16 %v685, %v677
        %v814 = vpack.c.b16 %v686, %v678
        %v815 = vpack.c.b16 %v687, %v679
        %v816 = vpack.c.b16 %v688, %v680
        %945 = vmatprep.subr.bf16.mxu0 %v690
        %946 = vmatpush1.bf16.msra.mxu0 %v689
        %947 = vmatprep.subr.bf16.mxu0 %v698
        %948 = vmatpush1.bf16.msra.mxu0 %v697
        %949 = vmatprep.subr.bf16.mxu0 %v706
        %950 = vmatpush1.bf16.msra.mxu0 %v705
        %951 = vmatprep.subr.bf16.mxu0 %v714
        %952 = vmatpush1.bf16.msra.mxu0 %v713
        %953 = vmatprep.subr.bf16.mxu0 %v722
        %954 = vmatpush1.bf16.msra.mxu0 %v721
        %955 = vmatprep.subr.bf16.mxu0 %v730
        %956 = vmatpush1.bf16.msra.mxu0 %v729
        %957 = vmatprep.subr.bf16.mxu0 %v738
        %958 = vmatpush1.bf16.msra.mxu0 %v737
        %959 = vmatprep.subr.bf16.mxu0 %v746
        %960 = vmatpush1.bf16.msra.mxu0 %v745
        %961 = vmatprep.subr.bf16.mxu0 %v754
        %962 = vmatpush1.bf16.msra.mxu0 %v753
        %963 = vmatprep.subr.bf16.mxu0 %v762
        %964 = vmatpush1.bf16.msra.mxu0 %v761
        %965 = vmatprep.subr.bf16.mxu0 %v770
        %966 = vmatpush1.bf16.msra.mxu0 %v769
        %967 = vmatprep.subr.bf16.mxu0 %v778
        %968 = vmatpush1.bf16.msra.mxu0 %v777
        %969 = vmatprep.subr.bf16.mxu0 %v786
        %970 = vmatpush1.bf16.msra.mxu0 %v785
        %971 = vmatprep.subr.bf16.mxu0 %v794
        %972 = vmatpush1.bf16.msra.mxu0 %v793
        %973 = vmatprep.subr.bf16.mxu0 %v802
        %974 = vmatpush1.bf16.msra.mxu0 %v801
        %975 = vmatprep.subr.bf16.mxu0 %v810
        %976 = vmatpush1.bf16.msra.mxu0 %v809
        %977 = vmatprep.mubr.bf16.mxu0 %v176
        %978 = vmatmul.mubr.bf16.gmra.mrb[0].mxu0 %v175
        %v979 = vpop.f32.mrb[0].mxu0
        %v980 = vadd.f32 0.0, %v979
        %v981 = vpop.f32.mrb[0].mxu0
        %v982 = vadd.f32 0.0, %v981
        %v983 = vpop.f32.mrb[0].mxu0
        %v984 = vpop.f32.mrb[0].mxu0
        %985 = vdwg.mxu0
        %986 = vmatprep.subr.bf16.mxu0 %v692
        %987 = vmatpush1.bf16.msra.mxu0 %v691
        %988 = vmatprep.subr.bf16.mxu0 %v700
        %989 = vmatpush1.bf16.msra.mxu0 %v699
        %990 = vmatprep.subr.bf16.mxu0 %v708
        %991 = vmatpush1.bf16.msra.mxu0 %v707
        %992 = vmatprep.subr.bf16.mxu0 %v716
        %993 = vmatpush1.bf16.msra.mxu0 %v715
        %994 = vmatprep.subr.bf16.mxu0 %v724
        %995 = vmatpush1.bf16.msra.mxu0 %v723
        %996 = vmatprep.subr.bf16.mxu0 %v732
        %997 = vmatpush1.bf16.msra.mxu0 %v731
        %998 = vmatprep.subr.bf16.mxu0 %v740
        %999 = vmatpush1.bf16.msra.mxu0 %v739
        %1000 = vmatprep.subr.bf16.mxu0 %v748
        %1001 = vmatpush1.bf16.msra.mxu0 %v747
        %1002 = vmatprep.subr.bf16.mxu0 %v756
        %1003 = vmatpush1.bf16.msra.mxu0 %v755
        %1004 = vmatprep.subr.bf16.mxu0 %v764
        %1005 = vmatpush1.bf16.msra.mxu0 %v763
        %1006 = vmatprep.subr.bf16.mxu0 %v772
        %1007 = vmatpush1.bf16.msra.mxu0 %v771
        %1008 = vmatprep.subr.bf16.mxu0 %v780
        %1009 = vmatpush1.bf16.msra.mxu0 %v779
        %1010 = vmatprep.subr.bf16.mxu0 %v788
        %1011 = vmatpush1.bf16.msra.mxu0 %v787
        %1012 = vmatprep.subr.bf16.mxu0 %v796
        %1013 = vmatpush1.bf16.msra.mxu0 %v795
        %1014 = vmatprep.subr.bf16.mxu0 %v804
        %1015 = vmatpush1.bf16.msra.mxu0 %v803
        %1016 = vmatprep.subr.bf16.mxu0 %v812
        %1017 = vmatpush1.bf16.msra.mxu0 %v811
        %1018 = vmatprep.mubr.bf16.mxu0 %v176
        %1019 = vmatmul.mubr.bf16.gmra.mrb[0].mxu0 %v175
        %v1020 = vpop.f32.mrb[0].mxu0
        %v1021 = vadd.f32 0.0, %v1020
        %v1022 = vpop.f32.mrb[0].mxu0
        %v1023 = vadd.f32 0.0, %v1022
        %v1024 = vpop.f32.mrb[0].mxu0
        %v1025 = vpop.f32.mrb[0].mxu0
        %1026 = vdwg.mxu0
        %1027 = vmatprep.subr.bf16.mxu0 %v694
        %1028 = vmatpush1.bf16.msra.mxu0 %v693
        %1029 = vmatprep.subr.bf16.mxu0 %v702
        %1030 = vmatpush1.bf16.msra.mxu0 %v701
        %1031 = vmatprep.subr.bf16.mxu0 %v710
        %1032 = vmatpush1.bf16.msra.mxu0 %v709
        %1033 = vmatprep.subr.bf16.mxu0 %v718
        %1034 = vmatpush1.bf16.msra.mxu0 %v717
        %1035 = vmatprep.subr.bf16.mxu0 %v726
        %1036 = vmatpush1.bf16.msra.mxu0 %v725
        %1037 = vmatprep.subr.bf16.mxu0 %v734
        %1038 = vmatpush1.bf16.msra.mxu0 %v733
        %1039 = vmatprep.subr.bf16.mxu0 %v742
        %1040 = vmatpush1.bf16.msra.mxu0 %v741
        %1041 = vmatprep.subr.bf16.mxu0 %v750
        %1042 = vmatpush1.bf16.msra.mxu0 %v749
        %1043 = vmatprep.subr.bf16.mxu0 %v758
        %1044 = vmatpush1.bf16.msra.mxu0 %v757
        %1045 = vmatprep.subr.bf16.mxu0 %v766
        %1046 = vmatpush1.bf16.msra.mxu0 %v765
        %1047 = vmatprep.subr.bf16.mxu0 %v774
        %1048 = vmatpush1.bf16.msra.mxu0 %v773
        %1049 = vmatprep.subr.bf16.mxu0 %v782
        %1050 = vmatpush1.bf16.msra.mxu0 %v781
        %1051 = vmatprep.subr.bf16.mxu0 %v790
        %1052 = vmatpush1.bf16.msra.mxu0 %v789
        %1053 = vmatprep.subr.bf16.mxu0 %v798
        %1054 = vmatpush1.bf16.msra.mxu0 %v797
        %1055 = vmatprep.subr.bf16.mxu0 %v806
        %1056 = vmatpush1.bf16.msra.mxu0 %v805
        %1057 = vmatprep.subr.bf16.mxu0 %v814
        %1058 = vmatpush1.bf16.msra.mxu0 %v813
        %1059 = vmatprep.mubr.bf16.mxu0 %v176
        %1060 = vmatmul.mubr.bf16.gmra.mrb[0].mxu0 %v175
        %v1061 = vpop.f32.mrb[0].mxu0
        %v1062 = vadd.f32 0.0, %v1061
        %v1063 = vpop.f32.mrb[0].mxu0
        %v1064 = vadd.f32 0.0, %v1063
        %v1065 = vpop.f32.mrb[0].mxu0
        %v1066 = vpop.f32.mrb[0].mxu0
        %1067 = vdwg.mxu0
        %1068 = vmatprep.subr.bf16.mxu0 %v696
        %1069 = vmatpush1.bf16.msra.mxu0 %v695
        %1070 = vmatprep.subr.bf16.mxu0 %v704
        %1071 = vmatpush1.bf16.msra.mxu0 %v703
        %1072 = vmatprep.subr.bf16.mxu0 %v712
        %1073 = vmatpush1.bf16.msra.mxu0 %v711
        %1074 = vmatprep.subr.bf16.mxu0 %v720
        %1075 = vmatpush1.bf16.msra.mxu0 %v719
        %1076 = vmatprep.subr.bf16.mxu0 %v728
        %1077 = vmatpush1.bf16.msra.mxu0 %v727
        %1078 = vmatprep.subr.bf16.mxu0 %v736
        %1079 = vmatpush1.bf16.msra.mxu0 %v735
        %1080 = vmatprep.subr.bf16.mxu0 %v744
        %1081 = vmatpush1.bf16.msra.mxu0 %v743
        %1082 = vmatprep.subr.bf16.mxu0 %v752
        %1083 = vmatpush1.bf16.msra.mxu0 %v751
        %1084 = vmatprep.subr.bf16.mxu0 %v760
        %1085 = vmatpush1.bf16.msra.mxu0 %v759
        %1086 = vmatprep.subr.bf16.mxu0 %v768
        %1087 = vmatpush1.bf16.msra.mxu0 %v767
        %1088 = vmatprep.subr.bf16.mxu0 %v776
        %1089 = vmatpush1.bf16.msra.mxu0 %v775
        %1090 = vmatprep.subr.bf16.mxu0 %v784
        %1091 = vmatpush1.bf16.msra.mxu0 %v783
        %1092 = vmatprep.subr.bf16.mxu0 %v792
        %1093 = vmatpush1.bf16.msra.mxu0 %v791
        %1094 = vmatprep.subr.bf16.mxu0 %v800
        %1095 = vmatpush1.bf16.msra.mxu0 %v799
        %1096 = vmatprep.subr.bf16.mxu0 %v808
        %1097 = vmatpush1.bf16.msra.mxu0 %v807
        %1098 = vmatprep.subr.bf16.mxu0 %v816
        %1099 = vmatpush1.bf16.msra.mxu0 %v815
        %1100 = vmatprep.mubr.bf16.mxu0 %v176
        %1101 = vmatmul.mubr.bf16.gmra.mrb[0].mxu0 %v175
        %v1102 = vpop.f32.mrb[0].mxu0
        %v1103 = vadd.f32 0.0, %v1102
        %v1104 = vpop.f32.mrb[0].mxu0
        %v1105 = vadd.f32 0.0, %v1104
        %v1106 = vpop.f32.mrb[0].mxu0
        %v1107 = vpop.f32.mrb[0].mxu0
        %1108 = vdwg.mxu0
        %v1109 = vadd.f32 %v167, %v980
        %v1110 = vadd.f32 %v168, %v982
        %v1111 = vadd.f32 %v169, %v1021
        %v1112 = vadd.f32 %v170, %v1023
        %v1113 = vadd.f32 %v171, %v1062
        %v1114 = vadd.f32 %v172, %v1064
        %v1115 = vadd.f32 %v173, %v1103
        %v1116 = vadd.f32 %v174, %v1105
        %v1117 = vxor.u32 %v1109, 2147483648
        %v1118 = vxor.u32 %v1110, 2147483648
        %v1119 = vmul.f32 %v1117, 1.442695
        %v1120 = vpow.pop %v1119
        %v1121 = vmul.f32 %v1118, 1.442695
        %v1122 = vpow.pop %v1121
        %v1123 = vadd.f32 %v1120, 1.0
        %v1124 = vadd.f32 %v1122, 1.0
        %v1125 = vrcp.pop %v1123
        %v1126 = vmul.f32 1.0, %v1125
        %v1127 = vrcp.pop %v1124
        %v1128 = vmul.f32 1.0, %v1127
        %v1129 = vxor.u32 %v1111, 2147483648
        %v1130 = vxor.u32 %v1112, 2147483648
        %v1131 = vmul.f32 %v1129, 1.442695
        %v1132 = vpow.pop %v1131
        %v1133 = vmul.f32 %v1130, 1.442695
        %v1134 = vpow.pop %v1133
        %v1135 = vadd.f32 %v1132, 1.0
        %v1136 = vadd.f32 %v1134, 1.0
        %v1137 = vrcp.pop %v1135
        %v1138 = vmul.f32 1.0, %v1137
        %v1139 = vrcp.pop %v1136
        %v1140 = vmul.f32 1.0, %v1139
        %v1141 = vtanh.pop %v1113
        %v1142 = vtanh.pop %v1114
        %v1143 = vxor.u32 %v1115, 2147483648
        %v1144 = vxor.u32 %v1116, 2147483648
        %v1145 = vmul.f32 %v1143, 1.442695
        %v1146 = vpow.pop %v1145
        %v1147 = vmul.f32 %v1144, 1.442695
        %v1148 = vpow.pop %v1147
        %v1149 = vadd.f32 %v1146, 1.0
        %v1150 = vadd.f32 %v1148, 1.0
        %v1151 = vrcp.pop %v1149
        %v1152 = vmul.f32 1.0, %v1151
        %v1153 = vrcp.pop %v1150
        %v1154 = vmul.f32 1.0, %v1153
        %v1155 = vmul.f32 %v1138, %v165
        %v1156 = vmul.f32 %v1140, %v166
        %v1157 = vmul.f32 %v1126, %v1141
        %v1158 = vmul.f32 %v1128, %v1142
        %v1159 = vadd.f32 %v1155, %v1157
        %v1160 = vadd.f32 %v1156, %v1158
        %v1161 = vtanh.pop %v1159
        %v1162 = vtanh.pop %v1160
        %v1163 = vmul.f32 %v1152, %v1161
        %v1164 = vmul.f32 %v1154, %v1162
        %1165 = vst [vmem:[#allocation2] sm:$0xff] %v1163
        %1166 = vst [vmem:[#allocation2 + $0x8] sm:$0xff] %v1164
        %1167 = vst [vmem:[#allocation3] sm:$0xff] %v1159
        %1168 = vst [vmem:[#allocation3 + $0x8] sm:$0xff] %v1160
        %p1169 = scmp.eq.s32.totalorder %s16, 3
        // Predicated region
        $region33: #{fc_lstm_forward.4} parent=27 // pred_check
          %p1170 = pneg %p1169
        $region34: #{fc_lstm_forward.4} parent=27 // pred_check_branch
          %1172 = sbr.rel (%p1170) target = $region36
        $region35: #{fc_lstm_forward.4} parent=27 // pred_region
          %1173 = vst [vmem:[%s2] sm:$0xff] %v1163
          %1174 = vst [vmem:[%s2 + $0x8] sm:$0xff] %v1164
          %1175 = vst [vmem:[#allocation4] sm:$0xff] %v1159
          %1176 = vst [vmem:[#allocation4 + $0x8] sm:$0xff] %v1160
        $region36: #{fc_lstm_forward.4} parent=27 // pred_fallthru
          _
        // Predicated region
        $region37: #{fc_lstm_forward.4} parent=27 // pred_check
          %p1177 = pneg %p76
        $region38: #{fc_lstm_forward.4} parent=27 // pred_check_branch
          %1179 = sbr.rel (%p1177) target = $region40
        $region39: #{fc_lstm_forward.4} parent=27 // pred_region
          _
        $region40: #{fc_lstm_forward.4} parent=27 // pred_fallthru
          _
        // Predicated region
        $region41: #{fc_lstm_forward.4} parent=27 // pred_check
          %p1180 = pneg %p97
        $region42: #{fc_lstm_forward.4} parent=27 // pred_check_branch
          %1182 = sbr.rel (%p1180) target = $region44
        $region43: #{fc_lstm_forward.4} parent=27 // pred_region
          %s1184 = ssub.s32 256, 256
          %1185 = vsyncadd [#allocation5], %s1184
          %s1187 = sshll.u32 [#allocation4], 4
          %s1188 = int_to_ptr.vmem [resolvable:$true] %s1187
          %1190 = dma.vmem_to_hbm [thread:$0]  %s1188, 256, %s3, [#allocation5]
        $region44: #{fc_lstm_forward.4} parent=27 // pred_fallthru
          _
        // Predicated region
        $region45: #{fc_lstm_forward.4} parent=27 // pred_check
          %p1191 = pneg %p76
        $region46: #{fc_lstm_forward.4} parent=27 // pred_check_branch
          %1193 = sbr.rel (%p1191) target = $region48
        $region47: #{fc_lstm_forward.4} parent=27 // pred_region
          _
        $region48: #{fc_lstm_forward.4} parent=27 // pred_fallthru
          _
        // Predicated region
        $region49: #{fc_lstm_forward.4} parent=27 // pred_check
          %p1194 = pneg %p97
        $region50: #{fc_lstm_forward.4} parent=27 // pred_check_branch
          %1196 = sbr.rel (%p1194) target = $region52
        $region51: #{fc_lstm_forward.4} parent=27 // pred_region
          %1197 = dma.done [#allocation5], 256
        $region52: #{fc_lstm_forward.4} parent=27 // pred_fallthru
          _
      $region28: #{fc_lstm_forward.4} parent=5 // pred_fallthru
        _
      %p1198 = scmp.le.s32.totalorder 2, %s11
      // Predicated region
      $region53: #{fc_lstm_forward.4} parent=5 // pred_check
        %p1199 = pneg %p1198
      $region54: #{fc_lstm_forward.4} parent=5 // pred_check_branch
        %1201 = sbr.rel (%p1199) target = $region56
      $region55: #{fc_lstm_forward.4} parent=5 // pred_region
        %s1202 = ssub.s32 %s11, 2
      $region56: #{fc_lstm_forward.4} parent=5 // pred_fallthru
        _
    $region6: #{fc_lstm_forward.4} parent=1 // loop_footer
      %s15 = sadd.s32 1, %s11
    $region7: #{fc_lstm_forward.4} parent=1 // loop_footer_branch
      %10 = sbr.rel target = $region3
    $region8: #{fc_lstm_forward.4} parent=1 // loop_exit
      _
    %1203 = vsyncpa [#allocation5], 1
    %s1204 = scalar_lea.sflag [#allocation5], 1
    %1205 = vsyncpa %s1204, 1

// kernel: fc_lstm_forward.3
$region0: #{fc_lstm_forward.3}
  #allocation0 [shape = 'u32[]', space=smem, size = 0x4, offset = 0x4, fixed_abs, tag = 'smem constant byte address 0x4 - core index']
  #allocation1 [shape = 'u32[144,128]{1,0:T(1,128)}', space=vmem, size = 0x12000, scoped, tag = 'internal scratch']
  %s0 = inlined_call_operand.vmem [shape: f32[32,256], index: 0, kind: input, shape index: {}]
  %s1 = inlined_call_operand.hbm [shape: bf16[256,1024], index: 1, kind: input, shape index: {}]
  %s2 = inlined_call_operand.vmem [shape: f32[1,1024], index: 2, kind: input, shape index: {}]
  %s3 = inlined_call_operand.vmem [shape: f32[32,1024], index: 3, kind: output, shape index: {}]
  %s4 = sld [smem:[#allocation0]]
  $region26: #{fc_lstm_forward.3} parent=0
    _
  %s6 = ssub.s32 1, %s4
  %s7 = scalar_select 0, %s6, %s4
  $region1: #{fc_lstm_forward.3} parent=0
    #allocation2 [shape = 'u8[524288]{0}', space=vmem, size = 0x80000, scoped, tag = 'input window, operand 1, single buffered']
    #allocation3 [shape = 's32[1]{0}', space=sflag, size = 0x4, scoped, tag = 'scoped memory for fc_lstm_forward.3']
    %8 = vsyncpa [#allocation3], 0
    // Predicated region
    $region2: #{fc_lstm_forward.3} parent=1 // pred_check
      _
    $region3: #{fc_lstm_forward.3} parent=1 // pred_check_branch
      %10 = sbr.rel (0) target = $region5
    $region4: #{fc_lstm_forward.3} parent=1 // pred_region
      _
    $region5: #{fc_lstm_forward.3} parent=1 // pred_fallthru
      _
    // Predicated region
    $region6: #{fc_lstm_forward.3} parent=1 // pred_check
      _
    $region7: #{fc_lstm_forward.3} parent=1 // pred_check_branch
      %12 = sbr.rel (0) target = $region9
    $region8: #{fc_lstm_forward.3} parent=1 // pred_region
      %s14 = ssub.s32 16384, 16384
      %15 = vsyncadd [#allocation3], %s14
      %s16 = sshll.u32 [#allocation2], 4
      %s17 = int_to_ptr.vmem [resolvable:$true] %s16
      %22 = dma.hbm_to_vmem [thread:$0]  %s1, 16384, %s17, [#allocation3], 512, 512, 32
    $region9: #{fc_lstm_forward.3} parent=1 // pred_fallthru
      _
    // Predicated region
    $region10: #{fc_lstm_forward.3} parent=1 // pred_check
      _
    $region11: #{fc_lstm_forward.3} parent=1 // pred_check_branch
      %24 = sbr.rel (0) target = $region13
    $region12: #{fc_lstm_forward.3} parent=1 // pred_region
      _
    $region13: #{fc_lstm_forward.3} parent=1 // pred_fallthru
      _
    // Predicated region
    $region14: #{fc_lstm_forward.3} parent=1 // pred_check
      _
    $region15: #{fc_lstm_forward.3} parent=1 // pred_check_branch
      %26 = sbr.rel (0) target = $region17
    $region16: #{fc_lstm_forward.3} parent=1 // pred_region
      %27 = dma.done [#allocation3], 16384
    $region17: #{fc_lstm_forward.3} parent=1 // pred_fallthru
      _
    %v28 = vld [vmem:[%s0] sm:$0xff]
    %v29 = vld [vmem:[%s0 + $0x8] sm:$0xff]
    %v30 = vld [vmem:[%s0 + $0x10] sm:$0xff]
    %v31 = vld [vmem:[%s0 + $0x18] sm:$0xff]
    %v32 = vld [vmem:[%s0 + $0x20] sm:$0xff]
    %v33 = vld [vmem:[%s0 + $0x28] sm:$0xff]
    %v34 = vld [vmem:[%s0 + $0x30] sm:$0xff]
    %v35 = vld [vmem:[%s0 + $0x38] sm:$0xff]
    %v36 = vpack.c.bf16 %v30, %v28
    %v37 = vpack.c.bf16 %v31, %v29
    %v38 = vpack.c.bf16 %v34, %v32
    %v39 = vpack.c.bf16 %v35, %v33
    %v40 = vld [vmem:[#allocation2] sm:$0xff]
    %v41 = vld [vmem:[#allocation2 + $0x8] sm:$0xff]
    %v42 = vld [vmem:[#allocation2 + $0x10] sm:$0xff]
    %v43 = vld [vmem:[#allocation2 + $0x18] sm:$0xff]
    %v44 = vld [vmem:[#allocation2 + $0x20] sm:$0xff]
    %v45 = vld [vmem:[#allocation2 + $0x28] sm:$0xff]
    %v46 = vld [vmem:[#allocation2 + $0x30] sm:$0xff]
    %v47 = vld [vmem:[#allocation2 + $0x38] sm:$0xff]
    %v48 = vld [vmem:[#allocation2 + $0x40] sm:$0xff]
    %v49 = vld [vmem:[#allocation2 + $0x48] sm:$0xff]
    %v50 = vld [vmem:[#allocation2 + $0x50] sm:$0xff]
    %v51 = vld [vmem:[#allocation2 + $0x58] sm:$0xff]
    %v52 = vld [vmem:[#allocation2 + $0x60] sm:$0xff]
    %v53 = vld [vmem:[#allocation2 + $0x68] sm:$0xff]
    %v54 = vld [vmem:[#allocation2 + $0x70] sm:$0xff]
    %v55 = vld [vmem:[#allocation2 + $0x78] sm:$0xff]
    %v56 = vld [vmem:[#allocation2 + $0x80] sm:$0xff]
    %v57 = vld [vmem:[#allocation2 + $0x88] sm:$0xff]
    %v58 = vld [vmem:[#allocation2 + $0x90] sm:$0xff]
    %v59 = vld [vmem:[#allocation2 + $0x98] sm:$0xff]
    %v60 = vld [vmem:[#allocation2 + $0xa0] sm:$0xff]
    %v61 = vld [vmem:[#allocation2 + $0xa8] sm:$0xff]
    %v62 = vld [vmem:[#allocation2 + $0xb0] sm:$0xff]
    %v63 = vld [vmem:[#allocation2 + $0xb8] sm:$0xff]
    %v64 = vld [vmem:[#allocation2 + $0xc0] sm:$0xff]
    %v65 = vld [vmem:[#allocation2 + $0xc8] sm:$0xff]
    %v66 = vld [vmem:[#allocation2 + $0xd0] sm:$0xff]
    %v67 = vld [vmem:[#allocation2 + $0xd8] sm:$0xff]
    %v68 = vld [vmem:[#allocation2 + $0xe0] sm:$0xff]
    %v69 = vld [vmem:[#allocation2 + $0xe8] sm:$0xff]
    %v70 = vld [vmem:[#allocation2 + $0xf0] sm:$0xff]
    %v71 = vld [vmem:[#allocation2 + $0xf8] sm:$0xff]
    %v72 = vld [vmem:[#allocation2 + $0x100] sm:$0xff]
    %v73 = vld [vmem:[#allocation2 + $0x108] sm:$0xff]
    %v74 = vld [vmem:[#allocation2 + $0x110] sm:$0xff]
    %v75 = vld [vmem:[#allocation2 + $0x118] sm:$0xff]
    %v76 = vld [vmem:[#allocation2 + $0x120] sm:$0xff]
    %v77 = vld [vmem:[#allocation2 + $0x128] sm:$0xff]
    %v78 = vld [vmem:[#allocation2 + $0x130] sm:$0xff]
    %v79 = vld [vmem:[#allocation2 + $0x138] sm:$0xff]
    %v80 = vld [vmem:[#allocation2 + $0x140] sm:$0xff]
    %v81 = vld [vmem:[#allocation2 + $0x148] sm:$0xff]
    %v82 = vld [vmem:[#allocation2 + $0x150] sm:$0xff]
    %v83 = vld [vmem:[#allocation2 + $0x158] sm:$0xff]
    %v84 = vld [vmem:[#allocation2 + $0x160] sm:$0xff]
    %v85 = vld [vmem:[#allocation2 + $0x168] sm:$0xff]
    %v86 = vld [vmem:[#allocation2 + $0x170] sm:$0xff]
    %v87 = vld [vmem:[#allocation2 + $0x178] sm:$0xff]
    %v88 = vld [vmem:[#allocation2 + $0x180] sm:$0xff]
    %v89 = vld [vmem:[#allocation2 + $0x188] sm:$0xff]
    %v90 = vld [vmem:[#allocation2 + $0x190] sm:$0xff]
    %v91 = vld [vmem:[#allocation2 + $0x198] sm:$0xff]
    %v92 = vld [vmem:[#allocation2 + $0x1a0] sm:$0xff]
    %v93 = vld [vmem:[#allocation2 + $0x1a8] sm:$0xff]
    %v94 = vld [vmem:[#allocation2 + $0x1b0] sm:$0xff]
    %v95 = vld [vmem:[#allocation2 + $0x1b8] sm:$0xff]
    %v96 = vld [vmem:[#allocation2 + $0x1c0] sm:$0xff]
    %v97 = vld [vmem:[#allocation2 + $0x1c8] sm:$0xff]
    %v98 = vld [vmem:[#allocation2 + $0x1d0] sm:$0xff]
    %v99 = vld [vmem:[#allocation2 + $0x1d8] sm:$0xff]
    %v100 = vld [vmem:[#allocation2 + $0x1e0] sm:$0xff]
    %v101 = vld [vmem:[#allocation2 + $0x1e8] sm:$0xff]
    %v102 = vld [vmem:[#allocation2 + $0x1f0] sm:$0xff]
    %v103 = vld [vmem:[#allocation2 + $0x1f8] sm:$0xff]
    %v104 = vld [vmem:[#allocation2 + $0x200] sm:$0xff]
    %v105 = vld [vmem:[#allocation2 + $0x208] sm:$0xff]
    %v106 = vld [vmem:[#allocation2 + $0x210] sm:$0xff]
    %v107 = vld [vmem:[#allocation2 + $0x218] sm:$0xff]
    %v108 = vld [vmem:[#allocation2 + $0x220] sm:$0xff]
    %v109 = vld [vmem:[#allocation2 + $0x228] sm:$0xff]
    %v110 = vld [vmem:[#allocation2 + $0x230] sm:$0xff]
    %v111 = vld [vmem:[#allocation2 + $0x238] sm:$0xff]
    %v112 = vld [vmem:[#allocation2 + $0x240] sm:$0xff]
    %v113 = vld [vmem:[#allocation2 + $0x248] sm:$0xff]
    %v114 = vld [vmem:[#allocation2 + $0x250] sm:$0xff]
    %v115 = vld [vmem:[#allocation2 + $0x258] sm:$0xff]
    %v116 = vld [vmem:[#allocation2 + $0x260] sm:$0xff]
    %v117 = vld [vmem:[#allocation2 + $0x268] sm:$0xff]
    %v118 = vld [vmem:[#allocation2 + $0x270] sm:$0xff]
    %v119 = vld [vmem:[#allocation2 + $0x278] sm:$0xff]
    %v120 = vld [vmem:[#allocation2 + $0x280] sm:$0xff]
    %v121 = vld [vmem:[#allocation2 + $0x288] sm:$0xff]
    %v122 = vld [vmem:[#allocation2 + $0x290] sm:$0xff]
    %v123 = vld [vmem:[#allocation2 + $0x298] sm:$0xff]
    %v124 = vld [vmem:[#allocation2 + $0x2a0] sm:$0xff]
    %v125 = vld [vmem:[#allocation2 + $0x2a8] sm:$0xff]
    %v126 = vld [vmem:[#allocation2 + $0x2b0] sm:$0xff]
    %v127 = vld [vmem:[#allocation2 + $0x2b8] sm:$0xff]
    %v128 = vld [vmem:[#allocation2 + $0x2c0] sm:$0xff]
    %v129 = vld [vmem:[#allocation2 + $0x2c8] sm:$0xff]
    %v130 = vld [vmem:[#allocation2 + $0x2d0] sm:$0xff]
    %v131 = vld [vmem:[#allocation2 + $0x2d8] sm:$0xff]
    %v132 = vld [vmem:[#allocation2 + $0x2e0] sm:$0xff]
    %v133 = vld [vmem:[#allocation2 + $0x2e8] sm:$0xff]
    %v134 = vld [vmem:[#allocation2 + $0x2f0] sm:$0xff]
    %v135 = vld [vmem:[#allocation2 + $0x2f8] sm:$0xff]
    %v136 = vld [vmem:[#allocation2 + $0x300] sm:$0xff]
    %v137 = vld [vmem:[#allocation2 + $0x308] sm:$0xff]
    %v138 = vld [vmem:[#allocation2 + $0x310] sm:$0xff]
    %v139 = vld [vmem:[#allocation2 + $0x318] sm:$0xff]
    %v140 = vld [vmem:[#allocation2 + $0x320] sm:$0xff]
    %v141 = vld [vmem:[#allocation2 + $0x328] sm:$0xff]
    %v142 = vld [vmem:[#allocation2 + $0x330] sm:$0xff]
    %v143 = vld [vmem:[#allocation2 + $0x338] sm:$0xff]
    %v144 = vld [vmem:[#allocation2 + $0x340] sm:$0xff]
    %v145 = vld [vmem:[#allocation2 + $0x348] sm:$0xff]
    %v146 = vld [vmem:[#allocation2 + $0x350] sm:$0xff]
    %v147 = vld [vmem:[#allocation2 + $0x358] sm:$0xff]
    %v148 = vld [vmem:[#allocation2 + $0x360] sm:$0xff]
    %v149 = vld [vmem:[#allocation2 + $0x368] sm:$0xff]
    %v150 = vld [vmem:[#allocation2 + $0x370] sm:$0xff]
    %v151 = vld [vmem:[#allocation2 + $0x378] sm:$0xff]
    %v152 = vld [vmem:[#allocation2 + $0x380] sm:$0xff]
    %v153 = vld [vmem:[#allocation2 + $0x388] sm:$0xff]
    %v154 = vld [vmem:[#allocation2 + $0x390] sm:$0xff]
    %v155 = vld [vmem:[#allocation2 + $0x398] sm:$0xff]
    %v156 = vld [vmem:[#allocation2 + $0x3a0] sm:$0xff]
    %v157 = vld [vmem:[#allocation2 + $0x3a8] sm:$0xff]
    %v158 = vld [vmem:[#allocation2 + $0x3b0] sm:$0xff]
    %v159 = vld [vmem:[#allocation2 + $0x3b8] sm:$0xff]
    %v160 = vld [vmem:[#allocation2 + $0x3c0] sm:$0xff]
    %v161 = vld [vmem:[#allocation2 + $0x3c8] sm:$0xff]
    %v162 = vld [vmem:[#allocation2 + $0x3d0] sm:$0xff]
    %v163 = vld [vmem:[#allocation2 + $0x3d8] sm:$0xff]
    %v164 = vld [vmem:[#allocation2 + $0x3e0] sm:$0xff]
    %v165 = vld [vmem:[#allocation2 + $0x3e8] sm:$0xff]
    %v166 = vld [vmem:[#allocation2 + $0x3f0] sm:$0xff]
    %v167 = vld [vmem:[#allocation2 + $0x3f8] sm:$0xff]
    %v168 = vld [vmem:[%s2] sm:$0xff]
    %v170 = vlaneseq
    %v171 = vshrl.u32 %v170, 7
    %v172 = vsub.s32 0, %v171
    %v173 = vrot.slane %v168, %v172
    %v174 = vlaneseq
    %v175 = vshrl.u32 %v174, 7
    %v176 = vsub.s32 1, %v175
    %v177 = vrot.slane %v168, %v176
    %v178 = vlaneseq
    %v179 = vshrl.u32 %v178, 7
    %v180 = vsub.s32 2, %v179
    %v181 = vrot.slane %v168, %v180
    %v182 = vlaneseq
    %v183 = vshrl.u32 %v182, 7
    %v184 = vsub.s32 3, %v183
    %v185 = vrot.slane %v168, %v184
    %v186 = vlaneseq
    %v187 = vshrl.u32 %v186, 7
    %v188 = vsub.s32 4, %v187
    %v189 = vrot.slane %v168, %v188
    %v190 = vlaneseq
    %v191 = vshrl.u32 %v190, 7
    %v192 = vsub.s32 5, %v191
    %v193 = vrot.slane %v168, %v192
    %v194 = vlaneseq
    %v195 = vshrl.u32 %v194, 7
    %v196 = vsub.s32 6, %v195
    %v197 = vrot.slane %v168, %v196
    %v198 = vlaneseq
    %v199 = vshrl.u32 %v198, 7
    %v200 = vsub.s32 7, %v199
    %v201 = vrot.slane %v168, %v200
    %v338 = vunpack.c.l.b16 %v40
    %v339 = vunpack.c.h.b16 %v40
    %v340 = vunpack.c.l.b16 %v41
    %v341 = vunpack.c.h.b16 %v41
    %v342 = vunpack.c.l.b16 %v42
    %v343 = vunpack.c.h.b16 %v42
    %v344 = vunpack.c.l.b16 %v43
    %v345 = vunpack.c.h.b16 %v43
    %v346 = vunpack.c.l.b16 %v44
    %v347 = vunpack.c.h.b16 %v44
    %v348 = vunpack.c.l.b16 %v45
    %v349 = vunpack.c.h.b16 %v45
    %v350 = vunpack.c.l.b16 %v46
    %v351 = vunpack.c.h.b16 %v46
    %v352 = vunpack.c.l.b16 %v47
    %v353 = vunpack.c.h.b16 %v47
    %v354 = vunpack.c.l.b16 %v48
    %v355 = vunpack.c.h.b16 %v48
    %v356 = vunpack.c.l.b16 %v49
    %v357 = vunpack.c.h.b16 %v49
    %v358 = vunpack.c.l.b16 %v50
    %v359 = vunpack.c.h.b16 %v50
    %v360 = vunpack.c.l.b16 %v51
    %v361 = vunpack.c.h.b16 %v51
    %v362 = vunpack.c.l.b16 %v52
    %v363 = vunpack.c.h.b16 %v52
    %v364 = vunpack.c.l.b16 %v53
    %v365 = vunpack.c.h.b16 %v53
    %v366 = vunpack.c.l.b16 %v54
    %v367 = vunpack.c.h.b16 %v54
    %v368 = vunpack.c.l.b16 %v55
    %v369 = vunpack.c.h.b16 %v55
    %v370 = vunpack.c.l.b16 %v56
    %v371 = vunpack.c.h.b16 %v56
    %v372 = vunpack.c.l.b16 %v57
    %v373 = vunpack.c.h.b16 %v57
    %v374 = vunpack.c.l.b16 %v58
    %v375 = vunpack.c.h.b16 %v58
    %v376 = vunpack.c.l.b16 %v59
    %v377 = vunpack.c.h.b16 %v59
    %v378 = vunpack.c.l.b16 %v60
    %v379 = vunpack.c.h.b16 %v60
    %v380 = vunpack.c.l.b16 %v61
    %v381 = vunpack.c.h.b16 %v61
    %v382 = vunpack.c.l.b16 %v62
    %v383 = vunpack.c.h.b16 %v62
    %v384 = vunpack.c.l.b16 %v63
    %v385 = vunpack.c.h.b16 %v63
    %v386 = vunpack.c.l.b16 %v64
    %v387 = vunpack.c.h.b16 %v64
    %v388 = vunpack.c.l.b16 %v65
    %v389 = vunpack.c.h.b16 %v65
    %v390 = vunpack.c.l.b16 %v66
    %v391 = vunpack.c.h.b16 %v66
    %v392 = vunpack.c.l.b16 %v67
    %v393 = vunpack.c.h.b16 %v67
    %v394 = vunpack.c.l.b16 %v68
    %v395 = vunpack.c.h.b16 %v68
    %v396 = vunpack.c.l.b16 %v69
    %v397 = vunpack.c.h.b16 %v69
    %v398 = vunpack.c.l.b16 %v70
    %v399 = vunpack.c.h.b16 %v70
    %v400 = vunpack.c.l.b16 %v71
    %v401 = vunpack.c.h.b16 %v71
    %v402 = vunpack.c.l.b16 %v72
    %v403 = vunpack.c.h.b16 %v72
    %v404 = vunpack.c.l.b16 %v73
    %v405 = vunpack.c.h.b16 %v73
    %v406 = vunpack.c.l.b16 %v74
    %v407 = vunpack.c.h.b16 %v74
    %v408 = vunpack.c.l.b16 %v75
    %v409 = vunpack.c.h.b16 %v75
    %v410 = vunpack.c.l.b16 %v76
    %v411 = vunpack.c.h.b16 %v76
    %v412 = vunpack.c.l.b16 %v77
    %v413 = vunpack.c.h.b16 %v77
    %v414 = vunpack.c.l.b16 %v78
    %v415 = vunpack.c.h.b16 %v78
    %v416 = vunpack.c.l.b16 %v79
    %v417 = vunpack.c.h.b16 %v79
    %v418 = vunpack.c.l.b16 %v80
    %v419 = vunpack.c.h.b16 %v80
    %v420 = vunpack.c.l.b16 %v81
    %v421 = vunpack.c.h.b16 %v81
    %v422 = vunpack.c.l.b16 %v82
    %v423 = vunpack.c.h.b16 %v82
    %v424 = vunpack.c.l.b16 %v83
    %v425 = vunpack.c.h.b16 %v83
    %v426 = vunpack.c.l.b16 %v84
    %v427 = vunpack.c.h.b16 %v84
    %v428 = vunpack.c.l.b16 %v85
    %v429 = vunpack.c.h.b16 %v85
    %v430 = vunpack.c.l.b16 %v86
    %v431 = vunpack.c.h.b16 %v86
    %v432 = vunpack.c.l.b16 %v87
    %v433 = vunpack.c.h.b16 %v87
    %v434 = vunpack.c.l.b16 %v88
    %v435 = vunpack.c.h.b16 %v88
    %v436 = vunpack.c.l.b16 %v89
    %v437 = vunpack.c.h.b16 %v89
    %v438 = vunpack.c.l.b16 %v90
    %v439 = vunpack.c.h.b16 %v90
    %v440 = vunpack.c.l.b16 %v91
    %v441 = vunpack.c.h.b16 %v91
    %v442 = vunpack.c.l.b16 %v92
    %v443 = vunpack.c.h.b16 %v92
    %v444 = vunpack.c.l.b16 %v93
    %v445 = vunpack.c.h.b16 %v93
    %v446 = vunpack.c.l.b16 %v94
    %v447 = vunpack.c.h.b16 %v94
    %v448 = vunpack.c.l.b16 %v95
    %v449 = vunpack.c.h.b16 %v95
    %v450 = vunpack.c.l.b16 %v96
    %v451 = vunpack.c.h.b16 %v96
    %v452 = vunpack.c.l.b16 %v97
    %v453 = vunpack.c.h.b16 %v97
    %v454 = vunpack.c.l.b16 %v98
    %v455 = vunpack.c.h.b16 %v98
    %v456 = vunpack.c.l.b16 %v99
    %v457 = vunpack.c.h.b16 %v99
    %v458 = vunpack.c.l.b16 %v100
    %v459 = vunpack.c.h.b16 %v100
    %v460 = vunpack.c.l.b16 %v101
    %v461 = vunpack.c.h.b16 %v101
    %v462 = vunpack.c.l.b16 %v102
    %v463 = vunpack.c.h.b16 %v102
    %v464 = vunpack.c.l.b16 %v103
    %v465 = vunpack.c.h.b16 %v103
    %v466 = vunpack.c.l.b16 %v104
    %v467 = vunpack.c.h.b16 %v104
    %v468 = vunpack.c.l.b16 %v105
    %v469 = vunpack.c.h.b16 %v105
    %v470 = vunpack.c.l.b16 %v106
    %v471 = vunpack.c.h.b16 %v106
    %v472 = vunpack.c.l.b16 %v107
    %v473 = vunpack.c.h.b16 %v107
    %v474 = vunpack.c.l.b16 %v108
    %v475 = vunpack.c.h.b16 %v108
    %v476 = vunpack.c.l.b16 %v109
    %v477 = vunpack.c.h.b16 %v109
    %v478 = vunpack.c.l.b16 %v110
    %v479 = vunpack.c.h.b16 %v110
    %v480 = vunpack.c.l.b16 %v111
    %v481 = vunpack.c.h.b16 %v111
    %v482 = vunpack.c.l.b16 %v112
    %v483 = vunpack.c.h.b16 %v112
    %v484 = vunpack.c.l.b16 %v113
    %v485 = vunpack.c.h.b16 %v113
    %v486 = vunpack.c.l.b16 %v114
    %v487 = vunpack.c.h.b16 %v114
    %v488 = vunpack.c.l.b16 %v115
    %v489 = vunpack.c.h.b16 %v115
    %v490 = vunpack.c.l.b16 %v116
    %v491 = vunpack.c.h.b16 %v116
    %v492 = vunpack.c.l.b16 %v117
    %v493 = vunpack.c.h.b16 %v117
    %v494 = vunpack.c.l.b16 %v118
    %v495 = vunpack.c.h.b16 %v118
    %v496 = vunpack.c.l.b16 %v119
    %v497 = vunpack.c.h.b16 %v119
    %v498 = vunpack.c.l.b16 %v120
    %v499 = vunpack.c.h.b16 %v120
    %v500 = vunpack.c.l.b16 %v121
    %v501 = vunpack.c.h.b16 %v121
    %v502 = vunpack.c.l.b16 %v122
    %v503 = vunpack.c.h.b16 %v122
    %v504 = vunpack.c.l.b16 %v123
    %v505 = vunpack.c.h.b16 %v123
    %v506 = vunpack.c.l.b16 %v124
    %v507 = vunpack.c.h.b16 %v124
    %v508 = vunpack.c.l.b16 %v125
    %v509 = vunpack.c.h.b16 %v125
    %v510 = vunpack.c.l.b16 %v126
    %v511 = vunpack.c.h.b16 %v126
    %v512 = vunpack.c.l.b16 %v127
    %v513 = vunpack.c.h.b16 %v127
    %v514 = vunpack.c.l.b16 %v128
    %v515 = vunpack.c.h.b16 %v128
    %v516 = vunpack.c.l.b16 %v129
    %v517 = vunpack.c.h.b16 %v129
    %v518 = vunpack.c.l.b16 %v130
    %v519 = vunpack.c.h.b16 %v130
    %v520 = vunpack.c.l.b16 %v131
    %v521 = vunpack.c.h.b16 %v131
    %v522 = vunpack.c.l.b16 %v132
    %v523 = vunpack.c.h.b16 %v132
    %v524 = vunpack.c.l.b16 %v133
    %v525 = vunpack.c.h.b16 %v133
    %v526 = vunpack.c.l.b16 %v134
    %v527 = vunpack.c.h.b16 %v134
    %v528 = vunpack.c.l.b16 %v135
    %v529 = vunpack.c.h.b16 %v135
    %v530 = vunpack.c.l.b16 %v136
    %v531 = vunpack.c.h.b16 %v136
    %v532 = vunpack.c.l.b16 %v137
    %v533 = vunpack.c.h.b16 %v137
    %v534 = vunpack.c.l.b16 %v138
    %v535 = vunpack.c.h.b16 %v138
    %v536 = vunpack.c.l.b16 %v139
    %v537 = vunpack.c.h.b16 %v139
    %v538 = vunpack.c.l.b16 %v140
    %v539 = vunpack.c.h.b16 %v140
    %v540 = vunpack.c.l.b16 %v141
    %v541 = vunpack.c.h.b16 %v141
    %v542 = vunpack.c.l.b16 %v142
    %v543 = vunpack.c.h.b16 %v142
    %v544 = vunpack.c.l.b16 %v143
    %v545 = vunpack.c.h.b16 %v143
    %v546 = vunpack.c.l.b16 %v144
    %v547 = vunpack.c.h.b16 %v144
    %v548 = vunpack.c.l.b16 %v145
    %v549 = vunpack.c.h.b16 %v145
    %v550 = vunpack.c.l.b16 %v146
    %v551 = vunpack.c.h.b16 %v146
    %v552 = vunpack.c.l.b16 %v147
    %v553 = vunpack.c.h.b16 %v147
    %v554 = vunpack.c.l.b16 %v148
    %v555 = vunpack.c.h.b16 %v148
    %v556 = vunpack.c.l.b16 %v149
    %v557 = vunpack.c.h.b16 %v149
    %v558 = vunpack.c.l.b16 %v150
    %v559 = vunpack.c.h.b16 %v150
    %v560 = vunpack.c.l.b16 %v151
    %v561 = vunpack.c.h.b16 %v151
    %v562 = vunpack.c.l.b16 %v152
    %v563 = vunpack.c.h.b16 %v152
    %v564 = vunpack.c.l.b16 %v153
    %v565 = vunpack.c.h.b16 %v153
    %v566 = vunpack.c.l.b16 %v154
    %v567 = vunpack.c.h.b16 %v154
    %v568 = vunpack.c.l.b16 %v155
    %v569 = vunpack.c.h.b16 %v155
    %v570 = vunpack.c.l.b16 %v156
    %v571 = vunpack.c.h.b16 %v156
    %v572 = vunpack.c.l.b16 %v157
    %v573 = vunpack.c.h.b16 %v157
    %v574 = vunpack.c.l.b16 %v158
    %v575 = vunpack.c.h.b16 %v158
    %v576 = vunpack.c.l.b16 %v159
    %v577 = vunpack.c.h.b16 %v159
    %v578 = vunpack.c.l.b16 %v160
    %v579 = vunpack.c.h.b16 %v160
    %v580 = vunpack.c.l.b16 %v161
    %v581 = vunpack.c.h.b16 %v161
    %v582 = vunpack.c.l.b16 %v162
    %v583 = vunpack.c.h.b16 %v162
    %v584 = vunpack.c.l.b16 %v163
    %v585 = vunpack.c.h.b16 %v163
    %v586 = vunpack.c.l.b16 %v164
    %v587 = vunpack.c.h.b16 %v164
    %v588 = vunpack.c.l.b16 %v165
    %v589 = vunpack.c.h.b16 %v165
    %v590 = vunpack.c.l.b16 %v166
    %v591 = vunpack.c.h.b16 %v166
    %v592 = vunpack.c.l.b16 %v167
    %v593 = vunpack.c.h.b16 %v167
    %v594 = vpack.c.b16 %v346, %v338
    %v595 = vpack.c.b16 %v347, %v339
    %v596 = vpack.c.b16 %v348, %v340
    %v597 = vpack.c.b16 %v349, %v341
    %v598 = vpack.c.b16 %v350, %v342
    %v599 = vpack.c.b16 %v351, %v343
    %v600 = vpack.c.b16 %v352, %v344
    %v601 = vpack.c.b16 %v353, %v345
    %v602 = vpack.c.b16 %v362, %v354
    %v603 = vpack.c.b16 %v363, %v355
    %v604 = vpack.c.b16 %v364, %v356
    %v605 = vpack.c.b16 %v365, %v357
    %v606 = vpack.c.b16 %v366, %v358
    %v607 = vpack.c.b16 %v367, %v359
    %v608 = vpack.c.b16 %v368, %v360
    %v609 = vpack.c.b16 %v369, %v361
    %v610 = vpack.c.b16 %v378, %v370
    %v611 = vpack.c.b16 %v379, %v371
    %v612 = vpack.c.b16 %v380, %v372
    %v613 = vpack.c.b16 %v381, %v373
    %v614 = vpack.c.b16 %v382, %v374
    %v615 = vpack.c.b16 %v383, %v375
    %v616 = vpack.c.b16 %v384, %v376
    %v617 = vpack.c.b16 %v385, %v377
    %v618 = vpack.c.b16 %v394, %v386
    %v619 = vpack.c.b16 %v395, %v387
    %v620 = vpack.c.b16 %v396, %v388
    %v621 = vpack.c.b16 %v397, %v389
    %v622 = vpack.c.b16 %v398, %v390
    %v623 = vpack.c.b16 %v399, %v391
    %v624 = vpack.c.b16 %v400, %v392
    %v625 = vpack.c.b16 %v401, %v393
    %v626 = vpack.c.b16 %v410, %v402
    %v627 = vpack.c.b16 %v411, %v403
    %v628 = vpack.c.b16 %v412, %v404
    %v629 = vpack.c.b16 %v413, %v405
    %v630 = vpack.c.b16 %v414, %v406
    %v631 = vpack.c.b16 %v415, %v407
    %v632 = vpack.c.b16 %v416, %v408
    %v633 = vpack.c.b16 %v417, %v409
    %v634 = vpack.c.b16 %v426, %v418
    %v635 = vpack.c.b16 %v427, %v419
    %v636 = vpack.c.b16 %v428, %v420
    %v637 = vpack.c.b16 %v429, %v421
    %v638 = vpack.c.b16 %v430, %v422
    %v639 = vpack.c.b16 %v431, %v423
    %v640 = vpack.c.b16 %v432, %v424
    %v641 = vpack.c.b16 %v433, %v425
    %v642 = vpack.c.b16 %v442, %v434
    %v643 = vpack.c.b16 %v443, %v435
    %v644 = vpack.c.b16 %v444, %v436
    %v645 = vpack.c.b16 %v445, %v437
    %v646 = vpack.c.b16 %v446, %v438
    %v647 = vpack.c.b16 %v447, %v439
    %v648 = vpack.c.b16 %v448, %v440
    %v649 = vpack.c.b16 %v449, %v441
    %v650 = vpack.c.b16 %v458, %v450
    %v651 = vpack.c.b16 %v459, %v451
    %v652 = vpack.c.b16 %v460, %v452
    %v653 = vpack.c.b16 %v461, %v453
    %v654 = vpack.c.b16 %v462, %v454
    %v655 = vpack.c.b16 %v463, %v455
    %v656 = vpack.c.b16 %v464, %v456
    %v657 = vpack.c.b16 %v465, %v457
    %v658 = vpack.c.b16 %v474, %v466
    %v659 = vpack.c.b16 %v475, %v467
    %v660 = vpack.c.b16 %v476, %v468
    %v661 = vpack.c.b16 %v477, %v469
    %v662 = vpack.c.b16 %v478, %v470
    %v663 = vpack.c.b16 %v479, %v471
    %v664 = vpack.c.b16 %v480, %v472
    %v665 = vpack.c.b16 %v481, %v473
    %v666 = vpack.c.b16 %v490, %v482
    %v667 = vpack.c.b16 %v491, %v483
    %v668 = vpack.c.b16 %v492, %v484
    %v669 = vpack.c.b16 %v493, %v485
    %v670 = vpack.c.b16 %v494, %v486
    %v671 = vpack.c.b16 %v495, %v487
    %v672 = vpack.c.b16 %v496, %v488
    %v673 = vpack.c.b16 %v497, %v489
    %v674 = vpack.c.b16 %v506, %v498
    %v675 = vpack.c.b16 %v507, %v499
    %v676 = vpack.c.b16 %v508, %v500
    %v677 = vpack.c.b16 %v509, %v501
    %v678 = vpack.c.b16 %v510, %v502
    %v679 = vpack.c.b16 %v511, %v503
    %v680 = vpack.c.b16 %v512, %v504
    %v681 = vpack.c.b16 %v513, %v505
    %v682 = vpack.c.b16 %v522, %v514
    %v683 = vpack.c.b16 %v523, %v515
    %v684 = vpack.c.b16 %v524, %v516
    %v685 = vpack.c.b16 %v525, %v517
    %v686 = vpack.c.b16 %v526, %v518
    %v687 = vpack.c.b16 %v527, %v519
    %v688 = vpack.c.b16 %v528, %v520
    %v689 = vpack.c.b16 %v529, %v521
    %v690 = vpack.c.b16 %v538, %v530
    %v691 = vpack.c.b16 %v539, %v531
    %v692 = vpack.c.b16 %v540, %v532
    %v693 = vpack.c.b16 %v541, %v533
    %v694 = vpack.c.b16 %v542, %v534
    %v695 = vpack.c.b16 %v543, %v535
    %v696 = vpack.c.b16 %v544, %v536
    %v697 = vpack.c.b16 %v545, %v537
    %v698 = vpack.c.b16 %v554, %v546
    %v699 = vpack.c.b16 %v555, %v547
    %v700 = vpack.c.b16 %v556, %v548
    %v701 = vpack.c.b16 %v557, %v549
    %v702 = vpack.c.b16 %v558, %v550
    %v703 = vpack.c.b16 %v559, %v551
    %v704 = vpack.c.b16 %v560, %v552
    %v705 = vpack.c.b16 %v561, %v553
    %v706 = vpack.c.b16 %v570, %v562
    %v707 = vpack.c.b16 %v571, %v563
    %v708 = vpack.c.b16 %v572, %v564
    %v709 = vpack.c.b16 %v573, %v565
    %v710 = vpack.c.b16 %v574, %v566
    %v711 = vpack.c.b16 %v575, %v567
    %v712 = vpack.c.b16 %v576, %v568
    %v713 = vpack.c.b16 %v577, %v569
    %v714 = vpack.c.b16 %v586, %v578
    %v715 = vpack.c.b16 %v587, %v579
    %v716 = vpack.c.b16 %v588, %v580
    %v717 = vpack.c.b16 %v589, %v581
    %v718 = vpack.c.b16 %v590, %v582
    %v719 = vpack.c.b16 %v591, %v583
    %v720 = vpack.c.b16 %v592, %v584
    %v721 = vpack.c.b16 %v593, %v585
    %850 = vmatprep.subr.bf16.mxu0 %v595
    %851 = vmatpush1.bf16.msra.mxu0 %v594
    %852 = vmatprep.subr.bf16.mxu0 %v603
    %853 = vmatpush1.bf16.msra.mxu0 %v602
    %854 = vmatprep.subr.bf16.mxu0 %v611
    %855 = vmatpush1.bf16.msra.mxu0 %v610
    %856 = vmatprep.subr.bf16.mxu0 %v619
    %857 = vmatpush1.bf16.msra.mxu0 %v618
    %858 = vmatprep.subr.bf16.mxu0 %v627
    %859 = vmatpush1.bf16.msra.mxu0 %v626
    %860 = vmatprep.subr.bf16.mxu0 %v635
    %861 = vmatpush1.bf16.msra.mxu0 %v634
    %862 = vmatprep.subr.bf16.mxu0 %v643
    %863 = vmatpush1.bf16.msra.mxu0 %v642
    %864 = vmatprep.subr.bf16.mxu0 %v651
    %865 = vmatpush1.bf16.msra.mxu0 %v650
    %866 = vmatprep.subr.bf16.mxu0 %v659
    %867 = vmatpush1.bf16.msra.mxu0 %v658
    %868 = vmatprep.subr.bf16.mxu0 %v667
    %869 = vmatpush1.bf16.msra.mxu0 %v666
    %870 = vmatprep.subr.bf16.mxu0 %v675
    %871 = vmatpush1.bf16.msra.mxu0 %v674
    %872 = vmatprep.subr.bf16.mxu0 %v683
    %873 = vmatpush1.bf16.msra.mxu0 %v682
    %874 = vmatprep.subr.bf16.mxu0 %v691
    %875 = vmatpush1.bf16.msra.mxu0 %v690
    %876 = vmatprep.subr.bf16.mxu0 %v699
    %877 = vmatpush1.bf16.msra.mxu0 %v698
    %878 = vmatprep.subr.bf16.mxu0 %v707
    %879 = vmatpush1.bf16.msra.mxu0 %v706
    %880 = vmatprep.subr.bf16.mxu0 %v715
    %881 = vmatpush1.bf16.msra.mxu0 %v714
    %882 = vmatprep.mubr.bf16.mxu0 %v37
    %883 = vmatmul.mubr.bf16.gmra.mrb[0].mxu0 %v36
    %v884 = vpop.f32.mrb[0].mxu0
    %v885 = vadd.f32 %v173, %v884
    %v886 = vpop.f32.mrb[0].mxu0
    %v887 = vadd.f32 %v177, %v886
    %v888 = vpop.f32.mrb[0].mxu0
    %v889 = vadd.f32 %v173, %v888
    %v890 = vpop.f32.mrb[0].mxu0
    %v891 = vadd.f32 %v177, %v890
    %892 = vmatprep.mubr.bf16.mxu0 %v39
    %893 = vmatmul.mubr.bf16.gmra.mrb[0].mxu0 %v38
    %v894 = vpop.f32.mrb[0].mxu0
    %v895 = vadd.f32 %v173, %v894
    %v896 = vpop.f32.mrb[0].mxu0
    %v897 = vadd.f32 %v177, %v896
    %v898 = vpop.f32.mrb[0].mxu0
    %v899 = vadd.f32 %v173, %v898
    %v900 = vpop.f32.mrb[0].mxu0
    %v901 = vadd.f32 %v177, %v900
    %902 = vdwg.mxu0
    %903 = vmatprep.subr.bf16.mxu0 %v597
    %904 = vmatpush1.bf16.msra.mxu0 %v596
    %905 = vmatprep.subr.bf16.mxu0 %v605
    %906 = vmatpush1.bf16.msra.mxu0 %v604
    %907 = vmatprep.subr.bf16.mxu0 %v613
    %908 = vmatpush1.bf16.msra.mxu0 %v612
    %909 = vmatprep.subr.bf16.mxu0 %v621
    %910 = vmatpush1.bf16.msra.mxu0 %v620
    %911 = vmatprep.subr.bf16.mxu0 %v629
    %912 = vmatpush1.bf16.msra.mxu0 %v628
    %913 = vmatprep.subr.bf16.mxu0 %v637
    %914 = vmatpush1.bf16.msra.mxu0 %v636
    %915 = vmatprep.subr.bf16.mxu0 %v645
    %916 = vmatpush1.bf16.msra.mxu0 %v644
    %917 = vmatprep.subr.bf16.mxu0 %v653
    %918 = vmatpush1.bf16.msra.mxu0 %v652
    %919 = vmatprep.subr.bf16.mxu0 %v661
    %920 = vmatpush1.bf16.msra.mxu0 %v660
    %921 = vmatprep.subr.bf16.mxu0 %v669
    %922 = vmatpush1.bf16.msra.mxu0 %v668
    %923 = vmatprep.subr.bf16.mxu0 %v677
    %924 = vmatpush1.bf16.msra.mxu0 %v676
    %925 = vmatprep.subr.bf16.mxu0 %v685
    %926 = vmatpush1.bf16.msra.mxu0 %v684
    %927 = vmatprep.subr.bf16.mxu0 %v693
    %928 = vmatpush1.bf16.msra.mxu0 %v692
    %929 = vmatprep.subr.bf16.mxu0 %v701
    %930 = vmatpush1.bf16.msra.mxu0 %v700
    %931 = vmatprep.subr.bf16.mxu0 %v709
    %932 = vmatpush1.bf16.msra.mxu0 %v708
    %933 = vmatprep.subr.bf16.mxu0 %v717
    %934 = vmatpush1.bf16.msra.mxu0 %v716
    %935 = vmatprep.mubr.bf16.mxu0 %v37
    %936 = vmatmul.mubr.bf16.gmra.mrb[0].mxu0 %v36
    %v937 = vpop.f32.mrb[0].mxu0
    %v938 = vadd.f32 %v181, %v937
    %v939 = vpop.f32.mrb[0].mxu0
    %v940 = vadd.f32 %v185, %v939
    %v941 = vpop.f32.mrb[0].mxu0
    %v942 = vadd.f32 %v181, %v941
    %v943 = vpop.f32.mrb[0].mxu0
    %v944 = vadd.f32 %v185, %v943
    %945 = vmatprep.mubr.bf16.mxu0 %v39
    %946 = vmatmul.mubr.bf16.gmra.mrb[0].mxu0 %v38
    %v947 = vpop.f32.mrb[0].mxu0
    %v948 = vadd.f32 %v181, %v947
    %v949 = vpop.f32.mrb[0].mxu0
    %v950 = vadd.f32 %v185, %v949
    %v951 = vpop.f32.mrb[0].mxu0
    %v952 = vadd.f32 %v181, %v951
    %v953 = vpop.f32.mrb[0].mxu0
    %v954 = vadd.f32 %v185, %v953
    %955 = vdwg.mxu0
    %956 = vmatprep.subr.bf16.mxu0 %v599
    %957 = vmatpush1.bf16.msra.mxu0 %v598
    %958 = vmatprep.subr.bf16.mxu0 %v607
    %959 = vmatpush1.bf16.msra.mxu0 %v606
    %960 = vmatprep.subr.bf16.mxu0 %v615
    %961 = vmatpush1.bf16.msra.mxu0 %v614
    %962 = vmatprep.subr.bf16.mxu0 %v623
    %963 = vmatpush1.bf16.msra.mxu0 %v622
    %964 = vmatprep.subr.bf16.mxu0 %v631
    %965 = vmatpush1.bf16.msra.mxu0 %v630
    %966 = vmatprep.subr.bf16.mxu0 %v639
    %967 = vmatpush1.bf16.msra.mxu0 %v638
    %968 = vmatprep.subr.bf16.mxu0 %v647
    %969 = vmatpush1.bf16.msra.mxu0 %v646
    %970 = vmatprep.subr.bf16.mxu0 %v655
    %971 = vmatpush1.bf16.msra.mxu0 %v654
    %972 = vmatprep.subr.bf16.mxu0 %v663
    %973 = vmatpush1.bf16.msra.mxu0 %v662
    %974 = vmatprep.subr.bf16.mxu0 %v671
    %975 = vmatpush1.bf16.msra.mxu0 %v670
    %976 = vmatprep.subr.bf16.mxu0 %v679
    %977 = vmatpush1.bf16.msra.mxu0 %v678
    %978 = vmatprep.subr.bf16.mxu0 %v687
    %979 = vmatpush1.bf16.msra.mxu0 %v686
    %980 = vmatprep.subr.bf16.mxu0 %v695
    %981 = vmatpush1.bf16.msra.mxu0 %v694
    %982 = vmatprep.subr.bf16.mxu0 %v703
    %983 = vmatpush1.bf16.msra.mxu0 %v702
    %984 = vmatprep.subr.bf16.mxu0 %v711
    %985 = vmatpush1.bf16.msra.mxu0 %v710
    %986 = vmatprep.subr.bf16.mxu0 %v719
    %987 = vmatpush1.bf16.msra.mxu0 %v718
    %988 = vmatprep.mubr.bf16.mxu0 %v37
    %989 = vmatmul.mubr.bf16.gmra.mrb[0].mxu0 %v36
    %v990 = vpop.f32.mrb[0].mxu0
    %v991 = vadd.f32 %v189, %v990
    %v992 = vpop.f32.mrb[0].mxu0
    %v993 = vadd.f32 %v193, %v992
    %v994 = vpop.f32.mrb[0].mxu0
    %v995 = vadd.f32 %v189, %v994
    %v996 = vpop.f32.mrb[0].mxu0
    %v997 = vadd.f32 %v193, %v996
    %998 = vmatprep.mubr.bf16.mxu0 %v39
    %999 = vmatmul.mubr.bf16.gmra.mrb[0].mxu0 %v38
    %v1000 = vpop.f32.mrb[0].mxu0
    %v1001 = vadd.f32 %v189, %v1000
    %v1002 = vpop.f32.mrb[0].mxu0
    %v1003 = vadd.f32 %v193, %v1002
    %v1004 = vpop.f32.mrb[0].mxu0
    %v1005 = vadd.f32 %v189, %v1004
    %v1006 = vpop.f32.mrb[0].mxu0
    %v1007 = vadd.f32 %v193, %v1006
    %1008 = vdwg.mxu0
    %1009 = vmatprep.subr.bf16.mxu0 %v601
    %1010 = vmatpush1.bf16.msra.mxu0 %v600
    %1011 = vmatprep.subr.bf16.mxu0 %v609
    %1012 = vmatpush1.bf16.msra.mxu0 %v608
    %1013 = vmatprep.subr.bf16.mxu0 %v617
    %1014 = vmatpush1.bf16.msra.mxu0 %v616
    %1015 = vmatprep.subr.bf16.mxu0 %v625
    %1016 = vmatpush1.bf16.msra.mxu0 %v624
    %1017 = vmatprep.subr.bf16.mxu0 %v633
    %1018 = vmatpush1.bf16.msra.mxu0 %v632
    %1019 = vmatprep.subr.bf16.mxu0 %v641
    %1020 = vmatpush1.bf16.msra.mxu0 %v640
    %1021 = vmatprep.subr.bf16.mxu0 %v649
    %1022 = vmatpush1.bf16.msra.mxu0 %v648
    %1023 = vmatprep.subr.bf16.mxu0 %v657
    %1024 = vmatpush1.bf16.msra.mxu0 %v656
    %1025 = vmatprep.subr.bf16.mxu0 %v665
    %1026 = vmatpush1.bf16.msra.mxu0 %v664
    %1027 = vmatprep.subr.bf16.mxu0 %v673
    %1028 = vmatpush1.bf16.msra.mxu0 %v672
    %1029 = vmatprep.subr.bf16.mxu0 %v681
    %1030 = vmatpush1.bf16.msra.mxu0 %v680
    %1031 = vmatprep.subr.bf16.mxu0 %v689
    %1032 = vmatpush1.bf16.msra.mxu0 %v688
    %1033 = vmatprep.subr.bf16.mxu0 %v697
    %1034 = vmatpush1.bf16.msra.mxu0 %v696
    %1035 = vmatprep.subr.bf16.mxu0 %v705
    %1036 = vmatpush1.bf16.msra.mxu0 %v704
    %1037 = vmatprep.subr.bf16.mxu0 %v713
    %1038 = vmatpush1.bf16.msra.mxu0 %v712
    %1039 = vmatprep.subr.bf16.mxu0 %v721
    %1040 = vmatpush1.bf16.msra.mxu0 %v720
    %1041 = vmatprep.mubr.bf16.mxu0 %v37
    %1042 = vmatmul.mubr.bf16.gmra.mrb[0].mxu0 %v36
    %v1043 = vpop.f32.mrb[0].mxu0
    %v1044 = vadd.f32 %v197, %v1043
    %v1045 = vpop.f32.mrb[0].mxu0
    %v1046 = vadd.f32 %v201, %v1045
    %v1047 = vpop.f32.mrb[0].mxu0
    %v1048 = vadd.f32 %v197, %v1047
    %v1049 = vpop.f32.mrb[0].mxu0
    %v1050 = vadd.f32 %v201, %v1049
    %1051 = vmatprep.mubr.bf16.mxu0 %v39
    %1052 = vmatmul.mubr.bf16.gmra.mrb[0].mxu0 %v38
    %v1053 = vpop.f32.mrb[0].mxu0
    %v1054 = vadd.f32 %v197, %v1053
    %v1055 = vpop.f32.mrb[0].mxu0
    %v1056 = vadd.f32 %v201, %v1055
    %v1057 = vpop.f32.mrb[0].mxu0
    %v1058 = vadd.f32 %v197, %v1057
    %v1059 = vpop.f32.mrb[0].mxu0
    %v1060 = vadd.f32 %v201, %v1059
    %1061 = vdwg.mxu0
    %1062 = vst [vmem:[%s3] sm:$0xff] %v885
    %1063 = vst [vmem:[%s3 + $0x8] sm:$0xff] %v887
    %1064 = vst [vmem:[%s3 + $0x10] sm:$0xff] %v938
    %1065 = vst [vmem:[%s3 + $0x18] sm:$0xff] %v940
    %1066 = vst [vmem:[%s3 + $0x20] sm:$0xff] %v991
    %1067 = vst [vmem:[%s3 + $0x28] sm:$0xff] %v993
    %1068 = vst [vmem:[%s3 + $0x30] sm:$0xff] %v1044
    %1069 = vst [vmem:[%s3 + $0x38] sm:$0xff] %v1046
    %1070 = vst [vmem:[%s3 + $0x40] sm:$0xff] %v889
    %1071 = vst [vmem:[%s3 + $0x48] sm:$0xff] %v891
    %1072 = vst [vmem:[%s3 + $0x50] sm:$0xff] %v942
    %1073 = vst [vmem:[%s3 + $0x58] sm:$0xff] %v944
    %1074 = vst [vmem:[%s3 + $0x60] sm:$0xff] %v995
    %1075 = vst [vmem:[%s3 + $0x68] sm:$0xff] %v997
    %1076 = vst [vmem:[%s3 + $0x70] sm:$0xff] %v1048
    %1077 = vst [vmem:[%s3 + $0x78] sm:$0xff] %v1050
    %1078 = vst [vmem:[%s3 + $0x80] sm:$0xff] %v895
    %1079 = vst [vmem:[%s3 + $0x88] sm:$0xff] %v897
    %1080 = vst [vmem:[%s3 + $0x90] sm:$0xff] %v948
    %1081 = vst [vmem:[%s3 + $0x98] sm:$0xff] %v950
    %1082 = vst [vmem:[%s3 + $0xa0] sm:$0xff] %v1001
    %1083 = vst [vmem:[%s3 + $0xa8] sm:$0xff] %v1003
    %1084 = vst [vmem:[%s3 + $0xb0] sm:$0xff] %v1054
    %1085 = vst [vmem:[%s3 + $0xb8] sm:$0xff] %v1056
    %1086 = vst [vmem:[%s3 + $0xc0] sm:$0xff] %v899
    %1087 = vst [vmem:[%s3 + $0xc8] sm:$0xff] %v901
    %1088 = vst [vmem:[%s3 + $0xd0] sm:$0xff] %v952
    %1089 = vst [vmem:[%s3 + $0xd8] sm:$0xff] %v954
    %1090 = vst [vmem:[%s3 + $0xe0] sm:$0xff] %v1005
    %1091 = vst [vmem:[%s3 + $0xe8] sm:$0xff] %v1007
    %1092 = vst [vmem:[%s3 + $0xf0] sm:$0xff] %v1058
    %1093 = vst [vmem:[%s3 + $0xf8] sm:$0xff] %v1060
    // Predicated region
    $region18: #{fc_lstm_forward.3} parent=1 // pred_check
      _
    $region19: #{fc_lstm_forward.3} parent=1 // pred_check_branch
      %1095 = sbr.rel (0) target = $region21
    $region20: #{fc_lstm_forward.3} parent=1 // pred_region
      _
    $region21: #{fc_lstm_forward.3} parent=1 // pred_fallthru
      _
    // Predicated region
    $region22: #{fc_lstm_forward.3} parent=1 // pred_check
      _
    $region23: #{fc_lstm_forward.3} parent=1 // pred_check_branch
      %1097 = sbr.rel (0) target = $region25
    $region24: #{fc_lstm_forward.3} parent=1 // pred_region
      _
    $region25: #{fc_lstm_forward.3} parent=1 // pred_fallthru
      _
    %1098 = vsyncpa [#allocation3], 1

</llo_original>
